<compile_context>
chip_gen: v6e
topology: v6e:2x2x1
jax: 0.10.0
libtpu: 0.0.40
codegen_flags: <defaults>
</compile_context>

<pallas_src>
import numpy as np

import jax
import jax.numpy as jnp
from jax.experimental import pallas as pl
from jax.experimental.pallas import tpu as pltpu


def _round_up(x, m):
    return (x + m - 1) // m * m


_ROW_TILE = 512  # row tile for the flattened (B*L, D) matmul kernels

# parallel leading grid axis (megacore on v7x) + explicit VMEM budget
_PARALLEL_1D = pltpu.CompilerParams(
    dimension_semantics=("parallel",),
    vmem_limit_bytes=32 * 1024 * 1024,
)


# ----------------------------------------------------------------------------
# Pallas kernels
# ----------------------------------------------------------------------------
def _matmul_kernel(x_ref, w_ref, o_ref):
    o_ref[...] = jnp.dot(x_ref[...], w_ref[...], preferred_element_type=jnp.float32)


def _proj_add_decomp_kernel(attn_ref, x_ref, w_ref, a_ref, res_ref, mean_ref):
    # s = x + (attn_out @ Wfc)   (residual add fused)
    # mean = A @ s               (moving average via precomputed [L,L] matrix)
    # res  = s - mean
    s = x_ref[0] + jnp.dot(attn_ref[0], w_ref[...], preferred_element_type=jnp.float32)
    mean = jnp.dot(a_ref[...], s, preferred_element_type=jnp.float32)
    mean_ref[0] = mean
    res_ref[0] = s - mean


def _ffn_add_decomp_kernel(x_ref, w1_ref, w2_ref, a_ref, res_ref, mean_ref):
    # conv1(1x1) -> relu -> conv2(1x1) -> residual add -> series decomposition
    x = x_ref[0]
    h = jnp.maximum(jnp.dot(x, w1_ref[...], preferred_element_type=jnp.float32), 0.0)
    y = jnp.dot(h, w2_ref[...], preferred_element_type=jnp.float32)
    s = x + y
    mean = jnp.dot(a_ref[...], s, preferred_element_type=jnp.float32)
    mean_ref[0] = mean
    res_ref[0] = s - mean


def _trend_accum_kernel(t1_ref, t2_ref, t3_ref, tp_ref,
                        w0_ref, w1_ref, w2_ref, o_ref):
    # residual_trend = trend1 + trend2 + trend3
    # circular Conv1d(d_model -> c_out, kernel=3, padding=1, no bias)
    # accumulated into the running trend (aliased output)
    s = t1_ref[0] + t2_ref[0] + t3_ref[0]          # [L, D]
    L = s.shape[0]
    sm1 = pltpu.roll(s, 1, 0)                       # s[t-1] (circular), XLU rotate
    sp1 = pltpu.roll(s, L - 1, 0)                   # s[t+1] (circular)
    o_ref[0] = (
        tp_ref[0]
        + jnp.dot(sm1, w0_ref[...], preferred_element_type=jnp.float32)
        + jnp.dot(s, w1_ref[...], preferred_element_type=jnp.float32)
        + jnp.dot(sp1, w2_ref[...], preferred_element_type=jnp.float32)
    )


def _norm_proj_kernel(x_ref, g_ref, b_ref, w_ref, pb_ref, o_ref):
    # SeasonalLayerNorm (channel LN then subtract time-mean) + final Linear
    x = x_ref[0]
    mu = jnp.mean(x, axis=-1, keepdims=True)
    var = jnp.mean((x - mu) ** 2, axis=-1, keepdims=True)
    x_hat = (x - mu) * jax.lax.rsqrt(var + 1e-5) * g_ref[...] + b_ref[...]
    x_hat = x_hat - jnp.mean(x_hat, axis=0, keepdims=True)
    o_ref[0] = (jnp.dot(x_hat, w_ref[...], preferred_element_type=jnp.float32)
                + pb_ref[...])


# ----------------------------------------------------------------------------
# Pallas wrappers
# ----------------------------------------------------------------------------
def pallas_linear(x, w, tile_m=_ROW_TILE):
    """x: [..., Din] @ w: [Din, Dout], row-tiled over the flattened leading dims."""
    lead, din = x.shape[:-1], x.shape[-1]
    dout = w.shape[1]
    x2 = x.reshape(-1, din)
    n = x2.shape[0]
    tm = min(_round_up(n, 8), tile_m)
    n_pad = _round_up(n, tm)
    if n_pad != n:
        x2 = jnp.pad(x2, ((0, n_pad - n), (0, 0)))
    out = pl.pallas_call(
        _matmul_kernel,
        out_shape=jax.ShapeDtypeStruct((n_pad, dout), jnp.float32),
        grid=(n_pad // tm,),
        in_specs=[
            pl.BlockSpec((tm, din), lambda i: (i, 0)),
            pl.BlockSpec((din, dout), lambda i: (0, 0)),   # weight resident
        ],
        out_specs=pl.BlockSpec((tm, dout), lambda i: (i, 0)),
        compiler_params=_PARALLEL_1D,
    )(x2, w)
    if n_pad != n:
        out = out[:n]
    return out.reshape(*lead, dout)


def pallas_proj_add_decomp(delta, x, w, avg_mat):
    """res, mean of series_decomp(x + delta @ w), per-batch blocks."""
    B, L, D = x.shape
    res, mean = pl.pallas_call(
        _proj_add_decomp_kernel,
        out_shape=(jax.ShapeDtypeStruct((B, L, D), jnp.float32),
                   jax.ShapeDtypeStruct((B, L, D), jnp.float32)),
        grid=(B,),
        in_specs=[
            pl.BlockSpec((1, L, D), lambda b: (b, 0, 0)),
            pl.BlockSpec((1, L, D), lambda b: (b, 0, 0)),
            pl.BlockSpec((D, D), lambda b: (0, 0)),
            pl.BlockSpec((L, L), lambda b: (0, 0)),
        ],
        out_specs=(pl.BlockSpec((1, L, D), lambda b: (b, 0, 0)),
                   pl.BlockSpec((1, L, D), lambda b: (b, 0, 0))),
        compiler_params=_PARALLEL_1D,
    )(delta, x, w, avg_mat)
    return res, mean


def pallas_ffn_add_decomp(x, w1, w2, avg_mat):
    B, L, D = x.shape
    dff = w1.shape[1]
    res, mean = pl.pallas_call(
        _ffn_add_decomp_kernel,
        out_shape=(jax.ShapeDtypeStruct((B, L, D), jnp.float32),
                   jax.ShapeDtypeStruct((B, L, D), jnp.float32)),
        grid=(B,),
        in_specs=[
            pl.BlockSpec((1, L, D), lambda b: (b, 0, 0)),
            pl.BlockSpec((D, dff), lambda b: (0, 0)),
            pl.BlockSpec((dff, D), lambda b: (0, 0)),
            pl.BlockSpec((L, L), lambda b: (0, 0)),
        ],
        out_specs=(pl.BlockSpec((1, L, D), lambda b: (b, 0, 0)),
                   pl.BlockSpec((1, L, D), lambda b: (b, 0, 0))),
        compiler_params=_PARALLEL_1D,
    )(x, w1, w2, avg_mat)
    return res, mean


def pallas_trend_accumulate(t1, t2, t3, trend_prev, w3):
    """trend_prev + circular_conv3(t1+t2+t3) ; trend_prev aliased to the output."""
    B, L, D = t1.shape
    c_out = w3.shape[-1]
    return pl.pallas_call(
        _trend_accum_kernel,
        out_shape=jax.ShapeDtypeStruct((B, L, c_out), jnp.float32),
        grid=(B,),
        in_specs=[pl.BlockSpec((1, L, D), lambda b: (b, 0, 0))] * 3
        + [pl.BlockSpec((1, L, c_out), lambda b: (b, 0, 0))]
        + [pl.BlockSpec((D, c_out), lambda b: (0, 0))] * 3,
        out_specs=pl.BlockSpec((1, L, c_out), lambda b: (b, 0, 0)),
        input_output_aliases={3: 0},   # accumulate in place, no extra HBM buffer
        compiler_params=_PARALLEL_1D,
    )(t1, t2, t3, trend_prev, w3[0], w3[1], w3[2])


def pallas_norm_project(x, gamma, beta, w, b):
    B, L, D = x.shape
    d_out = w.shape[1]
    return pl.pallas_call(
        _norm_proj_kernel,
        out_shape=jax.ShapeDtypeStruct((B, L, d_out), jnp.float32),
        grid=(B,),
        in_specs=[
            pl.BlockSpec((1, L, D), lambda b: (b, 0, 0)),
            pl.BlockSpec((1, D), lambda b: (0, 0)),
            pl.BlockSpec((1, D), lambda b: (0, 0)),
            pl.BlockSpec((D, d_out), lambda b: (0, 0)),
            pl.BlockSpec((1, d_out), lambda b: (0, 0)),
        ],
        out_specs=pl.BlockSpec((1, L, d_out), lambda b: (b, 0, 0)),
        compiler_params=_PARALLEL_1D,
    )(x, gamma.reshape(1, D), beta.reshape(1, D), w, b.reshape(1, d_out))


# ----------------------------------------------------------------------------
# Fourier attention operators (frequency-domain glue)
# TODO(synk): torch.fft.rfft/irfft and complex-valued mode mixing have no clean
# Pallas TPU equivalent; FFT + complex einsums stay in XLA, while all real
# projections run through the Pallas kernels above.
# ----------------------------------------------------------------------------
def _take_last_complex(x_c, idx):
    # gather along the last axis, done on real/imag planes (TPU-friendly)
    return jax.lax.complex(jnp.take(jnp.real(x_c), idx, axis=-1),
                           jnp.take(jnp.imag(x_c), idx, axis=-1))


def _scatter_last_complex(values, idx, out_len):
    shape = values.shape[:-1] + (out_len,)
    re = jnp.zeros(shape, jnp.float32).at[..., idx].set(jnp.real(values))
    im = jnp.zeros(shape, jnp.float32).at[..., idx].set(jnp.imag(values))
    return jax.lax.complex(re, im)


def fourier_block_apply(q_blhe, index, weights):
    """FourierBlock: q [B,L,H,E], complex weights [H,E,E,M] -> [B,H,E,L]."""
    B, L, H, E = q_blhe.shape
    x = jnp.transpose(q_blhe, (0, 2, 3, 1))              # [B,H,E,L]
    x_ft = jnp.fft.rfft(x, axis=-1)                      # [B,H,E,F]
    idx = jnp.asarray(index, jnp.int32)                  # all indices < L//2 < F
    x_sel = _take_last_complex(x_ft, idx)                # [B,H,E,M]
    out_sel = jnp.einsum("bhem,heom->bhom", x_sel, weights)
    M = len(index)
    # reference writes the M mixed modes at positions 0..M-1, rest are zero
    out_ft = jnp.pad(out_sel, ((0, 0), (0, 0), (0, 0), (0, L // 2 + 1 - M)))
    return jnp.fft.irfft(out_ft, n=L, axis=-1)           # [B,H,E,L]


def fourier_cross_attention_apply(q, k, index_q, index_kv, weights, in_ch, out_ch):
    """FourierCrossAttention (activation='tanh'): q [B,Lq,H,E], k [B,Lkv,H,E]."""
    B, Lq, H, E = q.shape
    xq_ft = jnp.fft.rfft(jnp.transpose(q, (0, 2, 3, 1)), axis=-1)
    xk_ft = jnp.fft.rfft(jnp.transpose(k, (0, 2, 3, 1)), axis=-1)
    iq = jnp.asarray(index_q, jnp.int32)
    ik = jnp.asarray(index_kv, jnp.int32)
    xq_ft_ = _take_last_complex(xq_ft, iq)               # [B,H,E,Mq]
    xk_ft_ = _take_last_complex(xk_ft, ik)               # [B,H,E,Mkv]
    xqk_ft = jnp.tanh(jnp.einsum("bhex,bhey->bhxy", xq_ft_, xk_ft_))  # complex tanh
    xqkv_ft = jnp.einsum("bhxy,bhey->bhex", xqk_ft, xk_ft_)
    xqkvw = jnp.einsum("bhex,heox->bhox", xqkv_ft, weights)           # [B,H,E,Mq]
    out_ft = _scatter_last_complex(xqkvw, iq, Lq // 2 + 1)
    return jnp.fft.irfft(out_ft / in_ch / out_ch, n=Lq, axis=-1)      # [B,H,E,Lq]


def _fourier_out_to_bld(out_bhel, B, L, D):
    # TODO(synk): the PyTorch wrapper reshapes the operator output with
    # transpose(1,2)+view, which for a [B,H,E,L] Fourier output mixes head/time
    # axes; here we use the mathematically intended [B,H,E,L]->[B,L,H*E] permute.
    return jnp.transpose(out_bhel, (0, 3, 1, 2)).reshape(B, L, D)


# ----------------------------------------------------------------------------
# Decoder layer / full decoder
# ----------------------------------------------------------------------------
def decoder_layer_forward(x, cross, lp, avg_mat, trend):
    B, L, D = x.shape
    H, E = lp["n_heads"], lp["d_head"]

    # --- self attention: FourierBlock reads only q (k/v projections are dead) ---
    sp = lp["self_attn"]
    q = pallas_linear(x, sp["wq"]).reshape(B, L, H, E)
    sa = _fourier_out_to_bld(fourier_block_apply(q, sp["index"], sp["freq_w"]),
                             B, L, D)
    # fused: fc projection + residual add + series decomposition
    x, trend1 = pallas_proj_add_decomp(sa, x, sp["wfc"], avg_mat)

    # --- cross attention: FourierCrossAttention reads q, k (v is dead) ---
    cp = lp["cross_attn"]
    qc = pallas_linear(x, cp["wq"]).reshape(B, L, H, E)
    kc = pallas_linear(cross, cp["wk"]).reshape(B, cross.shape[1], H, E)
    ca = _fourier_out_to_bld(
        fourier_cross_attention_apply(qc, kc, cp["index_q"], cp["index_kv"],
                                      cp["freq_w"], D, D),
        B, L, D)
    x, trend2 = pallas_proj_add_decomp(ca, x, cp["wfc"], avg_mat)

    # --- position-wise FFN + residual + decomposition (fused) ---
    x, trend3 = pallas_ffn_add_decomp(x, lp["ffn_w1"], lp["ffn_w2"], avg_mat)

    # --- trend sum + circular kernel-3 projection + running-trend accumulation ---
    trend = pallas_trend_accumulate(trend1, trend2, trend3, trend, lp["trend_w"])
    return x, trend


def fedformer_decoder_forward(params, X, cross):
    B, L, _ = X.shape
    trend = jnp.zeros((B, L, params["d_output"]), jnp.float32)
    x = X
    for lp in params["layers"]:
        x, trend = decoder_layer_forward(x, cross, lp, params["avg_mat"], trend)
    dec_out = pallas_norm_project(x, params["norm_gamma"], params["norm_beta"],
                                  params["proj_w"], params["proj_b"])
    return dec_out, trend


# ----------------------------------------------------------------------------
# Deterministic parameter / constant construction
# ----------------------------------------------------------------------------
def get_frequency_modes(seq_len, modes, mode_select_method, seed):
    modes = min(modes, seq_len // 2)
    if mode_select_method == "random":
        rng = np.random.default_rng(seed)
        index = list(rng.permutation(seq_len // 2))[:modes]
    else:
        index = list(range(modes))
    index.sort()
    return [int(i) for i in index]


def build_avg_matrix(L, kernel_size):
    """[L, L] matrix reproducing AvgPool1d(k, stride=1) over edge-replicated pad.
    TODO(synk): O(L^2) operand; fine for moderate L, a k-tap shifted-add would
    be preferable for very long sequences."""
    pad = (kernel_size - 1) // 2
    A = np.zeros((L, L), np.float32)
    for t in range(L):
        for j in range(kernel_size):
            u = min(max(t + j - pad, 0), L - 1)
            A[t, u] += 1.0 / kernel_size
    return jnp.asarray(A)


def init_params(seed, *, n_steps, n_pred_steps, n_layers, n_heads, d_model,
                d_ffn, d_output, moving_avg_window_size, modes, mode_select):
    L_q = n_steps // 2 + n_pred_steps
    L_kv = n_steps
    d_head = d_model // n_heads
    key = jax.random.PRNGKey(seed)

    def nxt():
        nonlocal key
        key, sub = jax.random.split(key)
        return sub

    def dense(din, dout):
        return (jax.random.normal(nxt(), (din, dout), jnp.float32)
                / np.sqrt(din)).astype(jnp.float32)

    def freq_weights(h, e_in, e_out, m, scale):
        re = jax.random.uniform(nxt(), (h, e_in, e_out, m), jnp.float32)
        im = jax.random.uniform(nxt(), (h, e_in, e_out, m), jnp.float32)
        return (scale * (re + 1j * im)).astype(jnp.complex64)

    index_self = get_frequency_modes(L_q, modes, mode_select, seed=1)
    index_q = get_frequency_modes(L_q, modes, mode_select, seed=2)
    index_kv = get_frequency_modes(L_kv, modes, mode_select, seed=3)
    scale = 1.0 / (d_model * d_model)

    layers = []
    for _ in range(n_layers):
        layers.append({
            "n_heads": n_heads, "d_head": d_head,
            # NOTE: k/v projections of the self block and the v projection of
            # the cross block are never read by the Fourier operators and are
            # therefore not instantiated (outputs unchanged).
            "self_attn": {
                "wq": dense(d_model, d_model), "wfc": dense(d_model, d_model),
                "index": index_self,
                # FourierBlock hard-codes 8 heads in its weight shape
                "freq_w": freq_weights(8, d_model // 8, d_model // 8,
                                       len(index_self), scale),
            },
            "cross_attn": {
                "wq": dense(d_model, d_model), "wk": dense(d_model, d_model),
                "wfc": dense(d_model, d_model),
                "index_q": index_q, "index_kv": index_kv,
                "freq_w": freq_weights(n_heads, d_head, d_head,
                                       len(index_q), scale),
            },
            "ffn_w1": dense(d_model, d_ffn),
            "ffn_w2": dense(d_ffn, d_model),
            "trend_w": (jax.random.normal(nxt(), (3, d_model, d_output), jnp.float32)
                        / np.sqrt(3 * d_model)).astype(jnp.float32),
        })

    params = {
        "layers": layers,
        "norm_gamma": jnp.ones((d_model,), jnp.float32),
        "norm_beta": jnp.zeros((d_model,), jnp.float32),
        "proj_w": dense(d_model, d_output),
        "proj_b": jnp.zeros((d_output,), jnp.float32),
        "avg_mat": build_avg_matrix(L_q, moving_avg_window_size),
        "d_output": d_output,
    }
    return params, L_q, L_kv


# ----------------------------------------------------------------------------
if __name__ == "__main__":
    # small but structurally faithful configuration
    n_steps, n_pred_steps = 16, 8
    n_layers, n_heads, d_model, d_ffn, d_output = 2, 8, 32, 64, 8
    moving_avg_window_size, modes = 5, 4
    B = 2

    params, L_q, L_kv = init_params(
        0,
        n_steps=n_steps, n_pred_steps=n_pred_steps, n_layers=n_layers,
        n_heads=n_heads, d_model=d_model, d_ffn=d_ffn, d_output=d_output,
        moving_avg_window_size=moving_avg_window_size, modes=modes,
        mode_select="random",
    )

    kx, kc = jax.random.split(jax.random.PRNGKey(0))
    X = jax.random.normal(kx, (B, L_q, d_model), jnp.float32)       # decoder (seasonal) input
    cross = jax.random.normal(kc, (B, L_kv, d_model), jnp.float32)  # encoder output

    fwd = jax.jit(lambda a, b: fedformer_decoder_forward(params, a, b))
    dec_out, trend = fwd(X, cross)
    dec_out = jax.block_until_ready(dec_out)
    trend = jax.block_until_ready(trend)

    assert dec_out.shape == (B, L_q, d_output)
    assert trend.shape == (B, L_q, d_output)
    assert bool(jnp.all(jnp.isfinite(dec_out))) and bool(jnp.all(jnp.isfinite(trend)))
    print("KERNEL_OK")
</pallas_src>

<mosaic_0001>
module attributes {stable_mosaic.version = 11 : i64} {
  func.func @_matmul_kernel(%arg0: i32, %arg1: memref<32x32xf32, #tpu.memory_space<vmem>>, %arg2: memref<32x32xf32, #tpu.memory_space<vmem>>, %arg3: memref<32x32xf32, #tpu.memory_space<vmem>>) attributes {dimension_semantics = [#tpu.dimension_semantics<parallel>], iteration_bounds = array<i64: 1>, scalar_prefetch = 0 : i64, scratch_operands = 0 : i64, tpu.core_type = #tpu.core_type<tc>, window_params = [{transform_indices = @transform_0, window_bounds = array<i64: 32, 32>}, {pipeline_mode = #tpu.pipeline_mode<synchronous>, transform_indices = @transform_1, window_bounds = array<i64: 32, 32>}, {transform_indices = @transform_2, window_bounds = array<i64: 32, 32>}]} {
    %c0 = arith.constant 0 : index
    %c0_0 = arith.constant 0 : index
    %0 = vector.load %arg1[%c0, %c0_0] : memref<32x32xf32, #tpu.memory_space<vmem>>, vector<32x32xf32>
    %c0_1 = arith.constant 0 : index
    %c0_2 = arith.constant 0 : index
    %1 = vector.load %arg2[%c0_1, %c0_2] : memref<32x32xf32, #tpu.memory_space<vmem>>, vector<32x32xf32>
    %cst = arith.constant dense<0.000000e+00> : vector<32x32xf32>
    %2 = tpu.matmul %0, %1, %cst {dimension_numbers = #tpu.dot_dimension_numbers<[1], [0], [0], [1], [0, 0, 1, 1], [], []>} : vector<32x32xf32>, vector<32x32xf32>, vector<32x32xf32> -> vector<32x32xf32>
    %c0_3 = arith.constant 0 : index
    %c0_4 = arith.constant 0 : index
    %3 = vector.load %arg3[%c0_3, %c0_4] : memref<32x32xf32, #tpu.memory_space<vmem>>, vector<32x32xf32>
    tpu.vector_store %arg3[%c0_3, %c0_4], %2 {strides = array<i32>} : memref<32x32xf32, #tpu.memory_space<vmem>>, vector<32x32xf32>,
    return
  }
  func.func @transform_0(%arg0: i32) -> (i32, i32) {
    %c0_i32 = arith.constant 0 : i32
    %c0_i32_0 = arith.constant 0 : i32
    return %arg0, %c0_i32 : i32, i32
  }
  func.func @transform_1(%arg0: i32) -> (i32, i32) {
    %c0_i32 = arith.constant 0 : i32
    %c0_i32_0 = arith.constant 0 : i32
    %c0_i32_1 = arith.constant 0 : i32
    return %c0_i32, %c0_i32_0 : i32, i32
  }
  func.func @transform_2(%arg0: i32) -> (i32, i32) {
    %c0_i32 = arith.constant 0 : i32
    %c0_i32_0 = arith.constant 0 : i32
    return %arg0, %c0_i32 : i32, i32
  }
}

module attributes {stable_mosaic.version = 11 : i64} {
  func.func @_proj_add_decomp_kernel(%arg0: i32, %arg1: memref<1x16x32xf32, #tpu.memory_space<vmem>>, %arg2: memref<1x16x32xf32, #tpu.memory_space<vmem>>, %arg3: memref<32x32xf32, #tpu.memory_space<vmem>>, %arg4: memref<16x16xf32, #tpu.memory_space<vmem>>, %arg5: memref<1x16x32xf32, #tpu.memory_space<vmem>>, %arg6: memref<1x16x32xf32, #tpu.memory_space<vmem>>) attributes {dimension_semantics = [#tpu.dimension_semantics<parallel>], iteration_bounds = array<i64: 2>, scalar_prefetch = 0 : i64, scratch_operands = 0 : i64, tpu.core_type = #tpu.core_type<tc>, window_params = [{transform_indices = @transform_0, window_bounds = array<i64: 1, 16, 32>}, {transform_indices = @transform_1, window_bounds = array<i64: 1, 16, 32>}, {pipeline_mode = #tpu.pipeline_mode<synchronous>, transform_indices = @transform_2, window_bounds = array<i64: 32, 32>}, {pipeline_mode = #tpu.pipeline_mode<synchronous>, transform_indices = @transform_3, window_bounds = array<i64: 16, 16>}, {transform_indices = @transform_4, window_bounds = array<i64: 1, 16, 32>}, {transform_indices = @transform_5, window_bounds = array<i64: 1, 16, 32>}]} {
    %c0 = arith.constant 0 : index
    %c0_0 = arith.constant 0 : index
    %c0_1 = arith.constant 0 : index
    %0 = vector.load %arg2[%c0, %c0_0, %c0_1] : memref<1x16x32xf32, #tpu.memory_space<vmem>>, vector<1x16x32xf32>
    %1 = vector.shape_cast %0 : vector<1x16x32xf32> to vector<16x32xf32>
    %c0_2 = arith.constant 0 : index
    %c0_3 = arith.constant 0 : index
    %c0_4 = arith.constant 0 : index
    %2 = vector.load %arg1[%c0_2, %c0_3, %c0_4] : memref<1x16x32xf32, #tpu.memory_space<vmem>>, vector<1x16x32xf32>
    %3 = vector.shape_cast %2 : vector<1x16x32xf32> to vector<16x32xf32>
    %c0_5 = arith.constant 0 : index
    %c0_6 = arith.constant 0 : index
    %4 = vector.load %arg3[%c0_5, %c0_6] : memref<32x32xf32, #tpu.memory_space<vmem>>, vector<32x32xf32>
    %cst = arith.constant dense<0.000000e+00> : vector<16x32xf32>
    %5 = tpu.matmul %3, %4, %cst {dimension_numbers = #tpu.dot_dimension_numbers<[1], [0], [0], [1], [0, 0, 1, 1], [], []>} : vector<16x32xf32>, vector<32x32xf32>, vector<16x32xf32> -> vector<16x32xf32>
    %6 = arith.addf %1, %5 : vector<16x32xf32>
    %c0_7 = arith.constant 0 : index
    %c0_8 = arith.constant 0 : index
    %7 = vector.load %arg4[%c0_7, %c0_8] : memref<16x16xf32, #tpu.memory_space<vmem>>, vector<16x16xf32>
    %cst_9 = arith.constant dense<0.000000e+00> : vector<16x32xf32>
    %8 = tpu.matmul %7, %6, %cst_9 {dimension_numbers = #tpu.dot_dimension_numbers<[1], [0], [0], [1], [0, 0, 1, 1], [], []>} : vector<16x16xf32>, vector<16x32xf32>, vector<16x32xf32> -> vector<16x32xf32>
    %c0_10 = arith.constant 0 : index
    %c0_11 = arith.constant 0 : index
    %c0_12 = arith.constant 0 : index
    %9 = vector.load %arg6[%c0_10, %c0_11, %c0_12] : memref<1x16x32xf32, #tpu.memory_space<vmem>>, vector<1x16x32xf32>
    %10 = vector.shape_cast %9 : vector<1x16x32xf32> to vector<16x32xf32>
    %11 = vector.shape_cast %8 : vector<16x32xf32> to vector<1x16x32xf32>
    tpu.vector_store %arg6[%c0_10, %c0_11, %c0_12], %11 {strides = array<i32>} : memref<1x16x32xf32, #tpu.memory_space<vmem>>, vector<1x16x32xf32>,
    %12 = arith.subf %6, %8 : vector<16x32xf32>
    %c0_13 = arith.constant 0 : index
    %c0_14 = arith.constant 0 : index
    %c0_15 = arith.constant 0 : index
    %13 = vector.load %arg5[%c0_13, %c0_14, %c0_15] : memref<1x16x32xf32, #tpu.memory_space<vmem>>, vector<1x16x32xf32>
    %14 = vector.shape_cast %13 : vector<1x16x32xf32> to vector<16x32xf32>
    %15 = vector.shape_cast %12 : vector<16x32xf32> to vector<1x16x32xf32>
    tpu.vector_store %arg5[%c0_13, %c0_14, %c0_15], %15 {strides = array<i32>} : memref<1x16x32xf32, #tpu.memory_space<vmem>>, vector<1x16x32xf32>,
    return
  }
  func.func @transform_0(%arg0: i32) -> (i32, i32, i32) {
    %c0_i32 = arith.constant 0 : i32
    %c0_i32_0 = arith.constant 0 : i32
    %c0_i32_1 = arith.constant 0 : i32
    return %arg0, %c0_i32, %c0_i32_0 : i32, i32, i32
  }
  func.func @transform_1(%arg0: i32) -> (i32, i32, i32) {
    %c0_i32 = arith.constant 0 : i32
    %c0_i32_0 = arith.constant 0 : i32
    %c0_i32_1 = arith.constant 0 : i32
    return %arg0, %c0_i32, %c0_i32_0 : i32, i32, i32
  }
  func.func @transform_2(%arg0: i32) -> (i32, i32) {
    %c0_i32 = arith.constant 0 : i32
    %c0_i32_0 = arith.constant 0 : i32
    %c0_i32_1 = arith.constant 0 : i32
    return %c0_i32, %c0_i32_0 : i32, i32
  }
  func.func @transform_3(%arg0: i32) -> (i32, i32) {
    %c0_i32 = arith.constant 0 : i32
    %c0_i32_0 = arith.constant 0 : i32
    %c0_i32_1 = arith.constant 0 : i32
    return %c0_i32, %c0_i32_0 : i32, i32
  }
  func.func @transform_4(%arg0: i32) -> (i32, i32, i32) {
    %c0_i32 = arith.constant 0 : i32
    %c0_i32_0 = arith.constant 0 : i32
    %c0_i32_1 = arith.constant 0 : i32
    return %arg0, %c0_i32, %c0_i32_0 : i32, i32, i32
  }
  func.func @transform_5(%arg0: i32) -> (i32, i32, i32) {
    %c0_i32 = arith.constant 0 : i32
    %c0_i32_0 = arith.constant 0 : i32
    %c0_i32_1 = arith.constant 0 : i32
    return %arg0, %c0_i32, %c0_i32_0 : i32, i32, i32
  }
}

module attributes {stable_mosaic.version = 11 : i64} {
  func.func @_ffn_add_decomp_kernel(%arg0: i32, %arg1: memref<1x16x32xf32, #tpu.memory_space<vmem>>, %arg2: memref<32x64xf32, #tpu.memory_space<vmem>>, %arg3: memref<64x32xf32, #tpu.memory_space<vmem>>, %arg4: memref<16x16xf32, #tpu.memory_space<vmem>>, %arg5: memref<1x16x32xf32, #tpu.memory_space<vmem>>, %arg6: memref<1x16x32xf32, #tpu.memory_space<vmem>>) attributes {dimension_semantics = [#tpu.dimension_semantics<parallel>], iteration_bounds = array<i64: 2>, scalar_prefetch = 0 : i64, scratch_operands = 0 : i64, tpu.core_type = #tpu.core_type<tc>, window_params = [{transform_indices = @transform_0, window_bounds = array<i64: 1, 16, 32>}, {pipeline_mode = #tpu.pipeline_mode<synchronous>, transform_indices = @transform_1, window_bounds = array<i64: 32, 64>}, {pipeline_mode = #tpu.pipeline_mode<synchronous>, transform_indices = @transform_2, window_bounds = array<i64: 64, 32>}, {pipeline_mode = #tpu.pipeline_mode<synchronous>, transform_indices = @transform_3, window_bounds = array<i64: 16, 16>}, {transform_indices = @transform_4, window_bounds = array<i64: 1, 16, 32>}, {transform_indices = @transform_5, window_bounds = array<i64: 1, 16, 32>}]} {
    %c0 = arith.constant 0 : index
    %c0_0 = arith.constant 0 : index
    %c0_1 = arith.constant 0 : index
    %0 = vector.load %arg1[%c0, %c0_0, %c0_1] : memref<1x16x32xf32, #tpu.memory_space<vmem>>, vector<1x16x32xf32>
    %1 = vector.shape_cast %0 : vector<1x16x32xf32> to vector<16x32xf32>
    %c0_2 = arith.constant 0 : index
    %c0_3 = arith.constant 0 : index
    %2 = vector.load %arg2[%c0_2, %c0_3] : memref<32x64xf32, #tpu.memory_space<vmem>>, vector<32x64xf32>
    %cst = arith.constant dense<0.000000e+00> : vector<16x64xf32>
    %3 = tpu.matmul %1, %2, %cst {dimension_numbers = #tpu.dot_dimension_numbers<[1], [0], [0], [1], [0, 0, 1, 1], [], []>} : vector<16x32xf32>, vector<32x64xf32>, vector<16x64xf32> -> vector<16x64xf32>
    %cst_4 = arith.constant 0.000000e+00 : f32
    %4 = vector.broadcast %cst_4 : f32 to vector<16x64xf32>
    %5 = arith.maximumf %3, %4 : vector<16x64xf32>
    %c0_5 = arith.constant 0 : index
    %c0_6 = arith.constant 0 : index
    %6 = vector.load %arg3[%c0_5, %c0_6] : memref<64x32xf32, #tpu.memory_space<vmem>>, vector<64x32xf32>
    %cst_7 = arith.constant dense<0.000000e+00> : vector<16x32xf32>
    %7 = tpu.matmul %5, %6, %cst_7 {dimension_numbers = #tpu.dot_dimension_numbers<[1], [0], [0], [1], [0, 0, 1, 1], [], []>} : vector<16x64xf32>, vector<64x32xf32>, vector<16x32xf32> -> vector<16x32xf32>
    %8 = arith.addf %1, %7 : vector<16x32xf32>
    %c0_8 = arith.constant 0 : index
    %c0_9 = arith.constant 0 : index
    %9 = vector.load %arg4[%c0_8, %c0_9] : memref<16x16xf32, #tpu.memory_space<vmem>>, vector<16x16xf32>
    %cst_10 = arith.constant dense<0.000000e+00> : vector<16x32xf32>
    %10 = tpu.matmul %9, %8, %cst_10 {dimension_numbers = #tpu.dot_dimension_numbers<[1], [0], [0], [1], [0, 0, 1, 1], [], []>} : vector<16x16xf32>, vector<16x32xf32>, vector<16x32xf32> -> vector<16x32xf32>
    %c0_11 = arith.constant 0 : index
    %c0_12 = arith.constant 0 : index
    %c0_13 = arith.constant 0 : index
    %11 = vector.load %arg6[%c0_11, %c0_12, %c0_13] : memref<1x16x32xf32, #tpu.memory_space<vmem>>, vector<1x16x32xf32>
    %12 = vector.shape_cast %11 : vector<1x16x32xf32> to vector<16x32xf32>
    %13 = vector.shape_cast %10 : vector<16x32xf32> to vector<1x16x32xf32>
    tpu.vector_store %arg6[%c0_11, %c0_12, %c0_13], %13 {strides = array<i32>} : memref<1x16x32xf32, #tpu.memory_space<vmem>>, vector<1x16x32xf32>,
    %14 = arith.subf %8, %10 : vector<16x32xf32>
    %c0_14 = arith.constant 0 : index
    %c0_15 = arith.constant 0 : index
    %c0_16 = arith.constant 0 : index
    %15 = vector.load %arg5[%c0_14, %c0_15, %c0_16] : memref<1x16x32xf32, #tpu.memory_space<vmem>>, vector<1x16x32xf32>
    %16 = vector.shape_cast %15 : vector<1x16x32xf32> to vector<16x32xf32>
    %17 = vector.shape_cast %14 : vector<16x32xf32> to vector<1x16x32xf32>
    tpu.vector_store %arg5[%c0_14, %c0_15, %c0_16], %17 {strides = array<i32>} : memref<1x16x32xf32, #tpu.memory_space<vmem>>, vector<1x16x32xf32>,
    return
  }
  func.func @transform_0(%arg0: i32) -> (i32, i32, i32) {
    %c0_i32 = arith.constant 0 : i32
    %c0_i32_0 = arith.constant 0 : i32
    %c0_i32_1 = arith.constant 0 : i32
    return %arg0, %c0_i32, %c0_i32_0 : i32, i32, i32
  }
  func.func @transform_1(%arg0: i32) -> (i32, i32) {
    %c0_i32 = arith.constant 0 : i32
    %c0_i32_0 = arith.constant 0 : i32
    %c0_i32_1 = arith.constant 0 : i32
    return %c0_i32, %c0_i32_0 : i32, i32
  }
  func.func @transform_2(%arg0: i32) -> (i32, i32) {
    %c0_i32 = arith.constant 0 : i32
    %c0_i32_0 = arith.constant 0 : i32
    %c0_i32_1 = arith.constant 0 : i32
    return %c0_i32, %c0_i32_0 : i32, i32
  }
  func.func @transform_3(%arg0: i32) -> (i32, i32) {
    %c0_i32 = arith.constant 0 : i32
    %c0_i32_0 = arith.constant 0 : i32
    %c0_i32_1 = arith.constant 0 : i32
    return %c0_i32, %c0_i32_0 : i32, i32
  }
  func.func @transform_4(%arg0: i32) -> (i32, i32, i32) {
    %c0_i32 = arith.constant 0 : i32
    %c0_i32_0 = arith.constant 0 : i32
    %c0_i32_1 = arith.constant 0 : i32
    return %arg0, %c0_i32, %c0_i32_0 : i32, i32, i32
  }
  func.func @transform_5(%arg0: i32) -> (i32, i32, i32) {
    %c0_i32 = arith.constant 0 : i32
    %c0_i32_0 = arith.constant 0 : i32
    %c0_i32_1 = arith.constant 0 : i32
    return %arg0, %c0_i32, %c0_i32_0 : i32, i32, i32
  }
}

module attributes {stable_mosaic.version = 11 : i64} {
  func.func @_trend_accum_kernel(%arg0: i32, %arg1: memref<1x16x32xf32, #tpu.memory_space<vmem>>, %arg2: memref<1x16x32xf32, #tpu.memory_space<vmem>>, %arg3: memref<1x16x32xf32, #tpu.memory_space<vmem>>, %arg4: memref<1x16x8xf32, #tpu.memory_space<vmem>>, %arg5: memref<32x8xf32, #tpu.memory_space<vmem>>, %arg6: memref<32x8xf32, #tpu.memory_space<vmem>>, %arg7: memref<32x8xf32, #tpu.memory_space<vmem>>, %arg8: memref<1x16x8xf32, #tpu.memory_space<vmem>>) attributes {dimension_semantics = [#tpu.dimension_semantics<parallel>], iteration_bounds = array<i64: 2>, scalar_prefetch = 0 : i64, scratch_operands = 0 : i64, tpu.core_type = #tpu.core_type<tc>, window_params = [{transform_indices = @transform_0, window_bounds = array<i64: 1, 16, 32>}, {transform_indices = @transform_1, window_bounds = array<i64: 1, 16, 32>}, {transform_indices = @transform_2, window_bounds = array<i64: 1, 16, 32>}, {transform_indices = @transform_3, window_bounds = array<i64: 1, 16, 8>}, {pipeline_mode = #tpu.pipeline_mode<synchronous>, transform_indices = @transform_4, window_bounds = array<i64: 32, 8>}, {pipeline_mode = #tpu.pipeline_mode<synchronous>, transform_indices = @transform_5, window_bounds = array<i64: 32, 8>}, {pipeline_mode = #tpu.pipeline_mode<synchronous>, transform_indices = @transform_6, window_bounds = array<i64: 32, 8>}, {transform_indices = @transform_7, window_bounds = array<i64: 1, 16, 8>}]} {
    %c0 = arith.constant 0 : index
    %c0_0 = arith.constant 0 : index
    %c0_1 = arith.constant 0 : index
    %0 = vector.load %arg1[%c0, %c0_0, %c0_1] : memref<1x16x32xf32, #tpu.memory_space<vmem>>, vector<1x16x32xf32>
    %1 = vector.shape_cast %0 : vector<1x16x32xf32> to vector<16x32xf32>
    %c0_2 = arith.constant 0 : index
    %c0_3 = arith.constant 0 : index
    %c0_4 = arith.constant 0 : index
    %2 = vector.load %arg2[%c0_2, %c0_3, %c0_4] : memref<1x16x32xf32, #tpu.memory_space<vmem>>, vector<1x16x32xf32>
    %3 = vector.shape_cast %2 : vector<1x16x32xf32> to vector<16x32xf32>
    %4 = arith.addf %1, %3 : vector<16x32xf32>
    %c0_5 = arith.constant 0 : index
    %c0_6 = arith.constant 0 : index
    %c0_7 = arith.constant 0 : index
    %5 = vector.load %arg3[%c0_5, %c0_6, %c0_7] : memref<1x16x32xf32, #tpu.memory_space<vmem>>, vector<1x16x32xf32>
    %6 = vector.shape_cast %5 : vector<1x16x32xf32> to vector<16x32xf32>
    %7 = arith.addf %4, %6 : vector<16x32xf32>
    %c1_i32 = arith.constant 1 : i32
    %8 = tpu.dynamic_rotate %7 by %c1_i32 dim 0 : vector<16x32xf32>, i32 -> vector<16x32xf32>
    %c15_i32 = arith.constant 15 : i32
    %9 = tpu.dynamic_rotate %7 by %c15_i32 dim 0 : vector<16x32xf32>, i32 -> vector<16x32xf32>
    %c0_8 = arith.constant 0 : index
    %c0_9 = arith.constant 0 : index
    %c0_10 = arith.constant 0 : index
    %10 = vector.load %arg4[%c0_8, %c0_9, %c0_10] : memref<1x16x8xf32, #tpu.memory_space<vmem>>, vector<1x16x8xf32>
    %11 = vector.shape_cast %10 : vector<1x16x8xf32> to vector<16x8xf32>
    %c0_11 = arith.constant 0 : index
    %c0_12 = arith.constant 0 : index
    %12 = vector.load %arg5[%c0_11, %c0_12] : memref<32x8xf32, #tpu.memory_space<vmem>>, vector<32x8xf32>
    %cst = arith.constant dense<0.000000e+00> : vector<16x8xf32>
    %13 = tpu.matmul %8, %12, %cst {dimension_numbers = #tpu.dot_dimension_numbers<[1], [0], [0], [1], [0, 0, 1, 1], [], []>} : vector<16x32xf32>, vector<32x8xf32>, vector<16x8xf32> -> vector<16x8xf32>
    %14 = arith.addf %11, %13 : vector<16x8xf32>
    %c0_13 = arith.constant 0 : index
    %c0_14 = arith.constant 0 : index
    %15 = vector.load %arg6[%c0_13, %c0_14] : memref<32x8xf32, #tpu.memory_space<vmem>>, vector<32x8xf32>
    %cst_15 = arith.constant dense<0.000000e+00> : vector<16x8xf32>
    %16 = tpu.matmul %7, %15, %cst_15 {dimension_numbers = #tpu.dot_dimension_numbers<[1], [0], [0], [1], [0, 0, 1, 1], [], []>} : vector<16x32xf32>, vector<32x8xf32>, vector<16x8xf32> -> vector<16x8xf32>
    %17 = arith.addf %14, %16 : vector<16x8xf32>
    %c0_16 = arith.constant 0 : index
    %c0_17 = arith.constant 0 : index
    %18 = vector.load %arg7[%c0_16, %c0_17] : memref<32x8xf32, #tpu.memory_space<vmem>>, vector<32x8xf32>
    %cst_18 = arith.constant dense<0.000000e+00> : vector<16x8xf32>
    %19 = tpu.matmul %9, %18, %cst_18 {dimension_numbers = #tpu.dot_dimension_numbers<[1], [0], [0], [1], [0, 0, 1, 1], [], []>} : vector<16x32xf32>, vector<32x8xf32>, vector<16x8xf32> -> vector<16x8xf32>
    %20 = arith.addf %17, %19 : vector<16x8xf32>
    %c0_19 = arith.constant 0 : index
    %c0_20 = arith.constant 0 : index
    %c0_21 = arith.constant 0 : index
    %21 = vector.load %arg8[%c0_19, %c0_20, %c0_21] : memref<1x16x8xf32, #tpu.memory_space<vmem>>, vector<1x16x8xf32>
    %22 = vector.shape_cast %21 : vector<1x16x8xf32> to vector<16x8xf32>
    %23 = vector.shape_cast %20 : vector<16x8xf32> to vector<1x16x8xf32>
    tpu.vector_store %arg8[%c0_19, %c0_20, %c0_21], %23 {strides = array<i32>} : memref<1x16x8xf32, #tpu.memory_space<vmem>>, vector<1x16x8xf32>,
    return
  }
  func.func @transform_0(%arg0: i32) -> (i32, i32, i32) {
    %c0_i32 = arith.constant 0 : i32
    %c0_i32_0 = arith.constant 0 : i32
    %c0_i32_1 = arith.constant 0 : i32
    return %arg0, %c0_i32, %c0_i32_0 : i32, i32, i32
  }
  func.func @transform_1(%arg0: i32) -> (i32, i32, i32) {
    %c0_i32 = arith.constant 0 : i32
    %c0_i32_0 = arith.constant 0 : i32
    %c0_i32_1 = arith.constant 0 : i32
    return %arg0, %c0_i32, %c0_i32_0 : i32, i32, i32
  }
  func.func @transform_2(%arg0: i32) -> (i32, i32, i32) {
    %c0_i32 = arith.constant 0 : i32
    %c0_i32_0 = arith.constant 0 : i32
    %c0_i32_1 = arith.constant 0 : i32
    return %arg0, %c0_i32, %c0_i32_0 : i32, i32, i32
  }
  func.func @transform_3(%arg0: i32) -> (i32, i32, i32) {
    %c0_i32 = arith.constant 0 : i32
    %c0_i32_0 = arith.constant 0 : i32
    %c0_i32_1 = arith.constant 0 : i32
    return %arg0, %c0_i32, %c0_i32_0 : i32, i32, i32
  }
  func.func @transform_4(%arg0: i32) -> (i32, i32) {
    %c0_i32 = arith.constant 0 : i32
    %c0_i32_0 = arith.constant 0 : i32
    %c0_i32_1 = arith.constant 0 : i32
    return %c0_i32, %c0_i32_0 : i32, i32
  }
  func.func @transform_5(%arg0: i32) -> (i32, i32) {
    %c0_i32 = arith.constant 0 : i32
    %c0_i32_0 = arith.constant 0 : i32
    %c0_i32_1 = arith.constant 0 : i32
    return %c0_i32, %c0_i32_0 : i32, i32
  }
  func.func @transform_6(%arg0: i32) -> (i32, i32) {
    %c0_i32 = arith.constant 0 : i32
    %c0_i32_0 = arith.constant 0 : i32
    %c0_i32_1 = arith.constant 0 : i32
    return %c0_i32, %c0_i32_0 : i32, i32
  }
  func.func @transform_7(%arg0: i32) -> (i32, i32, i32) {
    %c0_i32 = arith.constant 0 : i32
    %c0_i32_0 = arith.constant 0 : i32
    %c0_i32_1 = arith.constant 0 : i32
    return %arg0, %c0_i32, %c0_i32_0 : i32, i32, i32
  }
}

module attributes {stable_mosaic.version = 11 : i64} {
  func.func @_norm_proj_kernel(%arg0: i32, %arg1: memref<1x16x32xf32, #tpu.memory_space<vmem>>, %arg2: memref<1x32xf32, #tpu.memory_space<vmem>>, %arg3: memref<1x32xf32, #tpu.memory_space<vmem>>, %arg4: memref<32x8xf32, #tpu.memory_space<vmem>>, %arg5: memref<1x8xf32, #tpu.memory_space<vmem>>, %arg6: memref<1x16x8xf32, #tpu.memory_space<vmem>>) attributes {dimension_semantics = [#tpu.dimension_semantics<parallel>], iteration_bounds = array<i64: 2>, scalar_prefetch = 0 : i64, scratch_operands = 0 : i64, tpu.core_type = #tpu.core_type<tc>, window_params = [{transform_indices = @transform_0, window_bounds = array<i64: 1, 16, 32>}, {pipeline_mode = #tpu.pipeline_mode<synchronous>, transform_indices = @transform_1, window_bounds = array<i64: 1, 32>}, {pipeline_mode = #tpu.pipeline_mode<synchronous>, transform_indices = @transform_2, window_bounds = array<i64: 1, 32>}, {pipeline_mode = #tpu.pipeline_mode<synchronous>, transform_indices = @transform_3, window_bounds = array<i64: 32, 8>}, {pipeline_mode = #tpu.pipeline_mode<synchronous>, transform_indices = @transform_4, window_bounds = array<i64: 1, 8>}, {transform_indices = @transform_5, window_bounds = array<i64: 1, 16, 8>}]} {
    %c0 = arith.constant 0 : index
    %c0_0 = arith.constant 0 : index
    %c0_1 = arith.constant 0 : index
    %0 = vector.load %arg1[%c0, %c0_0, %c0_1] : memref<1x16x32xf32, #tpu.memory_space<vmem>>, vector<1x16x32xf32>
    %1 = vector.shape_cast %0 : vector<1x16x32xf32> to vector<16x32xf32>
    %cst = arith.constant dense<0.000000e+00> : vector<16xf32>
    %2 = vector.multi_reduction <add>, %1, %cst [1] : vector<16x32xf32> to vector<16xf32>
    %3 = vector.shape_cast %2 : vector<16xf32> to vector<16x1xf32>
    %cst_2 = arith.constant 3.200000e+01 : f32
    %4 = vector.broadcast %cst_2 : f32 to vector<16x1xf32>
    %5 = arith.divf %3, %4 : vector<16x1xf32>
    %6 = vector.broadcast %5 : vector<16x1xf32> to vector<16x32xf32>
    %7 = arith.subf %1, %6 : vector<16x32xf32>
    %8 = arith.mulf %7, %7 : vector<16x32xf32>
    %cst_3 = arith.constant dense<0.000000e+00> : vector<16xf32>
    %9 = vector.multi_reduction <add>, %8, %cst_3 [1] : vector<16x32xf32> to vector<16xf32>
    %10 = vector.shape_cast %9 : vector<16xf32> to vector<16x1xf32>
    %cst_4 = arith.constant 3.200000e+01 : f32
    %11 = vector.broadcast %cst_4 : f32 to vector<16x1xf32>
    %12 = arith.divf %10, %11 : vector<16x1xf32>
    %13 = vector.broadcast %5 : vector<16x1xf32> to vector<16x32xf32>
    %14 = arith.subf %1, %13 : vector<16x32xf32>
    %cst_5 = arith.constant 9.99999974E-6 : f32
    %15 = vector.broadcast %cst_5 : f32 to vector<16x1xf32>
    %16 = arith.addf %12, %15 : vector<16x1xf32>
    %17 = math.rsqrt %16 : vector<16x1xf32>
    %18 = vector.broadcast %17 : vector<16x1xf32> to vector<16x32xf32>
    %19 = arith.mulf %14, %18 : vector<16x32xf32>
    %c0_6 = arith.constant 0 : index
    %c0_7 = arith.constant 0 : index
    %20 = vector.load %arg2[%c0_6, %c0_7] : memref<1x32xf32, #tpu.memory_space<vmem>>, vector<1x32xf32>
    %21 = vector.broadcast %20 : vector<1x32xf32> to vector<16x32xf32>
    %22 = arith.mulf %19, %21 : vector<16x32xf32>
    %c0_8 = arith.constant 0 : index
    %c0_9 = arith.constant 0 : index
    %23 = vector.load %arg3[%c0_8, %c0_9] : memref<1x32xf32, #tpu.memory_space<vmem>>, vector<1x32xf32>
    %24 = vector.broadcast %23 : vector<1x32xf32> to vector<16x32xf32>
    %25 = arith.addf %22, %24 : vector<16x32xf32>
    %cst_10 = arith.constant dense<0.000000e+00> : vector<32xf32>
    %26 = vector.multi_reduction <add>, %25, %cst_10 [0] : vector<16x32xf32> to vector<32xf32>
    %27 = vector.shape_cast %26 : vector<32xf32> to vector<1x32xf32>
    %cst_11 = arith.constant 1.600000e+01 : f32
    %28 = vector.broadcast %cst_11 : f32 to vector<1x32xf32>
    %29 = arith.divf %27, %28 : vector<1x32xf32>
    %30 = vector.broadcast %29 : vector<1x32xf32> to vector<16x32xf32>
    %31 = arith.subf %25, %30 : vector<16x32xf32>
    %c0_12 = arith.constant 0 : index
    %c0_13 = arith.constant 0 : index
    %32 = vector.load %arg4[%c0_12, %c0_13] : memref<32x8xf32, #tpu.memory_space<vmem>>, vector<32x8xf32>
    %cst_14 = arith.constant dense<0.000000e+00> : vector<16x8xf32>
    %33 = tpu.matmul %31, %32, %cst_14 {dimension_numbers = #tpu.dot_dimension_numbers<[1], [0], [0], [1], [0, 0, 1, 1], [], []>} : vector<16x32xf32>, vector<32x8xf32>, vector<16x8xf32> -> vector<16x8xf32>
    %c0_15 = arith.constant 0 : index
    %c0_16 = arith.constant 0 : index
    %34 = vector.load %arg5[%c0_15, %c0_16] : memref<1x8xf32, #tpu.memory_space<vmem>>, vector<1x8xf32>
    %35 = vector.broadcast %34 : vector<1x8xf32> to vector<16x8xf32>
    %36 = arith.addf %33, %35 : vector<16x8xf32>
    %c0_17 = arith.constant 0 : index
    %c0_18 = arith.constant 0 : index
    %c0_19 = arith.constant 0 : index
    %37 = vector.load %arg6[%c0_17, %c0_18, %c0_19] : memref<1x16x8xf32, #tpu.memory_space<vmem>>, vector<1x16x8xf32>
    %38 = vector.shape_cast %37 : vector<1x16x8xf32> to vector<16x8xf32>
    %39 = vector.shape_cast %36 : vector<16x8xf32> to vector<1x16x8xf32>
    tpu.vector_store %arg6[%c0_17, %c0_18, %c0_19], %39 {strides = array<i32>} : memref<1x16x8xf32, #tpu.memory_space<vmem>>, vector<1x16x8xf32>,
    return
  }
  func.func @transform_0(%arg0: i32) -> (i32, i32, i32) {
    %c0_i32 = arith.constant 0 : i32
    %c0_i32_0 = arith.constant 0 : i32
    %c0_i32_1 = arith.constant 0 : i32
    return %arg0, %c0_i32, %c0_i32_0 : i32, i32, i32
  }
  func.func @transform_1(%arg0: i32) -> (i32, i32) {
    %c0_i32 = arith.constant 0 : i32
    %c0_i32_0 = arith.constant 0 : i32
    %c0_i32_1 = arith.constant 0 : i32
    return %c0_i32, %c0_i32_0 : i32, i32
  }
  func.func @transform_2(%arg0: i32) -> (i32, i32) {
    %c0_i32 = arith.constant 0 : i32
    %c0_i32_0 = arith.constant 0 : i32
    %c0_i32_1 = arith.constant 0 : i32
    return %c0_i32, %c0_i32_0 : i32, i32
  }
  func.func @transform_3(%arg0: i32) -> (i32, i32) {
    %c0_i32 = arith.constant 0 : i32
    %c0_i32_0 = arith.constant 0 : i32
    %c0_i32_1 = arith.constant 0 : i32
    return %c0_i32, %c0_i32_0 : i32, i32
  }
  func.func @transform_4(%arg0: i32) -> (i32, i32) {
    %c0_i32 = arith.constant 0 : i32
    %c0_i32_0 = arith.constant 0 : i32
    %c0_i32_1 = arith.constant 0 : i32
    return %c0_i32, %c0_i32_0 : i32, i32
  }
  func.func @transform_5(%arg0: i32) -> (i32, i32, i32) {
    %c0_i32 = arith.constant 0 : i32
    %c0_i32_0 = arith.constant 0 : i32
    %c0_i32_1 = arith.constant 0 : i32
    return %arg0, %c0_i32, %c0_i32_0 : i32, i32, i32
  }
}

</mosaic_0001>

<llo_original>
// kernel: reverse.8
$region0: #{reverse.8}
  #allocation0 [shape = 's32[1]{0}', space=sflag, size = 0x4, scoped, tag = 'scoped memory for reverse.8']
  %s0 = inlined_call_operand.vmem [shape: f32[2,8,4,7], index: 0, kind: input, shape index: {}]
  %s1 = inlined_call_operand.vmem [shape: f32[2,8,4,7], index: 1, kind: output, shape index: {}]
  %s2 = scalar_lea.vmem %s0, 12
  %v3 = vld [vmem:[%s2] sm:$0x3]
  %4 = vst [vmem:[%s1] sm:$0x3] %v3
  %s5 = scalar_lea.vmem %s0, 26
  %v6 = vld [vmem:[%s5] sm:$0x3]
  %s7 = scalar_lea.vmem %s1, 14
  %8 = vst [vmem:[%s7] sm:$0x3] %v6
  %s9 = scalar_lea.vmem %s0, 40
  %v10 = vld [vmem:[%s9] sm:$0x3]
  %s11 = scalar_lea.vmem %s1, 28
  %12 = vst [vmem:[%s11] sm:$0x3] %v10
  %s13 = scalar_lea.vmem %s0, 54
  %v14 = vld [vmem:[%s13] sm:$0x3]
  %s15 = scalar_lea.vmem %s1, 42
  %16 = vst [vmem:[%s15] sm:$0x3] %v14
  %s17 = scalar_lea.vmem %s0, 68
  %v18 = vld [vmem:[%s17] sm:$0x3]
  %s19 = scalar_lea.vmem %s1, 56
  %20 = vst [vmem:[%s19] sm:$0x3] %v18
  %s21 = scalar_lea.vmem %s0, 82
  %v22 = vld [vmem:[%s21] sm:$0x3]
  %s23 = scalar_lea.vmem %s1, 70
  %24 = vst [vmem:[%s23] sm:$0x3] %v22
  %s25 = scalar_lea.vmem %s0, 96
  %v26 = vld [vmem:[%s25] sm:$0x3]
  %s27 = scalar_lea.vmem %s1, 84
  %28 = vst [vmem:[%s27] sm:$0x3] %v26
  %s29 = scalar_lea.vmem %s0, 110
  %v30 = vld [vmem:[%s29] sm:$0x3]
  %s31 = scalar_lea.vmem %s1, 98
  %32 = vst [vmem:[%s31] sm:$0x3] %v30
  %s33 = scalar_lea.vmem %s0, 10
  %v34 = vld [vmem:[%s33] sm:$0x3]
  %s35 = scalar_lea.vmem %s1, 2
  %36 = vst [vmem:[%s35] sm:$0x3] %v34
  %s37 = scalar_lea.vmem %s0, 24
  %v38 = vld [vmem:[%s37] sm:$0x3]
  %s39 = scalar_lea.vmem %s1, 16
  %40 = vst [vmem:[%s39] sm:$0x3] %v38
  %s41 = scalar_lea.vmem %s0, 38
  %v42 = vld [vmem:[%s41] sm:$0x3]
  %s43 = scalar_lea.vmem %s1, 30
  %44 = vst [vmem:[%s43] sm:$0x3] %v42
  %s45 = scalar_lea.vmem %s0, 52
  %v46 = vld [vmem:[%s45] sm:$0x3]
  %s47 = scalar_lea.vmem %s1, 44
  %48 = vst [vmem:[%s47] sm:$0x3] %v46
  %s49 = scalar_lea.vmem %s0, 66
  %v50 = vld [vmem:[%s49] sm:$0x3]
  %s51 = scalar_lea.vmem %s1, 58
  %52 = vst [vmem:[%s51] sm:$0x3] %v50
  %s53 = scalar_lea.vmem %s0, 80
  %v54 = vld [vmem:[%s53] sm:$0x3]
  %s55 = scalar_lea.vmem %s1, 72
  %56 = vst [vmem:[%s55] sm:$0x3] %v54
  %s57 = scalar_lea.vmem %s0, 94
  %v58 = vld [vmem:[%s57] sm:$0x3]
  %s59 = scalar_lea.vmem %s1, 86
  %60 = vst [vmem:[%s59] sm:$0x3] %v58
  %s61 = scalar_lea.vmem %s0, 108
  %v62 = vld [vmem:[%s61] sm:$0x3]
  %s63 = scalar_lea.vmem %s1, 100
  %64 = vst [vmem:[%s63] sm:$0x3] %v62
  %s65 = scalar_lea.vmem %s0, 8
  %v66 = vld [vmem:[%s65] sm:$0x3]
  %s67 = scalar_lea.vmem %s1, 4
  %68 = vst [vmem:[%s67] sm:$0x3] %v66
  %s69 = scalar_lea.vmem %s0, 22
  %v70 = vld [vmem:[%s69] sm:$0x3]
  %s71 = scalar_lea.vmem %s1, 18
  %72 = vst [vmem:[%s71] sm:$0x3] %v70
  %s73 = scalar_lea.vmem %s0, 36
  %v74 = vld [vmem:[%s73] sm:$0x3]
  %s75 = scalar_lea.vmem %s1, 32
  %76 = vst [vmem:[%s75] sm:$0x3] %v74
  %s77 = scalar_lea.vmem %s0, 50
  %v78 = vld [vmem:[%s77] sm:$0x3]
  %s79 = scalar_lea.vmem %s1, 46
  %80 = vst [vmem:[%s79] sm:$0x3] %v78
  %s81 = scalar_lea.vmem %s0, 64
  %v82 = vld [vmem:[%s81] sm:$0x3]
  %s83 = scalar_lea.vmem %s1, 60
  %84 = vst [vmem:[%s83] sm:$0x3] %v82
  %s85 = scalar_lea.vmem %s0, 78
  %v86 = vld [vmem:[%s85] sm:$0x3]
  %s87 = scalar_lea.vmem %s1, 74
  %88 = vst [vmem:[%s87] sm:$0x3] %v86
  %s89 = scalar_lea.vmem %s0, 92
  %v90 = vld [vmem:[%s89] sm:$0x3]
  %s91 = scalar_lea.vmem %s1, 88
  %92 = vst [vmem:[%s91] sm:$0x3] %v90
  %s93 = scalar_lea.vmem %s0, 106
  %v94 = vld [vmem:[%s93] sm:$0x3]
  %s95 = scalar_lea.vmem %s1, 102
  %96 = vst [vmem:[%s95] sm:$0x3] %v94
  %s97 = scalar_lea.vmem %s0, 6
  %v98 = vld [vmem:[%s97] sm:$0x3]
  %s99 = scalar_lea.vmem %s1, 6
  %100 = vst [vmem:[%s99] sm:$0x3] %v98
  %s101 = scalar_lea.vmem %s0, 20
  %v102 = vld [vmem:[%s101] sm:$0x3]
  %s103 = scalar_lea.vmem %s1, 20
  %104 = vst [vmem:[%s103] sm:$0x3] %v102
  %s105 = scalar_lea.vmem %s0, 34
  %v106 = vld [vmem:[%s105] sm:$0x3]
  %s107 = scalar_lea.vmem %s1, 34
  %108 = vst [vmem:[%s107] sm:$0x3] %v106
  %s109 = scalar_lea.vmem %s0, 48
  %v110 = vld [vmem:[%s109] sm:$0x3]
  %s111 = scalar_lea.vmem %s1, 48
  %112 = vst [vmem:[%s111] sm:$0x3] %v110
  %s113 = scalar_lea.vmem %s0, 62
  %v114 = vld [vmem:[%s113] sm:$0x3]
  %s115 = scalar_lea.vmem %s1, 62
  %116 = vst [vmem:[%s115] sm:$0x3] %v114
  %s117 = scalar_lea.vmem %s0, 76
  %v118 = vld [vmem:[%s117] sm:$0x3]
  %s119 = scalar_lea.vmem %s1, 76
  %120 = vst [vmem:[%s119] sm:$0x3] %v118
  %s121 = scalar_lea.vmem %s0, 90
  %v122 = vld [vmem:[%s121] sm:$0x3]
  %s123 = scalar_lea.vmem %s1, 90
  %124 = vst [vmem:[%s123] sm:$0x3] %v122
  %s125 = scalar_lea.vmem %s0, 104
  %v126 = vld [vmem:[%s125] sm:$0x3]
  %s127 = scalar_lea.vmem %s1, 104
  %128 = vst [vmem:[%s127] sm:$0x3] %v126
  %s129 = scalar_lea.vmem %s0, 4
  %v130 = vld [vmem:[%s129] sm:$0x3]
  %s131 = scalar_lea.vmem %s1, 8
  %132 = vst [vmem:[%s131] sm:$0x3] %v130
  %s133 = scalar_lea.vmem %s0, 18
  %v134 = vld [vmem:[%s133] sm:$0x3]
  %s135 = scalar_lea.vmem %s1, 22
  %136 = vst [vmem:[%s135] sm:$0x3] %v134
  %s137 = scalar_lea.vmem %s0, 32
  %v138 = vld [vmem:[%s137] sm:$0x3]
  %s139 = scalar_lea.vmem %s1, 36
  %140 = vst [vmem:[%s139] sm:$0x3] %v138
  %s141 = scalar_lea.vmem %s0, 46
  %v142 = vld [vmem:[%s141] sm:$0x3]
  %s143 = scalar_lea.vmem %s1, 50
  %144 = vst [vmem:[%s143] sm:$0x3] %v142
  %s145 = scalar_lea.vmem %s0, 60
  %v146 = vld [vmem:[%s145] sm:$0x3]
  %s147 = scalar_lea.vmem %s1, 64
  %148 = vst [vmem:[%s147] sm:$0x3] %v146
  %s149 = scalar_lea.vmem %s0, 74
  %v150 = vld [vmem:[%s149] sm:$0x3]
  %s151 = scalar_lea.vmem %s1, 78
  %152 = vst [vmem:[%s151] sm:$0x3] %v150
  %s153 = scalar_lea.vmem %s0, 88
  %v154 = vld [vmem:[%s153] sm:$0x3]
  %s155 = scalar_lea.vmem %s1, 92
  %156 = vst [vmem:[%s155] sm:$0x3] %v154
  %s157 = scalar_lea.vmem %s0, 102
  %v158 = vld [vmem:[%s157] sm:$0x3]
  %s159 = scalar_lea.vmem %s1, 106
  %160 = vst [vmem:[%s159] sm:$0x3] %v158
  %s161 = scalar_lea.vmem %s0, 2
  %v162 = vld [vmem:[%s161] sm:$0x3]
  %s163 = scalar_lea.vmem %s1, 10
  %164 = vst [vmem:[%s163] sm:$0x3] %v162
  %s165 = scalar_lea.vmem %s0, 16
  %v166 = vld [vmem:[%s165] sm:$0x3]
  %s167 = scalar_lea.vmem %s1, 24
  %168 = vst [vmem:[%s167] sm:$0x3] %v166
  %s169 = scalar_lea.vmem %s0, 30
  %v170 = vld [vmem:[%s169] sm:$0x3]
  %s171 = scalar_lea.vmem %s1, 38
  %172 = vst [vmem:[%s171] sm:$0x3] %v170
  %s173 = scalar_lea.vmem %s0, 44
  %v174 = vld [vmem:[%s173] sm:$0x3]
  %s175 = scalar_lea.vmem %s1, 52
  %176 = vst [vmem:[%s175] sm:$0x3] %v174
  %s177 = scalar_lea.vmem %s0, 58
  %v178 = vld [vmem:[%s177] sm:$0x3]
  %s179 = scalar_lea.vmem %s1, 66
  %180 = vst [vmem:[%s179] sm:$0x3] %v178
  %s181 = scalar_lea.vmem %s0, 72
  %v182 = vld [vmem:[%s181] sm:$0x3]
  %s183 = scalar_lea.vmem %s1, 80
  %184 = vst [vmem:[%s183] sm:$0x3] %v182
  %s185 = scalar_lea.vmem %s0, 86
  %v186 = vld [vmem:[%s185] sm:$0x3]
  %s187 = scalar_lea.vmem %s1, 94
  %188 = vst [vmem:[%s187] sm:$0x3] %v186
  %s189 = scalar_lea.vmem %s0, 100
  %v190 = vld [vmem:[%s189] sm:$0x3]
  %s191 = scalar_lea.vmem %s1, 108
  %192 = vst [vmem:[%s191] sm:$0x3] %v190
  %v193 = vld [vmem:[%s0] sm:$0x3]
  %s194 = scalar_lea.vmem %s1, 12
  %195 = vst [vmem:[%s194] sm:$0x3] %v193
  %s196 = scalar_lea.vmem %s0, 14
  %v197 = vld [vmem:[%s196] sm:$0x3]
  %s198 = scalar_lea.vmem %s1, 26
  %199 = vst [vmem:[%s198] sm:$0x3] %v197
  %s200 = scalar_lea.vmem %s0, 28
  %v201 = vld [vmem:[%s200] sm:$0x3]
  %s202 = scalar_lea.vmem %s1, 40
  %203 = vst [vmem:[%s202] sm:$0x3] %v201
  %s204 = scalar_lea.vmem %s0, 42
  %v205 = vld [vmem:[%s204] sm:$0x3]
  %s206 = scalar_lea.vmem %s1, 54
  %207 = vst [vmem:[%s206] sm:$0x3] %v205
  %s208 = scalar_lea.vmem %s0, 56
  %v209 = vld [vmem:[%s208] sm:$0x3]
  %s210 = scalar_lea.vmem %s1, 68
  %211 = vst [vmem:[%s210] sm:$0x3] %v209
  %s212 = scalar_lea.vmem %s0, 70
  %v213 = vld [vmem:[%s212] sm:$0x3]
  %s214 = scalar_lea.vmem %s1, 82
  %215 = vst [vmem:[%s214] sm:$0x3] %v213
  %s216 = scalar_lea.vmem %s0, 84
  %v217 = vld [vmem:[%s216] sm:$0x3]
  %s218 = scalar_lea.vmem %s1, 96
  %219 = vst [vmem:[%s218] sm:$0x3] %v217
  %s220 = scalar_lea.vmem %s0, 98
  %v221 = vld [vmem:[%s220] sm:$0x3]
  %s222 = scalar_lea.vmem %s1, 110
  %223 = vst [vmem:[%s222] sm:$0x3] %v221

// kernel: _lambda_.17
$region0: #{_lambda_.17}
  #allocation0 [shape = 'u32[]', space=smem, size = 0x4, offset = 0x4, fixed_abs, tag = 'smem constant byte address 0x4 - core index']
  #allocation1 [shape = 'u32[144,128]{1,0:T(1,128)}', space=vmem, size = 0x12000, scoped, tag = 'internal scratch']
  %s0 = inlined_call_operand.vmem [shape: f32[32,32], index: 0, kind: input, shape index: {}]
  %s1 = inlined_call_operand.vmem [shape: f32[32,32], index: 1, kind: input, shape index: {}]
  %s2 = inlined_call_operand.vmem [shape: f32[32,32], index: 2, kind: output, shape index: {}]
  %s3 = sld [smem:[#allocation0]]
  $region18: #{_lambda_.17} parent=0
    _
  %s5 = ssub.s32 1, %s3
  %s6 = scalar_select 0, %s5, %s3
  // Predicated region
  $region2: #{_lambda_.17} parent=0 // pred_check
    _
  $region3: #{_lambda_.17} parent=0 // pred_check_branch
    %8 = sbr.rel (0) target = $region5
  $region4: #{_lambda_.17} parent=0 // pred_region
    _
  $region5: #{_lambda_.17} parent=0 // pred_fallthru
    _
  // Predicated region
  $region6: #{_lambda_.17} parent=0 // pred_check
    _
  $region7: #{_lambda_.17} parent=0 // pred_check_branch
    %10 = sbr.rel (0) target = $region9
  $region8: #{_lambda_.17} parent=0 // pred_region
    _
  $region9: #{_lambda_.17} parent=0 // pred_fallthru
    _
  %v11 = vld [vmem:[%s0] sm:$0xff]
  %v12 = vld [vmem:[%s0 + $0x8] sm:$0xff]
  %v13 = vld [vmem:[%s0 + $0x10] sm:$0xff]
  %v14 = vld [vmem:[%s0 + $0x18] sm:$0xff]
  %v15 = vld [vmem:[%s1] sm:$0xff]
  %v16 = vld [vmem:[%s1 + $0x8] sm:$0xff]
  %v17 = vld [vmem:[%s1 + $0x10] sm:$0xff]
  %v18 = vld [vmem:[%s1 + $0x18] sm:$0xff]
  %vm19 = vcmask 261120
  %v21 = vsel %vm19, %v11, 0
  %v24 = vsel %vm19, %v12, 0
  %v27 = vsel %vm19, %v13, 0
  %v30 = vsel %vm19, %v14, 0
  %32 = vmatprep.subr.mxu0 0.0
  %33 = vmatpush1.msra.mxu0 0.0
  %34 = vmatprep.subr.mxu0 0.0
  %35 = vmatpush1.msra.mxu0 0.0
  %36 = vmatprep.subr.mxu0 0.0
  %37 = vmatpush1.msra.mxu0 0.0
  %38 = vmatprep.subr.mxu0 0.0
  %39 = vmatpush1.msra.mxu0 0.0
  %40 = vmatprep.subr.mxu0 0.0
  %41 = vmatpush1.msra.mxu0 0.0
  %42 = vmatprep.subr.mxu0 0.0
  %43 = vmatpush1.msra.mxu0 0.0
  %44 = vmatprep.subr.mxu0 0.0
  %45 = vmatpush1.msra.mxu0 0.0
  %46 = vmatprep.subr.mxu0 0.0
  %47 = vmatpush1.msra.mxu0 0.0
  %48 = vmatprep.subr.mxu0 0.0
  %49 = vmatpush1.msra.mxu0 0.0
  %50 = vmatprep.subr.mxu0 0.0
  %51 = vmatpush1.msra.mxu0 0.0
  %52 = vmatprep.subr.mxu0 0.0
  %53 = vmatpush1.msra.mxu0 0.0
  %54 = vmatprep.subr.mxu0 0.0
  %55 = vmatpush1.msra.mxu0 0.0
  %56 = vmatprep.subr.mxu0 0.0
  %57 = vmatpush1.msra.mxu0 %v18
  %58 = vmatprep.subr.mxu0 0.0
  %59 = vmatpush1.msra.mxu0 %v17
  %60 = vmatprep.subr.mxu0 0.0
  %61 = vmatpush1.msra.mxu0 %v16
  %62 = vmatprep.subr.mxu0 0.0
  %63 = vmatpush1.msra.mxu0 %v15
  %64 = vmatprep.subr.mxu0 0.0
  %65 = vmatpush2.msra.mxu0 0.0
  %66 = vmatprep.subr.mxu0 0.0
  %67 = vmatpush2.msra.mxu0 0.0
  %68 = vmatprep.subr.mxu0 0.0
  %69 = vmatpush2.msra.mxu0 0.0
  %70 = vmatprep.subr.mxu0 0.0
  %71 = vmatpush2.msra.mxu0 0.0
  %72 = vmatprep.subr.mxu0 0.0
  %73 = vmatpush2.msra.mxu0 0.0
  %74 = vmatprep.subr.mxu0 0.0
  %75 = vmatpush2.msra.mxu0 0.0
  %76 = vmatprep.subr.mxu0 0.0
  %77 = vmatpush2.msra.mxu0 0.0
  %78 = vmatprep.subr.mxu0 0.0
  %79 = vmatpush2.msra.mxu0 0.0
  %80 = vmatprep.subr.mxu0 0.0
  %81 = vmatpush2.msra.mxu0 0.0
  %82 = vmatprep.subr.mxu0 0.0
  %83 = vmatpush2.msra.mxu0 0.0
  %84 = vmatprep.subr.mxu0 0.0
  %85 = vmatpush2.msra.mxu0 0.0
  %86 = vmatprep.subr.mxu0 0.0
  %87 = vmatpush2.msra.mxu0 0.0
  %88 = vmatprep.subr.mxu0 0.0
  %89 = vmatpush2.msra.mxu0 0.0
  %90 = vmatprep.subr.mxu0 0.0
  %91 = vmatpush2.msra.mxu0 0.0
  %92 = vmatprep.subr.mxu0 0.0
  %93 = vmatpush2.msra.mxu0 0.0
  %94 = vmatprep.subr.mxu0 0.0
  %95 = vmatpush2.msra.mxu0 0.0
  %96 = vmatprep.mubr.f32.mxu0 0.0
  %97 = vmatmul.mubr.f32.gmra.mxu0 %v21
  %v98 = vpop.f32.mrf.mxu0
  %v99 = vadd.f32 0.0, %v98
  %v100 = vpop.f32.mrf.mxu0
  %101 = vmatprep.mubr.f32.mxu0 0.0
  %102 = vmatmul.mubr.f32.gmra.mxu0 %v24
  %v103 = vpop.f32.mrf.mxu0
  %v104 = vadd.f32 0.0, %v103
  %v105 = vpop.f32.mrf.mxu0
  %106 = vmatprep.mubr.f32.mxu0 0.0
  %107 = vmatmul.mubr.f32.gmra.mxu0 %v27
  %v108 = vpop.f32.mrf.mxu0
  %v109 = vadd.f32 0.0, %v108
  %v110 = vpop.f32.mrf.mxu0
  %111 = vmatprep.mubr.f32.mxu0 0.0
  %112 = vmatmul.mubr.f32.gmra.mxu0 %v30
  %v113 = vpop.f32.mrf.mxu0
  %v114 = vadd.f32 0.0, %v113
  %v115 = vpop.f32.mrf.mxu0
  %116 = vdwg.mxu0
  %117 = vst.msk [vmem:[%s2] sm:$0xff] %vm19, %v99
  %118 = vst.msk [vmem:[%s2 + $0x8] sm:$0xff] %vm19, %v104
  %119 = vst.msk [vmem:[%s2 + $0x10] sm:$0xff] %vm19, %v109
  %120 = vst.msk [vmem:[%s2 + $0x18] sm:$0xff] %vm19, %v114
  // Predicated region
  $region10: #{_lambda_.17} parent=0 // pred_check
    _
  $region11: #{_lambda_.17} parent=0 // pred_check_branch
    %122 = sbr.rel (0) target = $region13
  $region12: #{_lambda_.17} parent=0 // pred_region
    _
  $region13: #{_lambda_.17} parent=0 // pred_fallthru
    _
  // Predicated region
  $region14: #{_lambda_.17} parent=0 // pred_check
    _
  $region15: #{_lambda_.17} parent=0 // pred_check_branch
    %124 = sbr.rel (0) target = $region17
  $region16: #{_lambda_.17} parent=0 // pred_region
    _
  $region17: #{_lambda_.17} parent=0 // pred_fallthru
    _

// kernel: _lambda_.18
$region0: #{_lambda_.18}
  #allocation0 [shape = 'u32[]', space=smem, size = 0x4, offset = 0x4, fixed_abs, tag = 'smem constant byte address 0x4 - core index']
  #allocation1 [shape = 'u32[144,128]{1,0:T(1,128)}', space=vmem, size = 0x12000, scoped, tag = 'internal scratch']
  %s0 = inlined_call_operand.vmem [shape: f32[2,16,32], index: 0, kind: input, shape index: {}]
  %s1 = inlined_call_operand.vmem [shape: f32[2,16,32], index: 1, kind: input, shape index: {}]
  %s2 = inlined_call_operand.vmem [shape: f32[32,32], index: 2, kind: input, shape index: {}]
  %s3 = inlined_call_operand.vmem [shape: f32[16,16], index: 3, kind: input, shape index: {}]
  %s4 = inlined_call_operand.vmem [shape: f32[2,16,32], index: 4, kind: output, shape index: {0}]
  %s5 = inlined_call_operand.vmem [shape: f32[2,16,32], index: 5, kind: output, shape index: {1}]
  %6 = xla_tuple %s4, %s5
  %s7 = sld [smem:[#allocation0]]
  $region57: #{_lambda_.18} parent=0
    _
  %s9 = ssub.s32 1, %s7
  %s10 = scalar_select 0, %s9, %s7
  loop: start=0, step=1, limit=4
  $region2: #{_lambda_.18} parent=0 // loop_pre_header
    _
  $region3: #{_lambda_.18} parent=0 // loop_header
    %s12 = sphi 0, %s16
    %p13 = scmp.ge.s32.totalorder %s12, 4
    %s22 = sphi 0, %s24
    %s25 = sphi 0, %s22
    %s26 = sphi 0, %s25
    %s42 = sphi 0, %s26
    %s48 = sphi 0, %s50
    %s51 = sphi 0, %s48
    %s52 = sphi 0, %s51
    %s68 = sphi 0, %s52
    %s72 = sphi 0, %s72
    %s74 = sphi 0, %s72
    %s75 = sphi 0, %s74
    %s89 = sphi 0, %s75
    %s93 = sphi 0, %s93
    %s95 = sphi 0, %s93
    %s96 = sphi 0, %s95
    %s110 = sphi 0, %s96
    %s116 = sphi 0, %s118
    %s119 = sphi 0, %s116
    %s120 = sphi 0, %s119
    %s136 = sphi 0, %s120
    %s142 = sphi 0, %s144
    %s145 = sphi 0, %s142
    %s146 = sphi 0, %s145
    %s162 = sphi 0, %s146
  $region4: #{_lambda_.18} parent=0 // loop_header_branch
    %15 = sbr.rel (%p13) target = $region8
  $region5: #{_lambda_.18} parent=0 // loop_body
    %s17 = ssub.s32 %s12, 1
    %s18 = ssub.s32 %s12, 2
    %s19 = sadd.s32 %s12, 1
    %s20 = ssub.s32 %s12, %s19
    %p21 = scmp.eq.s32.totalorder %s20, 0
    %s23 = sadd.s32 %s22, 1
    %s24 = scalar_select %p21, %s22, %s23
    %p27 = pneg %p21
    %p28 = scmp.eq.s32.totalorder %s12, 1
    %p29 = por %p27, %p28
    %p30 = scmp.ne.s32.totalorder %s22, %s25
    %p31 = scmp.eq.s32.totalorder %s12, 0
    %p32 = por %p30, %p31
    %p33 = scmp.ne.s32.totalorder %s22, %s25
    %p34 = scmp.eq.s32.totalorder %s17, 1
    %p35 = por %p33, %p34
    %p36 = scmp.ne.s32.totalorder %s25, %s26
    %p37 = scmp.eq.s32.totalorder %s17, 0
    %p38 = por %p36, %p37
    %p39 = scmp.ne.s32.totalorder %s25, %s26
    %p40 = scmp.eq.s32.totalorder %s18, 1
    %p41 = por %p39, %p40
    %p43 = scmp.ne.s32.totalorder %s26, %s42
    %p44 = scmp.eq.s32.totalorder %s18, 0
    %p45 = por %p43, %p44
    %s46 = ssub.s32 %s12, %s19
    %p47 = scmp.eq.s32.totalorder %s46, 0
    %s49 = sadd.s32 %s48, 1
    %s50 = scalar_select %p47, %s48, %s49
    %p53 = pneg %p47
    %p54 = scmp.eq.s32.totalorder %s12, 1
    %p55 = por %p53, %p54
    %p56 = scmp.ne.s32.totalorder %s48, %s51
    %p57 = scmp.eq.s32.totalorder %s12, 0
    %p58 = por %p56, %p57
    %p59 = scmp.ne.s32.totalorder %s48, %s51
    %p60 = scmp.eq.s32.totalorder %s17, 1
    %p61 = por %p59, %p60
    %p62 = scmp.ne.s32.totalorder %s51, %s52
    %p63 = scmp.eq.s32.totalorder %s17, 0
    %p64 = por %p62, %p63
    %p65 = scmp.ne.s32.totalorder %s51, %s52
    %p66 = scmp.eq.s32.totalorder %s18, 1
    %p67 = por %p65, %p66
    %p69 = scmp.ne.s32.totalorder %s52, %s68
    %p70 = scmp.eq.s32.totalorder %s18, 0
    %p71 = por %p69, %p70
    %s73 = sadd.s32 %s72, 1
    %p76 = scmp.eq.s32.totalorder %s12, 1
    %p77 = scmp.ne.s32.totalorder %s72, %s74
    %p78 = scmp.eq.s32.totalorder %s12, 0
    %p79 = por %p77, %p78
    %p80 = scmp.ne.s32.totalorder %s72, %s74
    %p81 = scmp.eq.s32.totalorder %s17, 1
    %p82 = por %p80, %p81
    %p83 = scmp.ne.s32.totalorder %s74, %s75
    %p84 = scmp.eq.s32.totalorder %s17, 0
    %p85 = por %p83, %p84
    %p86 = scmp.ne.s32.totalorder %s74, %s75
    %p87 = scmp.eq.s32.totalorder %s18, 1
    %p88 = por %p86, %p87
    %p90 = scmp.ne.s32.totalorder %s75, %s89
    %p91 = scmp.eq.s32.totalorder %s18, 0
    %p92 = por %p90, %p91
    %s94 = sadd.s32 %s93, 1
    %p97 = scmp.eq.s32.totalorder %s12, 1
    %p98 = scmp.ne.s32.totalorder %s93, %s95
    %p99 = scmp.eq.s32.totalorder %s12, 0
    %p100 = por %p98, %p99
    %p101 = scmp.ne.s32.totalorder %s93, %s95
    %p102 = scmp.eq.s32.totalorder %s17, 1
    %p103 = por %p101, %p102
    %p104 = scmp.ne.s32.totalorder %s95, %s96
    %p105 = scmp.eq.s32.totalorder %s17, 0
    %p106 = por %p104, %p105
    %p107 = scmp.ne.s32.totalorder %s95, %s96
    %p108 = scmp.eq.s32.totalorder %s18, 1
    %p109 = por %p107, %p108
    %p111 = scmp.ne.s32.totalorder %s96, %s110
    %p112 = scmp.eq.s32.totalorder %s18, 0
    %p113 = por %p111, %p112
    %s114 = ssub.s32 %s12, %s19
    %p115 = scmp.eq.s32.totalorder %s114, 0
    %s117 = sadd.s32 %s116, 1
    %s118 = scalar_select %p115, %s116, %s117
    %p121 = pneg %p115
    %p122 = scmp.eq.s32.totalorder %s12, 1
    %p123 = por %p121, %p122
    %p124 = scmp.ne.s32.totalorder %s116, %s119
    %p125 = scmp.eq.s32.totalorder %s12, 0
    %p126 = por %p124, %p125
    %p127 = scmp.ne.s32.totalorder %s116, %s119
    %p128 = scmp.eq.s32.totalorder %s17, 1
    %p129 = por %p127, %p128
    %p130 = scmp.ne.s32.totalorder %s119, %s120
    %p131 = scmp.eq.s32.totalorder %s17, 0
    %p132 = por %p130, %p131
    %p133 = scmp.ne.s32.totalorder %s119, %s120
    %p134 = scmp.eq.s32.totalorder %s18, 1
    %p135 = por %p133, %p134
    %p137 = scmp.ne.s32.totalorder %s120, %s136
    %p138 = scmp.eq.s32.totalorder %s18, 0
    %p139 = por %p137, %p138
    %s140 = ssub.s32 %s12, %s19
    %p141 = scmp.eq.s32.totalorder %s140, 0
    %s143 = sadd.s32 %s142, 1
    %s144 = scalar_select %p141, %s142, %s143
    %p147 = pneg %p141
    %p148 = scmp.eq.s32.totalorder %s12, 1
    %p149 = por %p147, %p148
    %p150 = scmp.ne.s32.totalorder %s142, %s145
    %p151 = scmp.eq.s32.totalorder %s12, 0
    %p152 = por %p150, %p151
    %p153 = scmp.ne.s32.totalorder %s142, %s145
    %p154 = scmp.eq.s32.totalorder %s17, 1
    %p155 = por %p153, %p154
    %p156 = scmp.ne.s32.totalorder %s145, %s146
    %p157 = scmp.eq.s32.totalorder %s17, 0
    %p158 = por %p156, %p157
    %p159 = scmp.ne.s32.totalorder %s145, %s146
    %p160 = scmp.eq.s32.totalorder %s18, 1
    %p161 = por %p159, %p160
    %p163 = scmp.ne.s32.totalorder %s146, %s162
    %p164 = scmp.eq.s32.totalorder %s18, 0
    %p165 = por %p163, %p164
    %p166 = scmp.le.s32.totalorder 1, %s12
    %p167 = scmp.lt.s32.totalorder %s12, 3
    %p168 = pnand %p166, %p167
    %p169 = pneg %p168
    // Predicated region
    $region9: #{_lambda_.18} parent=5 // pred_check
      _
    $region10: #{_lambda_.18} parent=5 // pred_check_branch
      %171 = sbr.rel (%p168) target = $region12
    $region11: #{_lambda_.18} parent=5 // pred_region
      %s172 = ssub.s32 %s12, 1
      // Predicated region
      $region13: #{_lambda_.18} parent=11 // pred_check
        %p173 = pneg %p85
      $region14: #{_lambda_.18} parent=11 // pred_check_branch
        %175 = sbr.rel (%p173) target = $region16
      $region15: #{_lambda_.18} parent=11 // pred_region
        _
      $region16: #{_lambda_.18} parent=11 // pred_fallthru
        _
      // Predicated region
      $region17: #{_lambda_.18} parent=11 // pred_check
        %p176 = pneg %p106
      $region18: #{_lambda_.18} parent=11 // pred_check_branch
        %178 = sbr.rel (%p176) target = $region20
      $region19: #{_lambda_.18} parent=11 // pred_region
        _
      $region20: #{_lambda_.18} parent=11 // pred_fallthru
        _
    $region12: #{_lambda_.18} parent=5 // pred_fallthru
      _
    %p179 = scmp.lt.s32.totalorder %s12, 2
    // Predicated region
    $region21: #{_lambda_.18} parent=5 // pred_check
      %p180 = pneg %p179
    $region22: #{_lambda_.18} parent=5 // pred_check_branch
      %182 = sbr.rel (%p180) target = $region24
    $region23: #{_lambda_.18} parent=5 // pred_region
      // Predicated region
      $region25: #{_lambda_.18} parent=23 // pred_check
        %p183 = pneg %p32
      $region26: #{_lambda_.18} parent=23 // pred_check_branch
        %185 = sbr.rel (%p183) target = $region28
      $region27: #{_lambda_.18} parent=23 // pred_region
        %p186 = scmp.lt.s32.totalorder %s12, 1
        %s187 = scalar_select %p186, %s12, 1
        %s188 = smul.addr %s187, 2
        %s189 = smul.addr %s188, 8
        %s190 = scalar_lea.vmem %s0, %s189
      $region28: #{_lambda_.18} parent=23 // pred_fallthru
        _
      // Predicated region
      $region29: #{_lambda_.18} parent=23 // pred_check
        %p191 = pneg %p58
      $region30: #{_lambda_.18} parent=23 // pred_check_branch
        %193 = sbr.rel (%p191) target = $region32
      $region31: #{_lambda_.18} parent=23 // pred_region
        %p194 = scmp.lt.s32.totalorder %s12, 1
        %s195 = scalar_select %p194, %s12, 1
        %s196 = smul.addr %s195, 2
        %s197 = smul.addr %s196, 8
        %s198 = scalar_lea.vmem %s1, %s197
      $region32: #{_lambda_.18} parent=23 // pred_fallthru
        _
    $region24: #{_lambda_.18} parent=5 // pred_fallthru
      _
    %p199 = scmp.le.s32.totalorder 1, %s12
    %p200 = scmp.lt.s32.totalorder %s12, 3
    %p201 = pnand %p199, %p200
    %p202 = pneg %p201
    // Predicated region
    $region33: #{_lambda_.18} parent=5 // pred_check
      _
    $region34: #{_lambda_.18} parent=5 // pred_check_branch
      %204 = sbr.rel (%p201) target = $region36
    $region35: #{_lambda_.18} parent=5 // pred_region
      %s205 = ssub.s32 %s12, 1
      %p206 = scmp.lt.s32.totalorder %s17, 1
      %s207 = scalar_select %p206, %s17, 1
      %s208 = smul.addr %s207, 2
      %s209 = smul.addr %s208, 8
      %s210 = scalar_lea.vmem %s0, %s209
      %p211 = pneg %p38
      %p212 = pneg %p35
      %p213 = scmp.lt.s32.totalorder %s17, 1
      %s214 = scalar_select %p213, %s17, 1
      %s215 = smul.addr %s214, 2
      %s216 = smul.addr %s215, 8
      %s217 = scalar_lea.vmem %s1, %s216
      %p218 = pneg %p64
      %p219 = pneg %p61
      %p220 = pneg %p85
      %p221 = pneg %p82
      %p222 = pneg %p106
      %p223 = pneg %p103
      %p224 = pneg %p132
      %p225 = pneg %p129
      %p226 = scmp.lt.s32.totalorder %s17, 1
      %s227 = scalar_select %p226, %s17, 1
      %s228 = smul.addr %s227, 2
      %s229 = smul.addr %s228, 8
      %s230 = scalar_lea.vmem %s4, %s229
      %p231 = pneg %p158
      %p232 = pneg %p155
      %p233 = scmp.lt.s32.totalorder %s17, 1
      %s234 = scalar_select %p233, %s17, 1
      %s235 = smul.addr %s234, 2
      %s236 = smul.addr %s235, 8
      %s237 = scalar_lea.vmem %s5, %s236
      %p238 = scmp.lt.s32.totalorder %s17, 1
      %s239 = scalar_select %p238, %s17, 1
      %s240 = smul.addr %s239, 2
      %s241 = smul.addr %s240, 8
      %s242 = scalar_lea.vmem %s0, %s241
      %p243 = scmp.lt.s32.totalorder %s17, 1
      %s244 = scalar_select %p243, %s17, 1
      %s245 = smul.addr %s244, 2
      %s246 = smul.addr %s245, 8
      %s247 = scalar_lea.vmem %s1, %s246
      %p248 = scmp.lt.s32.totalorder %s17, 1
      %s249 = scalar_select %p248, %s17, 1
      %s250 = smul.addr %s249, 2
      %s251 = smul.addr %s250, 8
      %s252 = scalar_lea.vmem %s4, %s251
      %p253 = scmp.lt.s32.totalorder %s17, 1
      %s254 = scalar_select %p253, %s17, 1
      %s255 = smul.addr %s254, 2
      %s256 = smul.addr %s255, 8
      %s257 = scalar_lea.vmem %s5, %s256
      %v258 = vld [vmem:[%s247] sm:$0xff]
      %v259 = vld [vmem:[%s247 + $0x8] sm:$0xff]
      %v260 = vld [vmem:[%s242] sm:$0xff]
      %v261 = vld [vmem:[%s242 + $0x8] sm:$0xff]
      %v262 = vld [vmem:[%s2] sm:$0xff]
      %v263 = vld [vmem:[%s2 + $0x8] sm:$0xff]
      %v264 = vld [vmem:[%s2 + $0x10] sm:$0xff]
      %v265 = vld [vmem:[%s2 + $0x18] sm:$0xff]
      %vm266 = vcmask 261120
      %v268 = vsel %vm266, %v260, 0
      %v271 = vsel %vm266, %v261, 0
      %273 = vmatprep.subr.mxu0 0.0
      %274 = vmatpush1.msra.mxu0 0.0
      %275 = vmatprep.subr.mxu0 0.0
      %276 = vmatpush1.msra.mxu0 0.0
      %277 = vmatprep.subr.mxu0 0.0
      %278 = vmatpush1.msra.mxu0 0.0
      %279 = vmatprep.subr.mxu0 0.0
      %280 = vmatpush1.msra.mxu0 0.0
      %281 = vmatprep.subr.mxu0 0.0
      %282 = vmatpush1.msra.mxu0 0.0
      %283 = vmatprep.subr.mxu0 0.0
      %284 = vmatpush1.msra.mxu0 0.0
      %285 = vmatprep.subr.mxu0 0.0
      %286 = vmatpush1.msra.mxu0 0.0
      %287 = vmatprep.subr.mxu0 0.0
      %288 = vmatpush1.msra.mxu0 0.0
      %289 = vmatprep.subr.mxu0 0.0
      %290 = vmatpush1.msra.mxu0 0.0
      %291 = vmatprep.subr.mxu0 0.0
      %292 = vmatpush1.msra.mxu0 0.0
      %293 = vmatprep.subr.mxu0 0.0
      %294 = vmatpush1.msra.mxu0 0.0
      %295 = vmatprep.subr.mxu0 0.0
      %296 = vmatpush1.msra.mxu0 0.0
      %297 = vmatprep.subr.mxu0 0.0
      %298 = vmatpush1.msra.mxu0 %v265
      %299 = vmatprep.subr.mxu0 0.0
      %300 = vmatpush1.msra.mxu0 %v264
      %301 = vmatprep.subr.mxu0 0.0
      %302 = vmatpush1.msra.mxu0 %v263
      %303 = vmatprep.subr.mxu0 0.0
      %304 = vmatpush1.msra.mxu0 %v262
      %305 = vmatprep.subr.mxu0 0.0
      %306 = vmatpush2.msra.mxu0 0.0
      %307 = vmatprep.subr.mxu0 0.0
      %308 = vmatpush2.msra.mxu0 0.0
      %309 = vmatprep.subr.mxu0 0.0
      %310 = vmatpush2.msra.mxu0 0.0
      %311 = vmatprep.subr.mxu0 0.0
      %312 = vmatpush2.msra.mxu0 0.0
      %313 = vmatprep.subr.mxu0 0.0
      %314 = vmatpush2.msra.mxu0 0.0
      %315 = vmatprep.subr.mxu0 0.0
      %316 = vmatpush2.msra.mxu0 0.0
      %317 = vmatprep.subr.mxu0 0.0
      %318 = vmatpush2.msra.mxu0 0.0
      %319 = vmatprep.subr.mxu0 0.0
      %320 = vmatpush2.msra.mxu0 0.0
      %321 = vmatprep.subr.mxu0 0.0
      %322 = vmatpush2.msra.mxu0 0.0
      %323 = vmatprep.subr.mxu0 0.0
      %324 = vmatpush2.msra.mxu0 0.0
      %325 = vmatprep.subr.mxu0 0.0
      %326 = vmatpush2.msra.mxu0 0.0
      %327 = vmatprep.subr.mxu0 0.0
      %328 = vmatpush2.msra.mxu0 0.0
      %329 = vmatprep.subr.mxu0 0.0
      %330 = vmatpush2.msra.mxu0 0.0
      %331 = vmatprep.subr.mxu0 0.0
      %332 = vmatpush2.msra.mxu0 0.0
      %333 = vmatprep.subr.mxu0 0.0
      %334 = vmatpush2.msra.mxu0 0.0
      %335 = vmatprep.subr.mxu0 0.0
      %336 = vmatpush2.msra.mxu0 0.0
      %337 = vmatprep.mubr.f32.mxu0 0.0
      %338 = vmatmul.mubr.f32.gmra.mxu0 %v268
      %v339 = vpop.f32.mrf.mxu0
      %v340 = vadd.f32 0.0, %v339
      %v341 = vpop.f32.mrf.mxu0
      %342 = vmatprep.mubr.f32.mxu0 0.0
      %343 = vmatmul.mubr.f32.gmra.mxu0 %v271
      %v344 = vpop.f32.mrf.mxu0
      %v345 = vadd.f32 0.0, %v344
      %v346 = vpop.f32.mrf.mxu0
      %347 = vdwg.mxu0
      %v348 = vadd.f32 %v258, %v340
      %v349 = vadd.f32 %v259, %v345
      %v350 = vld [vmem:[%s3] sm:$0xff]
      %v351 = vld [vmem:[%s3 + $0x8] sm:$0xff]
      %vm352 = vcmask 130048
      %v354 = vsel %vm352, %v350, 0
      %v357 = vsel %vm352, %v351, 0
      %359 = vmatprep.subr.mxu0 0.0
      %360 = vmatpush1.msra.mxu0 0.0
      %361 = vmatprep.subr.mxu0 0.0
      %362 = vmatpush1.msra.mxu0 0.0
      %363 = vmatprep.subr.mxu0 0.0
      %364 = vmatpush1.msra.mxu0 0.0
      %365 = vmatprep.subr.mxu0 0.0
      %366 = vmatpush1.msra.mxu0 0.0
      %367 = vmatprep.subr.mxu0 0.0
      %368 = vmatpush1.msra.mxu0 0.0
      %369 = vmatprep.subr.mxu0 0.0
      %370 = vmatpush1.msra.mxu0 0.0
      %371 = vmatprep.subr.mxu0 0.0
      %372 = vmatpush1.msra.mxu0 0.0
      %373 = vmatprep.subr.mxu0 0.0
      %374 = vmatpush1.msra.mxu0 0.0
      %375 = vmatprep.subr.mxu0 0.0
      %376 = vmatpush1.msra.mxu0 0.0
      %377 = vmatprep.subr.mxu0 0.0
      %378 = vmatpush1.msra.mxu0 0.0
      %379 = vmatprep.subr.mxu0 0.0
      %380 = vmatpush1.msra.mxu0 0.0
      %381 = vmatprep.subr.mxu0 0.0
      %382 = vmatpush1.msra.mxu0 0.0
      %383 = vmatprep.subr.mxu0 0.0
      %384 = vmatpush1.msra.mxu0 0.0
      %385 = vmatprep.subr.mxu0 0.0
      %386 = vmatpush1.msra.mxu0 0.0
      %387 = vmatprep.subr.mxu0 0.0
      %388 = vmatpush1.msra.mxu0 %v349
      %389 = vmatprep.subr.mxu0 0.0
      %390 = vmatpush1.msra.mxu0 %v348
      %391 = vmatprep.subr.mxu0 0.0
      %392 = vmatpush2.msra.mxu0 0.0
      %393 = vmatprep.subr.mxu0 0.0
      %394 = vmatpush2.msra.mxu0 0.0
      %395 = vmatprep.subr.mxu0 0.0
      %396 = vmatpush2.msra.mxu0 0.0
      %397 = vmatprep.subr.mxu0 0.0
      %398 = vmatpush2.msra.mxu0 0.0
      %399 = vmatprep.subr.mxu0 0.0
      %400 = vmatpush2.msra.mxu0 0.0
      %401 = vmatprep.subr.mxu0 0.0
      %402 = vmatpush2.msra.mxu0 0.0
      %403 = vmatprep.subr.mxu0 0.0
      %404 = vmatpush2.msra.mxu0 0.0
      %405 = vmatprep.subr.mxu0 0.0
      %406 = vmatpush2.msra.mxu0 0.0
      %407 = vmatprep.subr.mxu0 0.0
      %408 = vmatpush2.msra.mxu0 0.0
      %409 = vmatprep.subr.mxu0 0.0
      %410 = vmatpush2.msra.mxu0 0.0
      %411 = vmatprep.subr.mxu0 0.0
      %412 = vmatpush2.msra.mxu0 0.0
      %413 = vmatprep.subr.mxu0 0.0
      %414 = vmatpush2.msra.mxu0 0.0
      %415 = vmatprep.subr.mxu0 0.0
      %416 = vmatpush2.msra.mxu0 0.0
      %417 = vmatprep.subr.mxu0 0.0
      %418 = vmatpush2.msra.mxu0 0.0
      %419 = vmatprep.subr.mxu0 0.0
      %420 = vmatpush2.msra.mxu0 0.0
      %421 = vmatprep.subr.mxu0 0.0
      %422 = vmatpush2.msra.mxu0 0.0
      %423 = vmatprep.mubr.f32.mxu0 0.0
      %424 = vmatmul.mubr.f32.gmra.mxu0 %v354
      %v425 = vpop.f32.mrf.mxu0
      %v426 = vadd.f32 0.0, %v425
      %v427 = vpop.f32.mrf.mxu0
      %428 = vmatprep.mubr.f32.mxu0 0.0
      %429 = vmatmul.mubr.f32.gmra.mxu0 %v357
      %v430 = vpop.f32.mrf.mxu0
      %v431 = vadd.f32 0.0, %v430
      %v432 = vpop.f32.mrf.mxu0
      %433 = vdwg.mxu0
      %434 = vst.msk [vmem:[%s257] sm:$0xff] %vm266, %v426
      %435 = vst.msk [vmem:[%s257 + $0x8] sm:$0xff] %vm266, %v431
      %v436 = vsub.f32 %v348, %v426
      %v437 = vsub.f32 %v349, %v431
      %438 = vst.msk [vmem:[%s252] sm:$0xff] %vm266, %v436
      %439 = vst.msk [vmem:[%s252 + $0x8] sm:$0xff] %vm266, %v437
      %p440 = scmp.lt.s32.totalorder %s17, 1
      %s441 = scalar_select %p440, %s17, 1
      %s442 = smul.addr %s441, 2
      %s443 = smul.addr %s442, 8
      %s444 = scalar_lea.vmem %s4, %s443
      %p445 = scmp.lt.s32.totalorder %s17, 1
      %s446 = scalar_select %p445, %s17, 1
      %s447 = smul.addr %s446, 2
      %s448 = smul.addr %s447, 8
      %s449 = scalar_lea.vmem %s5, %s448
      // Predicated region
      $region37: #{_lambda_.18} parent=35 // pred_check
        %p450 = pneg %p129
      $region38: #{_lambda_.18} parent=35 // pred_check_branch
        %452 = sbr.rel (%p450) target = $region40
      $region39: #{_lambda_.18} parent=35 // pred_region
        _
      $region40: #{_lambda_.18} parent=35 // pred_fallthru
        _
      // Predicated region
      $region41: #{_lambda_.18} parent=35 // pred_check
        %p453 = pneg %p155
      $region42: #{_lambda_.18} parent=35 // pred_check_branch
        %455 = sbr.rel (%p453) target = $region44
      $region43: #{_lambda_.18} parent=35 // pred_region
        _
      $region44: #{_lambda_.18} parent=35 // pred_fallthru
        _
    $region36: #{_lambda_.18} parent=5 // pred_fallthru
      _
    %p456 = scmp.le.s32.totalorder 2, %s12
    // Predicated region
    $region45: #{_lambda_.18} parent=5 // pred_check
      %p457 = pneg %p456
    $region46: #{_lambda_.18} parent=5 // pred_check_branch
      %459 = sbr.rel (%p457) target = $region48
    $region47: #{_lambda_.18} parent=5 // pred_region
      %s460 = ssub.s32 %s12, 2
      // Predicated region
      $region49: #{_lambda_.18} parent=47 // pred_check
        %p461 = pneg %p135
      $region50: #{_lambda_.18} parent=47 // pred_check_branch
        %463 = sbr.rel (%p461) target = $region52
      $region51: #{_lambda_.18} parent=47 // pred_region
        %p464 = scmp.lt.s32.totalorder %s18, 1
        %s465 = scalar_select %p464, %s18, 1
        %s466 = smul.addr %s465, 2
        %s467 = smul.addr %s466, 8
        %s468 = scalar_lea.vmem %s4, %s467
      $region52: #{_lambda_.18} parent=47 // pred_fallthru
        _
      // Predicated region
      $region53: #{_lambda_.18} parent=47 // pred_check
        %p469 = pneg %p161
      $region54: #{_lambda_.18} parent=47 // pred_check_branch
        %471 = sbr.rel (%p469) target = $region56
      $region55: #{_lambda_.18} parent=47 // pred_region
        %p472 = scmp.lt.s32.totalorder %s18, 1
        %s473 = scalar_select %p472, %s18, 1
        %s474 = smul.addr %s473, 2
        %s475 = smul.addr %s474, 8
        %s476 = scalar_lea.vmem %s5, %s475
      $region56: #{_lambda_.18} parent=47 // pred_fallthru
        _
    $region48: #{_lambda_.18} parent=5 // pred_fallthru
      _
  $region6: #{_lambda_.18} parent=0 // loop_footer
    %s16 = sadd.s32 1, %s12
  $region7: #{_lambda_.18} parent=0 // loop_footer_branch
    %11 = sbr.rel target = $region3
  $region8: #{_lambda_.18} parent=0 // loop_exit
    _

// kernel: reverse.11
$region0: #{reverse.11}
  %s0 = inlined_call_operand.vmem [shape: f32[2,8,4,7], index: 0, kind: input, shape index: {}]
  %s1 = inlined_call_operand.vmem [shape: f32[2,8,4,7], index: 1, kind: output, shape index: {}]
  %v2 = vlaneseq
  %v3 = vsub.s32 6, %v2
  %4 = vset.pattern.permute.xlu0 %v3
  $region1: #{reverse.11} parent=0
    #allocation0 [shape = 'u8[32768]{0}', space=vmem, size = 0x8000, scoped, tag = 'operand span for operand 0']
    #allocation1 [shape = 'u8[32768]{0}', space=vmem, size = 0x8000, scoped, tag = 'operand span for operand 1']
    // Predicated region
    $region2: #{reverse.11} parent=1 // pred_check
      _
    $region3: #{reverse.11} parent=1 // pred_check_branch
      %6 = sbr.rel (0) target = $region5
    $region4: #{reverse.11} parent=1 // pred_region
      // Predicated region
      $region6: #{reverse.11} parent=4 // pred_check
        _
      $region7: #{reverse.11} parent=4 // pred_check_branch
        %8 = sbr.rel (0) target = $region9
      $region8: #{reverse.11} parent=4 // pred_region
        // Predicated region
        $region21: #{reverse.11} parent=8 // pred_check
          _
        $region22: #{reverse.11} parent=8 // pred_check_branch
          %38 = sbr.rel (0) target = $region24
        $region23: #{reverse.11} parent=8 // pred_region
          loop: start=0, step=1, limit=1
          $region25: #{reverse.11} parent=23 // loop_pre_header
            _
          $region26: #{reverse.11} parent=23 // loop_header
            %s40 = sphi 0, %s44
            %p41 = scmp.ge.s32.totalorder %s40, 1
            %s45 = sphi %s0, %s0
            %s46 = sphi [#allocation0], [#allocation0]
          $region27: #{reverse.11} parent=23 // loop_header_branch
            %43 = sbr.rel (%p41) target = $region31
          $region28: #{reverse.11} parent=23 // loop_body
            %v47 = vld [vmem:[%s45] sm:$0xff]
            %48 = vst [vmem:[%s46] sm:$0xff] %v47
            %v49 = vld [vmem:[%s45 + $0x8] sm:$0xff]
            %50 = vst [vmem:[%s46 + $0x8] sm:$0xff] %v49
            %v51 = vld [vmem:[%s45 + $0x10] sm:$0xff]
            %52 = vst [vmem:[%s46 + $0x10] sm:$0xff] %v51
            %v53 = vld [vmem:[%s45 + $0x18] sm:$0xff]
            %54 = vst [vmem:[%s46 + $0x18] sm:$0xff] %v53
            %v55 = vld [vmem:[%s45 + $0x20] sm:$0xff]
            %56 = vst [vmem:[%s46 + $0x20] sm:$0xff] %v55
            %v57 = vld [vmem:[%s45 + $0x28] sm:$0xff]
            %58 = vst [vmem:[%s46 + $0x28] sm:$0xff] %v57
            %v59 = vld [vmem:[%s45 + $0x30] sm:$0xff]
            %60 = vst [vmem:[%s46 + $0x30] sm:$0xff] %v59
            %v61 = vld [vmem:[%s45 + $0x38] sm:$0xff]
            %62 = vst [vmem:[%s46 + $0x38] sm:$0xff] %v61
          $region29: #{reverse.11} parent=23 // loop_footer
            %s44 = sadd.s32 1, %s40
          $region30: #{reverse.11} parent=23 // loop_footer_branch
            %39 = sbr.rel target = $region26
          $region31: #{reverse.11} parent=23 // loop_exit
            _
        $region24: #{reverse.11} parent=8 // pred_fallthru
          _
        // Predicated region
        $region32: #{reverse.11} parent=8 // pred_check
          _
        $region33: #{reverse.11} parent=8 // pred_check_branch
          %64 = sbr.rel target = $region35
        $region34: #{reverse.11} parent=8 // pred_region
          _
        $region35: #{reverse.11} parent=8 // pred_fallthru
          _
      $region9: #{reverse.11} parent=4 // pred_fallthru
        _
      // Predicated region
      $region10: #{reverse.11} parent=4 // pred_check
        _
      $region11: #{reverse.11} parent=4 // pred_check_branch
        %10 = sbr.rel target = $region13
      $region12: #{reverse.11} parent=4 // pred_region
        %s12 = ssub.s32 256, 1
        loop: start=0, step=1, limit=1
        $region14: #{reverse.11} parent=12 // loop_pre_header
          _
        $region15: #{reverse.11} parent=12 // loop_header
          %s14 = sphi 0, %s18
          %p15 = scmp.ge.s32.totalorder %s14, 1
          %s19 = sphi %s0, %s0
          %s20 = sphi [#allocation0], [#allocation0]
        $region16: #{reverse.11} parent=12 // loop_header_branch
          %17 = sbr.rel (%p15) target = $region20
        $region17: #{reverse.11} parent=12 // loop_body
          %v21 = vld [vmem:[%s19] sm:%s12]
          %22 = vst [vmem:[%s20] sm:%s12] %v21
          %v23 = vld [vmem:[%s19 + $0x8] sm:%s12]
          %24 = vst [vmem:[%s20 + $0x8] sm:%s12] %v23
          %v25 = vld [vmem:[%s19 + $0x10] sm:%s12]
          %26 = vst [vmem:[%s20 + $0x10] sm:%s12] %v25
          %v27 = vld [vmem:[%s19 + $0x18] sm:%s12]
          %28 = vst [vmem:[%s20 + $0x18] sm:%s12] %v27
          %v29 = vld [vmem:[%s19 + $0x20] sm:%s12]
          %30 = vst [vmem:[%s20 + $0x20] sm:%s12] %v29
          %v31 = vld [vmem:[%s19 + $0x28] sm:%s12]
          %32 = vst [vmem:[%s20 + $0x28] sm:%s12] %v31
          %v33 = vld [vmem:[%s19 + $0x30] sm:%s12]
          %34 = vst [vmem:[%s20 + $0x30] sm:%s12] %v33
          %v35 = vld [vmem:[%s19 + $0x38] sm:%s12]
          %36 = vst [vmem:[%s20 + $0x38] sm:%s12] %v35
        $region18: #{reverse.11} parent=12 // loop_footer
          %s18 = sadd.s32 1, %s14
        $region19: #{reverse.11} parent=12 // loop_footer_branch
          %13 = sbr.rel target = $region15
        $region20: #{reverse.11} parent=12 // loop_exit
          _
      $region13: #{reverse.11} parent=4 // pred_fallthru
        _
    $region5: #{reverse.11} parent=1 // pred_fallthru
      _
    %65 = vnop
    %v66 = vld [vmem:[#allocation0] sm:$0xff]
    %67 = vperm.xlu0 %4, %v66
    %v68 = vpop.permute.xlu0 %67
    %69 = vst [vmem:[#allocation1] sm:$0xff] %v68
    %s70 = scalar_lea.vmem [#allocation1], 8
    %s71 = scalar_lea.vmem [#allocation0], 8
    %v72 = vld [vmem:[%s71] sm:$0xff]
    %73 = vperm.xlu0 %4, %v72
    %v74 = vpop.permute.xlu0 %73
    %75 = vst [vmem:[%s70] sm:$0xff] %v74
    %s76 = scalar_lea.vmem [#allocation1], 16
    %s77 = scalar_lea.vmem [#allocation0], 16
    %v78 = vld [vmem:[%s77] sm:$0xff]
    %79 = vperm.xlu0 %4, %v78
    %v80 = vpop.permute.xlu0 %79
    %81 = vst [vmem:[%s76] sm:$0xff] %v80
    %s82 = scalar_lea.vmem [#allocation1], 24
    %s83 = scalar_lea.vmem [#allocation0], 24
    %v84 = vld [vmem:[%s83] sm:$0xff]
    %85 = vperm.xlu0 %4, %v84
    %v86 = vpop.permute.xlu0 %85
    %87 = vst [vmem:[%s82] sm:$0xff] %v86
    %s88 = scalar_lea.vmem [#allocation1], 32
    %s89 = scalar_lea.vmem [#allocation0], 32
    %v90 = vld [vmem:[%s89] sm:$0xff]
    %91 = vperm.xlu0 %4, %v90
    %v92 = vpop.permute.xlu0 %91
    %93 = vst [vmem:[%s88] sm:$0xff] %v92
    %s94 = scalar_lea.vmem [#allocation1], 40
    %s95 = scalar_lea.vmem [#allocation0], 40
    %v96 = vld [vmem:[%s95] sm:$0xff]
    %97 = vperm.xlu0 %4, %v96
    %v98 = vpop.permute.xlu0 %97
    %99 = vst [vmem:[%s94] sm:$0xff] %v98
    %s100 = scalar_lea.vmem [#allocation1], 48
    %s101 = scalar_lea.vmem [#allocation0], 48
    %v102 = vld [vmem:[%s101] sm:$0xff]
    %103 = vperm.xlu0 %4, %v102
    %v104 = vpop.permute.xlu0 %103
    %105 = vst [vmem:[%s100] sm:$0xff] %v104
    %s106 = scalar_lea.vmem [#allocation1], 56
    %s107 = scalar_lea.vmem [#allocation0], 56
    %v108 = vld [vmem:[%s107] sm:$0xff]
    %109 = vperm.xlu0 %4, %v108
    %v110 = vpop.permute.xlu0 %109
    %111 = vst [vmem:[%s106] sm:$0xff] %v110
    // Predicated region
    $region36: #{reverse.11} parent=1 // pred_check
      _
    $region37: #{reverse.11} parent=1 // pred_check_branch
      %113 = sbr.rel (0) target = $region39
    $region38: #{reverse.11} parent=1 // pred_region
      // Predicated region
      $region40: #{reverse.11} parent=38 // pred_check
        _
      $region41: #{reverse.11} parent=38 // pred_check_branch
        %115 = sbr.rel (0) target = $region43
      $region42: #{reverse.11} parent=38 // pred_region
        // Predicated region
        $region55: #{reverse.11} parent=42 // pred_check
          _
        $region56: #{reverse.11} parent=42 // pred_check_branch
          %145 = sbr.rel (0) target = $region58
        $region57: #{reverse.11} parent=42 // pred_region
          loop: start=0, step=1, limit=1
          $region59: #{reverse.11} parent=57 // loop_pre_header
            _
          $region60: #{reverse.11} parent=57 // loop_header
            %s147 = sphi 0, %s151
            %p148 = scmp.ge.s32.totalorder %s147, 1
            %s152 = sphi [#allocation1], [#allocation1]
            %s153 = sphi %s1, %s1
          $region61: #{reverse.11} parent=57 // loop_header_branch
            %150 = sbr.rel (%p148) target = $region65
          $region62: #{reverse.11} parent=57 // loop_body
            %v154 = vld [vmem:[%s152] sm:$0xff]
            %155 = vst [vmem:[%s153] sm:$0xff] %v154
            %v156 = vld [vmem:[%s152 + $0x8] sm:$0xff]
            %157 = vst [vmem:[%s153 + $0x8] sm:$0xff] %v156
            %v158 = vld [vmem:[%s152 + $0x10] sm:$0xff]
            %159 = vst [vmem:[%s153 + $0x10] sm:$0xff] %v158
            %v160 = vld [vmem:[%s152 + $0x18] sm:$0xff]
            %161 = vst [vmem:[%s153 + $0x18] sm:$0xff] %v160
            %v162 = vld [vmem:[%s152 + $0x20] sm:$0xff]
            %163 = vst [vmem:[%s153 + $0x20] sm:$0xff] %v162
            %v164 = vld [vmem:[%s152 + $0x28] sm:$0xff]
            %165 = vst [vmem:[%s153 + $0x28] sm:$0xff] %v164
            %v166 = vld [vmem:[%s152 + $0x30] sm:$0xff]
            %167 = vst [vmem:[%s153 + $0x30] sm:$0xff] %v166
            %v168 = vld [vmem:[%s152 + $0x38] sm:$0xff]
            %169 = vst [vmem:[%s153 + $0x38] sm:$0xff] %v168
          $region63: #{reverse.11} parent=57 // loop_footer
            %s151 = sadd.s32 1, %s147
          $region64: #{reverse.11} parent=57 // loop_footer_branch
            %146 = sbr.rel target = $region60
          $region65: #{reverse.11} parent=57 // loop_exit
            _
        $region58: #{reverse.11} parent=42 // pred_fallthru
          _
        // Predicated region
        $region66: #{reverse.11} parent=42 // pred_check
          _
        $region67: #{reverse.11} parent=42 // pred_check_branch
          %171 = sbr.rel target = $region69
        $region68: #{reverse.11} parent=42 // pred_region
          _
        $region69: #{reverse.11} parent=42 // pred_fallthru
          _
      $region43: #{reverse.11} parent=38 // pred_fallthru
        _
      // Predicated region
      $region44: #{reverse.11} parent=38 // pred_check
        _
      $region45: #{reverse.11} parent=38 // pred_check_branch
        %117 = sbr.rel target = $region47
      $region46: #{reverse.11} parent=38 // pred_region
        %s119 = ssub.s32 256, 1
        loop: start=0, step=1, limit=1
        $region48: #{reverse.11} parent=46 // loop_pre_header
          _
        $region49: #{reverse.11} parent=46 // loop_header
          %s121 = sphi 0, %s125
          %p122 = scmp.ge.s32.totalorder %s121, 1
          %s126 = sphi [#allocation1], [#allocation1]
          %s127 = sphi %s1, %s1
        $region50: #{reverse.11} parent=46 // loop_header_branch
          %124 = sbr.rel (%p122) target = $region54
        $region51: #{reverse.11} parent=46 // loop_body
          %v128 = vld [vmem:[%s126] sm:%s119]
          %129 = vst [vmem:[%s127] sm:%s119] %v128
          %v130 = vld [vmem:[%s126 + $0x8] sm:%s119]
          %131 = vst [vmem:[%s127 + $0x8] sm:%s119] %v130
          %v132 = vld [vmem:[%s126 + $0x10] sm:%s119]
          %133 = vst [vmem:[%s127 + $0x10] sm:%s119] %v132
          %v134 = vld [vmem:[%s126 + $0x18] sm:%s119]
          %135 = vst [vmem:[%s127 + $0x18] sm:%s119] %v134
          %v136 = vld [vmem:[%s126 + $0x20] sm:%s119]
          %137 = vst [vmem:[%s127 + $0x20] sm:%s119] %v136
          %v138 = vld [vmem:[%s126 + $0x28] sm:%s119]
          %139 = vst [vmem:[%s127 + $0x28] sm:%s119] %v138
          %v140 = vld [vmem:[%s126 + $0x30] sm:%s119]
          %141 = vst [vmem:[%s127 + $0x30] sm:%s119] %v140
          %v142 = vld [vmem:[%s126 + $0x38] sm:%s119]
          %143 = vst [vmem:[%s127 + $0x38] sm:%s119] %v142
        $region52: #{reverse.11} parent=46 // loop_footer
          %s125 = sadd.s32 1, %s121
        $region53: #{reverse.11} parent=46 // loop_footer_branch
          %120 = sbr.rel target = $region49
        $region54: #{reverse.11} parent=46 // loop_exit
          _
      $region47: #{reverse.11} parent=38 // pred_fallthru
        _
    $region39: #{reverse.11} parent=1 // pred_fallthru
      _
    %172 = vnop

// kernel: _lambda_.21
$region0: #{_lambda_.21}
  #allocation0 [shape = 'u32[]', space=smem, size = 0x4, offset = 0x4, fixed_abs, tag = 'smem constant byte address 0x4 - core index']
  #allocation1 [shape = 'u32[144,128]{1,0:T(1,128)}', space=vmem, size = 0x12000, scoped, tag = 'internal scratch']
  %s0 = inlined_call_operand.vmem [shape: f32[2,16,32], index: 0, kind: input, shape index: {}]
  %s1 = inlined_call_operand.vmem [shape: f32[32,64], index: 1, kind: input, shape index: {}]
  %s2 = inlined_call_operand.vmem [shape: f32[64,32], index: 2, kind: input, shape index: {}]
  %s3 = inlined_call_operand.vmem [shape: f32[16,16], index: 3, kind: input, shape index: {}]
  %s4 = inlined_call_operand.vmem [shape: f32[2,16,32], index: 4, kind: output, shape index: {0}]
  %s5 = inlined_call_operand.vmem [shape: f32[2,16,32], index: 5, kind: output, shape index: {1}]
  %6 = xla_tuple %s4, %s5
  %s7 = sld [smem:[#allocation0]]
  $region57: #{_lambda_.21} parent=0
    _
  %s9 = ssub.s32 1, %s7
  %s10 = scalar_select 0, %s9, %s7
  loop: start=0, step=1, limit=4
  $region2: #{_lambda_.21} parent=0 // loop_pre_header
    _
  $region3: #{_lambda_.21} parent=0 // loop_header
    %s12 = sphi 0, %s16
    %p13 = scmp.ge.s32.totalorder %s12, 4
    %s22 = sphi 0, %s24
    %s25 = sphi 0, %s22
    %s26 = sphi 0, %s25
    %s42 = sphi 0, %s26
    %s46 = sphi 0, %s46
    %s48 = sphi 0, %s46
    %s49 = sphi 0, %s48
    %s63 = sphi 0, %s49
    %s67 = sphi 0, %s67
    %s69 = sphi 0, %s67
    %s70 = sphi 0, %s69
    %s84 = sphi 0, %s70
    %s88 = sphi 0, %s88
    %s90 = sphi 0, %s88
    %s91 = sphi 0, %s90
    %s105 = sphi 0, %s91
    %s111 = sphi 0, %s113
    %s114 = sphi 0, %s111
    %s115 = sphi 0, %s114
    %s131 = sphi 0, %s115
    %s137 = sphi 0, %s139
    %s140 = sphi 0, %s137
    %s141 = sphi 0, %s140
    %s157 = sphi 0, %s141
  $region4: #{_lambda_.21} parent=0 // loop_header_branch
    %15 = sbr.rel (%p13) target = $region8
  $region5: #{_lambda_.21} parent=0 // loop_body
    %s17 = ssub.s32 %s12, 1
    %s18 = ssub.s32 %s12, 2
    %s19 = sadd.s32 %s12, 1
    %s20 = ssub.s32 %s12, %s19
    %p21 = scmp.eq.s32.totalorder %s20, 0
    %s23 = sadd.s32 %s22, 1
    %s24 = scalar_select %p21, %s22, %s23
    %p27 = pneg %p21
    %p28 = scmp.eq.s32.totalorder %s12, 1
    %p29 = por %p27, %p28
    %p30 = scmp.ne.s32.totalorder %s22, %s25
    %p31 = scmp.eq.s32.totalorder %s12, 0
    %p32 = por %p30, %p31
    %p33 = scmp.ne.s32.totalorder %s22, %s25
    %p34 = scmp.eq.s32.totalorder %s17, 1
    %p35 = por %p33, %p34
    %p36 = scmp.ne.s32.totalorder %s25, %s26
    %p37 = scmp.eq.s32.totalorder %s17, 0
    %p38 = por %p36, %p37
    %p39 = scmp.ne.s32.totalorder %s25, %s26
    %p40 = scmp.eq.s32.totalorder %s18, 1
    %p41 = por %p39, %p40
    %p43 = scmp.ne.s32.totalorder %s26, %s42
    %p44 = scmp.eq.s32.totalorder %s18, 0
    %p45 = por %p43, %p44
    %s47 = sadd.s32 %s46, 1
    %p50 = scmp.eq.s32.totalorder %s12, 1
    %p51 = scmp.ne.s32.totalorder %s46, %s48
    %p52 = scmp.eq.s32.totalorder %s12, 0
    %p53 = por %p51, %p52
    %p54 = scmp.ne.s32.totalorder %s46, %s48
    %p55 = scmp.eq.s32.totalorder %s17, 1
    %p56 = por %p54, %p55
    %p57 = scmp.ne.s32.totalorder %s48, %s49
    %p58 = scmp.eq.s32.totalorder %s17, 0
    %p59 = por %p57, %p58
    %p60 = scmp.ne.s32.totalorder %s48, %s49
    %p61 = scmp.eq.s32.totalorder %s18, 1
    %p62 = por %p60, %p61
    %p64 = scmp.ne.s32.totalorder %s49, %s63
    %p65 = scmp.eq.s32.totalorder %s18, 0
    %p66 = por %p64, %p65
    %s68 = sadd.s32 %s67, 1
    %p71 = scmp.eq.s32.totalorder %s12, 1
    %p72 = scmp.ne.s32.totalorder %s67, %s69
    %p73 = scmp.eq.s32.totalorder %s12, 0
    %p74 = por %p72, %p73
    %p75 = scmp.ne.s32.totalorder %s67, %s69
    %p76 = scmp.eq.s32.totalorder %s17, 1
    %p77 = por %p75, %p76
    %p78 = scmp.ne.s32.totalorder %s69, %s70
    %p79 = scmp.eq.s32.totalorder %s17, 0
    %p80 = por %p78, %p79
    %p81 = scmp.ne.s32.totalorder %s69, %s70
    %p82 = scmp.eq.s32.totalorder %s18, 1
    %p83 = por %p81, %p82
    %p85 = scmp.ne.s32.totalorder %s70, %s84
    %p86 = scmp.eq.s32.totalorder %s18, 0
    %p87 = por %p85, %p86
    %s89 = sadd.s32 %s88, 1
    %p92 = scmp.eq.s32.totalorder %s12, 1
    %p93 = scmp.ne.s32.totalorder %s88, %s90
    %p94 = scmp.eq.s32.totalorder %s12, 0
    %p95 = por %p93, %p94
    %p96 = scmp.ne.s32.totalorder %s88, %s90
    %p97 = scmp.eq.s32.totalorder %s17, 1
    %p98 = por %p96, %p97
    %p99 = scmp.ne.s32.totalorder %s90, %s91
    %p100 = scmp.eq.s32.totalorder %s17, 0
    %p101 = por %p99, %p100
    %p102 = scmp.ne.s32.totalorder %s90, %s91
    %p103 = scmp.eq.s32.totalorder %s18, 1
    %p104 = por %p102, %p103
    %p106 = scmp.ne.s32.totalorder %s91, %s105
    %p107 = scmp.eq.s32.totalorder %s18, 0
    %p108 = por %p106, %p107
    %s109 = ssub.s32 %s12, %s19
    %p110 = scmp.eq.s32.totalorder %s109, 0
    %s112 = sadd.s32 %s111, 1
    %s113 = scalar_select %p110, %s111, %s112
    %p116 = pneg %p110
    %p117 = scmp.eq.s32.totalorder %s12, 1
    %p118 = por %p116, %p117
    %p119 = scmp.ne.s32.totalorder %s111, %s114
    %p120 = scmp.eq.s32.totalorder %s12, 0
    %p121 = por %p119, %p120
    %p122 = scmp.ne.s32.totalorder %s111, %s114
    %p123 = scmp.eq.s32.totalorder %s17, 1
    %p124 = por %p122, %p123
    %p125 = scmp.ne.s32.totalorder %s114, %s115
    %p126 = scmp.eq.s32.totalorder %s17, 0
    %p127 = por %p125, %p126
    %p128 = scmp.ne.s32.totalorder %s114, %s115
    %p129 = scmp.eq.s32.totalorder %s18, 1
    %p130 = por %p128, %p129
    %p132 = scmp.ne.s32.totalorder %s115, %s131
    %p133 = scmp.eq.s32.totalorder %s18, 0
    %p134 = por %p132, %p133
    %s135 = ssub.s32 %s12, %s19
    %p136 = scmp.eq.s32.totalorder %s135, 0
    %s138 = sadd.s32 %s137, 1
    %s139 = scalar_select %p136, %s137, %s138
    %p142 = pneg %p136
    %p143 = scmp.eq.s32.totalorder %s12, 1
    %p144 = por %p142, %p143
    %p145 = scmp.ne.s32.totalorder %s137, %s140
    %p146 = scmp.eq.s32.totalorder %s12, 0
    %p147 = por %p145, %p146
    %p148 = scmp.ne.s32.totalorder %s137, %s140
    %p149 = scmp.eq.s32.totalorder %s17, 1
    %p150 = por %p148, %p149
    %p151 = scmp.ne.s32.totalorder %s140, %s141
    %p152 = scmp.eq.s32.totalorder %s17, 0
    %p153 = por %p151, %p152
    %p154 = scmp.ne.s32.totalorder %s140, %s141
    %p155 = scmp.eq.s32.totalorder %s18, 1
    %p156 = por %p154, %p155
    %p158 = scmp.ne.s32.totalorder %s141, %s157
    %p159 = scmp.eq.s32.totalorder %s18, 0
    %p160 = por %p158, %p159
    %p161 = scmp.le.s32.totalorder 1, %s12
    %p162 = scmp.lt.s32.totalorder %s12, 3
    %p163 = pnand %p161, %p162
    %p164 = pneg %p163
    // Predicated region
    $region9: #{_lambda_.21} parent=5 // pred_check
      _
    $region10: #{_lambda_.21} parent=5 // pred_check_branch
      %166 = sbr.rel (%p163) target = $region12
    $region11: #{_lambda_.21} parent=5 // pred_region
      %s167 = ssub.s32 %s12, 1
      // Predicated region
      $region13: #{_lambda_.21} parent=11 // pred_check
        %p168 = pneg %p59
      $region14: #{_lambda_.21} parent=11 // pred_check_branch
        %170 = sbr.rel (%p168) target = $region16
      $region15: #{_lambda_.21} parent=11 // pred_region
        _
      $region16: #{_lambda_.21} parent=11 // pred_fallthru
        _
      // Predicated region
      $region17: #{_lambda_.21} parent=11 // pred_check
        %p171 = pneg %p80
      $region18: #{_lambda_.21} parent=11 // pred_check_branch
        %173 = sbr.rel (%p171) target = $region20
      $region19: #{_lambda_.21} parent=11 // pred_region
        _
      $region20: #{_lambda_.21} parent=11 // pred_fallthru
        _
      // Predicated region
      $region21: #{_lambda_.21} parent=11 // pred_check
        %p174 = pneg %p101
      $region22: #{_lambda_.21} parent=11 // pred_check_branch
        %176 = sbr.rel (%p174) target = $region24
      $region23: #{_lambda_.21} parent=11 // pred_region
        _
      $region24: #{_lambda_.21} parent=11 // pred_fallthru
        _
    $region12: #{_lambda_.21} parent=5 // pred_fallthru
      _
    %p177 = scmp.lt.s32.totalorder %s12, 2
    // Predicated region
    $region25: #{_lambda_.21} parent=5 // pred_check
      %p178 = pneg %p177
    $region26: #{_lambda_.21} parent=5 // pred_check_branch
      %180 = sbr.rel (%p178) target = $region28
    $region27: #{_lambda_.21} parent=5 // pred_region
      // Predicated region
      $region29: #{_lambda_.21} parent=27 // pred_check
        %p181 = pneg %p32
      $region30: #{_lambda_.21} parent=27 // pred_check_branch
        %183 = sbr.rel (%p181) target = $region32
      $region31: #{_lambda_.21} parent=27 // pred_region
        %p184 = scmp.lt.s32.totalorder %s12, 1
        %s185 = scalar_select %p184, %s12, 1
        %s186 = smul.addr %s185, 2
        %s187 = smul.addr %s186, 8
        %s188 = scalar_lea.vmem %s0, %s187
      $region32: #{_lambda_.21} parent=27 // pred_fallthru
        _
    $region28: #{_lambda_.21} parent=5 // pred_fallthru
      _
    %p189 = scmp.le.s32.totalorder 1, %s12
    %p190 = scmp.lt.s32.totalorder %s12, 3
    %p191 = pnand %p189, %p190
    %p192 = pneg %p191
    // Predicated region
    $region33: #{_lambda_.21} parent=5 // pred_check
      _
    $region34: #{_lambda_.21} parent=5 // pred_check_branch
      %194 = sbr.rel (%p191) target = $region36
    $region35: #{_lambda_.21} parent=5 // pred_region
      %s195 = ssub.s32 %s12, 1
      %p196 = scmp.lt.s32.totalorder %s17, 1
      %s197 = scalar_select %p196, %s17, 1
      %s198 = smul.addr %s197, 2
      %s199 = smul.addr %s198, 8
      %s200 = scalar_lea.vmem %s0, %s199
      %p201 = pneg %p38
      %p202 = pneg %p35
      %p203 = pneg %p59
      %p204 = pneg %p56
      %p205 = pneg %p80
      %p206 = pneg %p77
      %p207 = pneg %p101
      %p208 = pneg %p98
      %p209 = pneg %p127
      %p210 = pneg %p124
      %p211 = scmp.lt.s32.totalorder %s17, 1
      %s212 = scalar_select %p211, %s17, 1
      %s213 = smul.addr %s212, 2
      %s214 = smul.addr %s213, 8
      %s215 = scalar_lea.vmem %s4, %s214
      %p216 = pneg %p153
      %p217 = pneg %p150
      %p218 = scmp.lt.s32.totalorder %s17, 1
      %s219 = scalar_select %p218, %s17, 1
      %s220 = smul.addr %s219, 2
      %s221 = smul.addr %s220, 8
      %s222 = scalar_lea.vmem %s5, %s221
      %p223 = scmp.lt.s32.totalorder %s17, 1
      %s224 = scalar_select %p223, %s17, 1
      %s225 = smul.addr %s224, 2
      %s226 = smul.addr %s225, 8
      %s227 = scalar_lea.vmem %s0, %s226
      %p228 = scmp.lt.s32.totalorder %s17, 1
      %s229 = scalar_select %p228, %s17, 1
      %s230 = smul.addr %s229, 2
      %s231 = smul.addr %s230, 8
      %s232 = scalar_lea.vmem %s4, %s231
      %p233 = scmp.lt.s32.totalorder %s17, 1
      %s234 = scalar_select %p233, %s17, 1
      %s235 = smul.addr %s234, 2
      %s236 = smul.addr %s235, 8
      %s237 = scalar_lea.vmem %s5, %s236
      %v238 = vld [vmem:[%s227] sm:$0xff]
      %v239 = vld [vmem:[%s227 + $0x8] sm:$0xff]
      %v240 = vld [vmem:[%s1] sm:$0xff]
      %v241 = vld [vmem:[%s1 + $0x8] sm:$0xff]
      %v242 = vld [vmem:[%s1 + $0x10] sm:$0xff]
      %v243 = vld [vmem:[%s1 + $0x18] sm:$0xff]
      %vm244 = vcmask 261120
      %v246 = vsel %vm244, %v238, 0
      %v249 = vsel %vm244, %v239, 0
      %251 = vmatprep.subr.mxu0 0.0
      %252 = vmatpush1.msra.mxu0 0.0
      %253 = vmatprep.subr.mxu0 0.0
      %254 = vmatpush1.msra.mxu0 0.0
      %255 = vmatprep.subr.mxu0 0.0
      %256 = vmatpush1.msra.mxu0 0.0
      %257 = vmatprep.subr.mxu0 0.0
      %258 = vmatpush1.msra.mxu0 0.0
      %259 = vmatprep.subr.mxu0 0.0
      %260 = vmatpush1.msra.mxu0 0.0
      %261 = vmatprep.subr.mxu0 0.0
      %262 = vmatpush1.msra.mxu0 0.0
      %263 = vmatprep.subr.mxu0 0.0
      %264 = vmatpush1.msra.mxu0 0.0
      %265 = vmatprep.subr.mxu0 0.0
      %266 = vmatpush1.msra.mxu0 0.0
      %267 = vmatprep.subr.mxu0 0.0
      %268 = vmatpush1.msra.mxu0 0.0
      %269 = vmatprep.subr.mxu0 0.0
      %270 = vmatpush1.msra.mxu0 0.0
      %271 = vmatprep.subr.mxu0 0.0
      %272 = vmatpush1.msra.mxu0 0.0
      %273 = vmatprep.subr.mxu0 0.0
      %274 = vmatpush1.msra.mxu0 0.0
      %275 = vmatprep.subr.mxu0 0.0
      %276 = vmatpush1.msra.mxu0 %v243
      %277 = vmatprep.subr.mxu0 0.0
      %278 = vmatpush1.msra.mxu0 %v242
      %279 = vmatprep.subr.mxu0 0.0
      %280 = vmatpush1.msra.mxu0 %v241
      %281 = vmatprep.subr.mxu0 0.0
      %282 = vmatpush1.msra.mxu0 %v240
      %283 = vmatprep.subr.mxu0 0.0
      %284 = vmatpush2.msra.mxu0 0.0
      %285 = vmatprep.subr.mxu0 0.0
      %286 = vmatpush2.msra.mxu0 0.0
      %287 = vmatprep.subr.mxu0 0.0
      %288 = vmatpush2.msra.mxu0 0.0
      %289 = vmatprep.subr.mxu0 0.0
      %290 = vmatpush2.msra.mxu0 0.0
      %291 = vmatprep.subr.mxu0 0.0
      %292 = vmatpush2.msra.mxu0 0.0
      %293 = vmatprep.subr.mxu0 0.0
      %294 = vmatpush2.msra.mxu0 0.0
      %295 = vmatprep.subr.mxu0 0.0
      %296 = vmatpush2.msra.mxu0 0.0
      %297 = vmatprep.subr.mxu0 0.0
      %298 = vmatpush2.msra.mxu0 0.0
      %299 = vmatprep.subr.mxu0 0.0
      %300 = vmatpush2.msra.mxu0 0.0
      %301 = vmatprep.subr.mxu0 0.0
      %302 = vmatpush2.msra.mxu0 0.0
      %303 = vmatprep.subr.mxu0 0.0
      %304 = vmatpush2.msra.mxu0 0.0
      %305 = vmatprep.subr.mxu0 0.0
      %306 = vmatpush2.msra.mxu0 0.0
      %307 = vmatprep.subr.mxu0 0.0
      %308 = vmatpush2.msra.mxu0 0.0
      %309 = vmatprep.subr.mxu0 0.0
      %310 = vmatpush2.msra.mxu0 0.0
      %311 = vmatprep.subr.mxu0 0.0
      %312 = vmatpush2.msra.mxu0 0.0
      %313 = vmatprep.subr.mxu0 0.0
      %314 = vmatpush2.msra.mxu0 0.0
      %315 = vmatprep.mubr.f32.mxu0 0.0
      %316 = vmatmul.mubr.f32.gmra.mxu0 %v246
      %v317 = vpop.f32.mrf.mxu0
      %v318 = vadd.f32 0.0, %v317
      %v319 = vpop.f32.mrf.mxu0
      %320 = vmatprep.mubr.f32.mxu0 0.0
      %321 = vmatmul.mubr.f32.gmra.mxu0 %v249
      %v322 = vpop.f32.mrf.mxu0
      %v323 = vadd.f32 0.0, %v322
      %v324 = vpop.f32.mrf.mxu0
      %325 = vdwg.mxu0
      %v326 = vmax.f32 %v318, 0.0
      %v327 = vmax.f32 %v323, 0.0
      %v328 = vld [vmem:[%s2] sm:$0xff]
      %v329 = vld [vmem:[%s2 + $0x8] sm:$0xff]
      %v330 = vld [vmem:[%s2 + $0x10] sm:$0xff]
      %v331 = vld [vmem:[%s2 + $0x18] sm:$0xff]
      %v332 = vld [vmem:[%s2 + $0x20] sm:$0xff]
      %v333 = vld [vmem:[%s2 + $0x28] sm:$0xff]
      %v334 = vld [vmem:[%s2 + $0x30] sm:$0xff]
      %v335 = vld [vmem:[%s2 + $0x38] sm:$0xff]
      %vm336 = vcmask 523264
      %v338 = vsel %vm336, %v326, 0
      %v341 = vsel %vm336, %v327, 0
      %343 = vmatprep.subr.mxu0 0.0
      %344 = vmatpush1.msra.mxu0 0.0
      %345 = vmatprep.subr.mxu0 0.0
      %346 = vmatpush1.msra.mxu0 0.0
      %347 = vmatprep.subr.mxu0 0.0
      %348 = vmatpush1.msra.mxu0 0.0
      %349 = vmatprep.subr.mxu0 0.0
      %350 = vmatpush1.msra.mxu0 0.0
      %351 = vmatprep.subr.mxu0 0.0
      %352 = vmatpush1.msra.mxu0 0.0
      %353 = vmatprep.subr.mxu0 0.0
      %354 = vmatpush1.msra.mxu0 0.0
      %355 = vmatprep.subr.mxu0 0.0
      %356 = vmatpush1.msra.mxu0 0.0
      %357 = vmatprep.subr.mxu0 0.0
      %358 = vmatpush1.msra.mxu0 0.0
      %359 = vmatprep.subr.mxu0 0.0
      %360 = vmatpush1.msra.mxu0 %v335
      %361 = vmatprep.subr.mxu0 0.0
      %362 = vmatpush1.msra.mxu0 %v334
      %363 = vmatprep.subr.mxu0 0.0
      %364 = vmatpush1.msra.mxu0 %v333
      %365 = vmatprep.subr.mxu0 0.0
      %366 = vmatpush1.msra.mxu0 %v332
      %367 = vmatprep.subr.mxu0 0.0
      %368 = vmatpush1.msra.mxu0 %v331
      %369 = vmatprep.subr.mxu0 0.0
      %370 = vmatpush1.msra.mxu0 %v330
      %371 = vmatprep.subr.mxu0 0.0
      %372 = vmatpush1.msra.mxu0 %v329
      %373 = vmatprep.subr.mxu0 0.0
      %374 = vmatpush1.msra.mxu0 %v328
      %375 = vmatprep.subr.mxu0 0.0
      %376 = vmatpush2.msra.mxu0 0.0
      %377 = vmatprep.subr.mxu0 0.0
      %378 = vmatpush2.msra.mxu0 0.0
      %379 = vmatprep.subr.mxu0 0.0
      %380 = vmatpush2.msra.mxu0 0.0
      %381 = vmatprep.subr.mxu0 0.0
      %382 = vmatpush2.msra.mxu0 0.0
      %383 = vmatprep.subr.mxu0 0.0
      %384 = vmatpush2.msra.mxu0 0.0
      %385 = vmatprep.subr.mxu0 0.0
      %386 = vmatpush2.msra.mxu0 0.0
      %387 = vmatprep.subr.mxu0 0.0
      %388 = vmatpush2.msra.mxu0 0.0
      %389 = vmatprep.subr.mxu0 0.0
      %390 = vmatpush2.msra.mxu0 0.0
      %391 = vmatprep.subr.mxu0 0.0
      %392 = vmatpush2.msra.mxu0 0.0
      %393 = vmatprep.subr.mxu0 0.0
      %394 = vmatpush2.msra.mxu0 0.0
      %395 = vmatprep.subr.mxu0 0.0
      %396 = vmatpush2.msra.mxu0 0.0
      %397 = vmatprep.subr.mxu0 0.0
      %398 = vmatpush2.msra.mxu0 0.0
      %399 = vmatprep.subr.mxu0 0.0
      %400 = vmatpush2.msra.mxu0 0.0
      %401 = vmatprep.subr.mxu0 0.0
      %402 = vmatpush2.msra.mxu0 0.0
      %403 = vmatprep.subr.mxu0 0.0
      %404 = vmatpush2.msra.mxu0 0.0
      %405 = vmatprep.subr.mxu0 0.0
      %406 = vmatpush2.msra.mxu0 0.0
      %407 = vmatprep.mubr.f32.mxu0 0.0
      %408 = vmatmul.mubr.f32.gmra.mxu0 %v338
      %v409 = vpop.f32.mrf.mxu0
      %v410 = vadd.f32 0.0, %v409
      %v411 = vpop.f32.mrf.mxu0
      %412 = vmatprep.mubr.f32.mxu0 0.0
      %413 = vmatmul.mubr.f32.gmra.mxu0 %v341
      %v414 = vpop.f32.mrf.mxu0
      %v415 = vadd.f32 0.0, %v414
      %v416 = vpop.f32.mrf.mxu0
      %417 = vdwg.mxu0
      %v418 = vadd.f32 %v238, %v410
      %v419 = vadd.f32 %v239, %v415
      %v420 = vld [vmem:[%s3] sm:$0xff]
      %v421 = vld [vmem:[%s3 + $0x8] sm:$0xff]
      %vm422 = vcmask 130048
      %v424 = vsel %vm422, %v420, 0
      %v427 = vsel %vm422, %v421, 0
      %429 = vmatprep.subr.mxu0 0.0
      %430 = vmatpush1.msra.mxu0 0.0
      %431 = vmatprep.subr.mxu0 0.0
      %432 = vmatpush1.msra.mxu0 0.0
      %433 = vmatprep.subr.mxu0 0.0
      %434 = vmatpush1.msra.mxu0 0.0
      %435 = vmatprep.subr.mxu0 0.0
      %436 = vmatpush1.msra.mxu0 0.0
      %437 = vmatprep.subr.mxu0 0.0
      %438 = vmatpush1.msra.mxu0 0.0
      %439 = vmatprep.subr.mxu0 0.0
      %440 = vmatpush1.msra.mxu0 0.0
      %441 = vmatprep.subr.mxu0 0.0
      %442 = vmatpush1.msra.mxu0 0.0
      %443 = vmatprep.subr.mxu0 0.0
      %444 = vmatpush1.msra.mxu0 0.0
      %445 = vmatprep.subr.mxu0 0.0
      %446 = vmatpush1.msra.mxu0 0.0
      %447 = vmatprep.subr.mxu0 0.0
      %448 = vmatpush1.msra.mxu0 0.0
      %449 = vmatprep.subr.mxu0 0.0
      %450 = vmatpush1.msra.mxu0 0.0
      %451 = vmatprep.subr.mxu0 0.0
      %452 = vmatpush1.msra.mxu0 0.0
      %453 = vmatprep.subr.mxu0 0.0
      %454 = vmatpush1.msra.mxu0 0.0
      %455 = vmatprep.subr.mxu0 0.0
      %456 = vmatpush1.msra.mxu0 0.0
      %457 = vmatprep.subr.mxu0 0.0
      %458 = vmatpush1.msra.mxu0 %v419
      %459 = vmatprep.subr.mxu0 0.0
      %460 = vmatpush1.msra.mxu0 %v418
      %461 = vmatprep.subr.mxu0 0.0
      %462 = vmatpush2.msra.mxu0 0.0
      %463 = vmatprep.subr.mxu0 0.0
      %464 = vmatpush2.msra.mxu0 0.0
      %465 = vmatprep.subr.mxu0 0.0
      %466 = vmatpush2.msra.mxu0 0.0
      %467 = vmatprep.subr.mxu0 0.0
      %468 = vmatpush2.msra.mxu0 0.0
      %469 = vmatprep.subr.mxu0 0.0
      %470 = vmatpush2.msra.mxu0 0.0
      %471 = vmatprep.subr.mxu0 0.0
      %472 = vmatpush2.msra.mxu0 0.0
      %473 = vmatprep.subr.mxu0 0.0
      %474 = vmatpush2.msra.mxu0 0.0
      %475 = vmatprep.subr.mxu0 0.0
      %476 = vmatpush2.msra.mxu0 0.0
      %477 = vmatprep.subr.mxu0 0.0
      %478 = vmatpush2.msra.mxu0 0.0
      %479 = vmatprep.subr.mxu0 0.0
      %480 = vmatpush2.msra.mxu0 0.0
      %481 = vmatprep.subr.mxu0 0.0
      %482 = vmatpush2.msra.mxu0 0.0
      %483 = vmatprep.subr.mxu0 0.0
      %484 = vmatpush2.msra.mxu0 0.0
      %485 = vmatprep.subr.mxu0 0.0
      %486 = vmatpush2.msra.mxu0 0.0
      %487 = vmatprep.subr.mxu0 0.0
      %488 = vmatpush2.msra.mxu0 0.0
      %489 = vmatprep.subr.mxu0 0.0
      %490 = vmatpush2.msra.mxu0 0.0
      %491 = vmatprep.subr.mxu0 0.0
      %492 = vmatpush2.msra.mxu0 0.0
      %493 = vmatprep.mubr.f32.mxu0 0.0
      %494 = vmatmul.mubr.f32.gmra.mxu0 %v424
      %v495 = vpop.f32.mrf.mxu0
      %v496 = vadd.f32 0.0, %v495
      %v497 = vpop.f32.mrf.mxu0
      %498 = vmatprep.mubr.f32.mxu0 0.0
      %499 = vmatmul.mubr.f32.gmra.mxu0 %v427
      %v500 = vpop.f32.mrf.mxu0
      %v501 = vadd.f32 0.0, %v500
      %v502 = vpop.f32.mrf.mxu0
      %503 = vdwg.mxu0
      %504 = vst.msk [vmem:[%s237] sm:$0xff] %vm244, %v496
      %505 = vst.msk [vmem:[%s237 + $0x8] sm:$0xff] %vm244, %v501
      %v506 = vsub.f32 %v418, %v496
      %v507 = vsub.f32 %v419, %v501
      %508 = vst.msk [vmem:[%s232] sm:$0xff] %vm244, %v506
      %509 = vst.msk [vmem:[%s232 + $0x8] sm:$0xff] %vm244, %v507
      %p510 = scmp.lt.s32.totalorder %s17, 1
      %s511 = scalar_select %p510, %s17, 1
      %s512 = smul.addr %s511, 2
      %s513 = smul.addr %s512, 8
      %s514 = scalar_lea.vmem %s4, %s513
      %p515 = scmp.lt.s32.totalorder %s17, 1
      %s516 = scalar_select %p515, %s17, 1
      %s517 = smul.addr %s516, 2
      %s518 = smul.addr %s517, 8
      %s519 = scalar_lea.vmem %s5, %s518
      // Predicated region
      $region37: #{_lambda_.21} parent=35 // pred_check
        %p520 = pneg %p124
      $region38: #{_lambda_.21} parent=35 // pred_check_branch
        %522 = sbr.rel (%p520) target = $region40
      $region39: #{_lambda_.21} parent=35 // pred_region
        _
      $region40: #{_lambda_.21} parent=35 // pred_fallthru
        _
      // Predicated region
      $region41: #{_lambda_.21} parent=35 // pred_check
        %p523 = pneg %p150
      $region42: #{_lambda_.21} parent=35 // pred_check_branch
        %525 = sbr.rel (%p523) target = $region44
      $region43: #{_lambda_.21} parent=35 // pred_region
        _
      $region44: #{_lambda_.21} parent=35 // pred_fallthru
        _
    $region36: #{_lambda_.21} parent=5 // pred_fallthru
      _
    %p526 = scmp.le.s32.totalorder 2, %s12
    // Predicated region
    $region45: #{_lambda_.21} parent=5 // pred_check
      %p527 = pneg %p526
    $region46: #{_lambda_.21} parent=5 // pred_check_branch
      %529 = sbr.rel (%p527) target = $region48
    $region47: #{_lambda_.21} parent=5 // pred_region
      %s530 = ssub.s32 %s12, 2
      // Predicated region
      $region49: #{_lambda_.21} parent=47 // pred_check
        %p531 = pneg %p130
      $region50: #{_lambda_.21} parent=47 // pred_check_branch
        %533 = sbr.rel (%p531) target = $region52
      $region51: #{_lambda_.21} parent=47 // pred_region
        %p534 = scmp.lt.s32.totalorder %s18, 1
        %s535 = scalar_select %p534, %s18, 1
        %s536 = smul.addr %s535, 2
        %s537 = smul.addr %s536, 8
        %s538 = scalar_lea.vmem %s4, %s537
      $region52: #{_lambda_.21} parent=47 // pred_fallthru
        _
      // Predicated region
      $region53: #{_lambda_.21} parent=47 // pred_check
        %p539 = pneg %p156
      $region54: #{_lambda_.21} parent=47 // pred_check_branch
        %541 = sbr.rel (%p539) target = $region56
      $region55: #{_lambda_.21} parent=47 // pred_region
        %p542 = scmp.lt.s32.totalorder %s18, 1
        %s543 = scalar_select %p542, %s18, 1
        %s544 = smul.addr %s543, 2
        %s545 = smul.addr %s544, 8
        %s546 = scalar_lea.vmem %s5, %s545
      $region56: #{_lambda_.21} parent=47 // pred_fallthru
        _
    $region48: #{_lambda_.21} parent=5 // pred_fallthru
      _
  $region6: #{_lambda_.21} parent=0 // loop_footer
    %s16 = sadd.s32 1, %s12
  $region7: #{_lambda_.21} parent=0 // loop_footer_branch
    %11 = sbr.rel target = $region3
  $region8: #{_lambda_.21} parent=0 // loop_exit
    _

// kernel: _lambda_.28
$region0: #{_lambda_.28}
  #allocation0 [shape = 'u32[]', space=smem, size = 0x4, offset = 0x4, fixed_abs, tag = 'smem constant byte address 0x4 - core index']
  #allocation1 [shape = 'u32[144,128]{1,0:T(1,128)}', space=vmem, size = 0x12000, scoped, tag = 'internal scratch']
  %s0 = inlined_call_operand.vmem [shape: f32[2,16,32], index: 0, kind: input, shape index: {}]
  %s1 = inlined_call_operand.vmem [shape: f32[2,16,32], index: 1, kind: input, shape index: {}]
  %s2 = inlined_call_operand.vmem [shape: f32[2,16,32], index: 2, kind: input, shape index: {}]
  %s3 = inlined_call_operand.vmem [shape: f32[2,16,8], index: 3, kind: input, shape index: {}, may-alias: {3,7}]
  %s4 = inlined_call_operand.vmem [shape: f32[32,8], index: 4, kind: input, shape index: {}]
  %s5 = inlined_call_operand.vmem [shape: f32[32,8], index: 5, kind: input, shape index: {}]
  %s6 = inlined_call_operand.vmem [shape: f32[32,8], index: 6, kind: input, shape index: {}]
  %s7 = inlined_call_operand.vmem [shape: f32[2,16,8], index: 7, kind: output, shape index: {}, may-alias: {3,7}]
  %s8 = sld [smem:[#allocation0]]
  $region61: #{_lambda_.28} parent=0
    _
  %s10 = ssub.s32 1, %s8
  %s11 = scalar_select 0, %s10, %s8
  loop: start=0, step=1, limit=4
  $region2: #{_lambda_.28} parent=0 // loop_pre_header
    _
  $region3: #{_lambda_.28} parent=0 // loop_header
    %s13 = sphi 0, %s17
    %p14 = scmp.ge.s32.totalorder %s13, 4
    %s23 = sphi 0, %s25
    %s26 = sphi 0, %s23
    %s27 = sphi 0, %s26
    %s43 = sphi 0, %s27
    %s49 = sphi 0, %s51
    %s52 = sphi 0, %s49
    %s53 = sphi 0, %s52
    %s69 = sphi 0, %s53
    %s75 = sphi 0, %s77
    %s78 = sphi 0, %s75
    %s79 = sphi 0, %s78
    %s95 = sphi 0, %s79
    %s101 = sphi 0, %s103
    %s104 = sphi 0, %s101
    %s105 = sphi 0, %s104
    %s121 = sphi 0, %s105
    %s125 = sphi 0, %s125
    %s127 = sphi 0, %s125
    %s128 = sphi 0, %s127
    %s142 = sphi 0, %s128
    %s146 = sphi 0, %s146
    %s148 = sphi 0, %s146
    %s149 = sphi 0, %s148
    %s163 = sphi 0, %s149
    %s167 = sphi 0, %s167
    %s169 = sphi 0, %s167
    %s170 = sphi 0, %s169
    %s184 = sphi 0, %s170
    %s190 = sphi 0, %s192
    %s193 = sphi 0, %s190
    %s194 = sphi 0, %s193
    %s210 = sphi 0, %s194
  $region4: #{_lambda_.28} parent=0 // loop_header_branch
    %16 = sbr.rel (%p14) target = $region8
  $region5: #{_lambda_.28} parent=0 // loop_body
    %s18 = ssub.s32 %s13, 1
    %s19 = ssub.s32 %s13, 2
    %s20 = sadd.s32 %s13, 1
    %s21 = ssub.s32 %s13, %s20
    %p22 = scmp.eq.s32.totalorder %s21, 0
    %s24 = sadd.s32 %s23, 1
    %s25 = scalar_select %p22, %s23, %s24
    %p28 = pneg %p22
    %p29 = scmp.eq.s32.totalorder %s13, 1
    %p30 = por %p28, %p29
    %p31 = scmp.ne.s32.totalorder %s23, %s26
    %p32 = scmp.eq.s32.totalorder %s13, 0
    %p33 = por %p31, %p32
    %p34 = scmp.ne.s32.totalorder %s23, %s26
    %p35 = scmp.eq.s32.totalorder %s18, 1
    %p36 = por %p34, %p35
    %p37 = scmp.ne.s32.totalorder %s26, %s27
    %p38 = scmp.eq.s32.totalorder %s18, 0
    %p39 = por %p37, %p38
    %p40 = scmp.ne.s32.totalorder %s26, %s27
    %p41 = scmp.eq.s32.totalorder %s19, 1
    %p42 = por %p40, %p41
    %p44 = scmp.ne.s32.totalorder %s27, %s43
    %p45 = scmp.eq.s32.totalorder %s19, 0
    %p46 = por %p44, %p45
    %s47 = ssub.s32 %s13, %s20
    %p48 = scmp.eq.s32.totalorder %s47, 0
    %s50 = sadd.s32 %s49, 1
    %s51 = scalar_select %p48, %s49, %s50
    %p54 = pneg %p48
    %p55 = scmp.eq.s32.totalorder %s13, 1
    %p56 = por %p54, %p55
    %p57 = scmp.ne.s32.totalorder %s49, %s52
    %p58 = scmp.eq.s32.totalorder %s13, 0
    %p59 = por %p57, %p58
    %p60 = scmp.ne.s32.totalorder %s49, %s52
    %p61 = scmp.eq.s32.totalorder %s18, 1
    %p62 = por %p60, %p61
    %p63 = scmp.ne.s32.totalorder %s52, %s53
    %p64 = scmp.eq.s32.totalorder %s18, 0
    %p65 = por %p63, %p64
    %p66 = scmp.ne.s32.totalorder %s52, %s53
    %p67 = scmp.eq.s32.totalorder %s19, 1
    %p68 = por %p66, %p67
    %p70 = scmp.ne.s32.totalorder %s53, %s69
    %p71 = scmp.eq.s32.totalorder %s19, 0
    %p72 = por %p70, %p71
    %s73 = ssub.s32 %s13, %s20
    %p74 = scmp.eq.s32.totalorder %s73, 0
    %s76 = sadd.s32 %s75, 1
    %s77 = scalar_select %p74, %s75, %s76
    %p80 = pneg %p74
    %p81 = scmp.eq.s32.totalorder %s13, 1
    %p82 = por %p80, %p81
    %p83 = scmp.ne.s32.totalorder %s75, %s78
    %p84 = scmp.eq.s32.totalorder %s13, 0
    %p85 = por %p83, %p84
    %p86 = scmp.ne.s32.totalorder %s75, %s78
    %p87 = scmp.eq.s32.totalorder %s18, 1
    %p88 = por %p86, %p87
    %p89 = scmp.ne.s32.totalorder %s78, %s79
    %p90 = scmp.eq.s32.totalorder %s18, 0
    %p91 = por %p89, %p90
    %p92 = scmp.ne.s32.totalorder %s78, %s79
    %p93 = scmp.eq.s32.totalorder %s19, 1
    %p94 = por %p92, %p93
    %p96 = scmp.ne.s32.totalorder %s79, %s95
    %p97 = scmp.eq.s32.totalorder %s19, 0
    %p98 = por %p96, %p97
    %s99 = ssub.s32 %s13, %s20
    %p100 = scmp.eq.s32.totalorder %s99, 0
    %s102 = sadd.s32 %s101, 1
    %s103 = scalar_select %p100, %s101, %s102
    %p106 = pneg %p100
    %p107 = scmp.eq.s32.totalorder %s13, 1
    %p108 = por %p106, %p107
    %p109 = scmp.ne.s32.totalorder %s101, %s104
    %p110 = scmp.eq.s32.totalorder %s13, 0
    %p111 = por %p109, %p110
    %p112 = scmp.ne.s32.totalorder %s101, %s104
    %p113 = scmp.eq.s32.totalorder %s18, 1
    %p114 = por %p112, %p113
    %p115 = scmp.ne.s32.totalorder %s104, %s105
    %p116 = scmp.eq.s32.totalorder %s18, 0
    %p117 = por %p115, %p116
    %p118 = scmp.ne.s32.totalorder %s104, %s105
    %p119 = scmp.eq.s32.totalorder %s19, 1
    %p120 = por %p118, %p119
    %p122 = scmp.ne.s32.totalorder %s105, %s121
    %p123 = scmp.eq.s32.totalorder %s19, 0
    %p124 = por %p122, %p123
    %s126 = sadd.s32 %s125, 1
    %p129 = scmp.eq.s32.totalorder %s13, 1
    %p130 = scmp.ne.s32.totalorder %s125, %s127
    %p131 = scmp.eq.s32.totalorder %s13, 0
    %p132 = por %p130, %p131
    %p133 = scmp.ne.s32.totalorder %s125, %s127
    %p134 = scmp.eq.s32.totalorder %s18, 1
    %p135 = por %p133, %p134
    %p136 = scmp.ne.s32.totalorder %s127, %s128
    %p137 = scmp.eq.s32.totalorder %s18, 0
    %p138 = por %p136, %p137
    %p139 = scmp.ne.s32.totalorder %s127, %s128
    %p140 = scmp.eq.s32.totalorder %s19, 1
    %p141 = por %p139, %p140
    %p143 = scmp.ne.s32.totalorder %s128, %s142
    %p144 = scmp.eq.s32.totalorder %s19, 0
    %p145 = por %p143, %p144
    %s147 = sadd.s32 %s146, 1
    %p150 = scmp.eq.s32.totalorder %s13, 1
    %p151 = scmp.ne.s32.totalorder %s146, %s148
    %p152 = scmp.eq.s32.totalorder %s13, 0
    %p153 = por %p151, %p152
    %p154 = scmp.ne.s32.totalorder %s146, %s148
    %p155 = scmp.eq.s32.totalorder %s18, 1
    %p156 = por %p154, %p155
    %p157 = scmp.ne.s32.totalorder %s148, %s149
    %p158 = scmp.eq.s32.totalorder %s18, 0
    %p159 = por %p157, %p158
    %p160 = scmp.ne.s32.totalorder %s148, %s149
    %p161 = scmp.eq.s32.totalorder %s19, 1
    %p162 = por %p160, %p161
    %p164 = scmp.ne.s32.totalorder %s149, %s163
    %p165 = scmp.eq.s32.totalorder %s19, 0
    %p166 = por %p164, %p165
    %s168 = sadd.s32 %s167, 1
    %p171 = scmp.eq.s32.totalorder %s13, 1
    %p172 = scmp.ne.s32.totalorder %s167, %s169
    %p173 = scmp.eq.s32.totalorder %s13, 0
    %p174 = por %p172, %p173
    %p175 = scmp.ne.s32.totalorder %s167, %s169
    %p176 = scmp.eq.s32.totalorder %s18, 1
    %p177 = por %p175, %p176
    %p178 = scmp.ne.s32.totalorder %s169, %s170
    %p179 = scmp.eq.s32.totalorder %s18, 0
    %p180 = por %p178, %p179
    %p181 = scmp.ne.s32.totalorder %s169, %s170
    %p182 = scmp.eq.s32.totalorder %s19, 1
    %p183 = por %p181, %p182
    %p185 = scmp.ne.s32.totalorder %s170, %s184
    %p186 = scmp.eq.s32.totalorder %s19, 0
    %p187 = por %p185, %p186
    %s188 = ssub.s32 %s13, %s20
    %p189 = scmp.eq.s32.totalorder %s188, 0
    %s191 = sadd.s32 %s190, 1
    %s192 = scalar_select %p189, %s190, %s191
    %p195 = pneg %p189
    %p196 = scmp.eq.s32.totalorder %s13, 1
    %p197 = por %p195, %p196
    %p198 = scmp.ne.s32.totalorder %s190, %s193
    %p199 = scmp.eq.s32.totalorder %s13, 0
    %p200 = por %p198, %p199
    %p201 = scmp.ne.s32.totalorder %s190, %s193
    %p202 = scmp.eq.s32.totalorder %s18, 1
    %p203 = por %p201, %p202
    %p204 = scmp.ne.s32.totalorder %s193, %s194
    %p205 = scmp.eq.s32.totalorder %s18, 0
    %p206 = por %p204, %p205
    %p207 = scmp.ne.s32.totalorder %s193, %s194
    %p208 = scmp.eq.s32.totalorder %s19, 1
    %p209 = por %p207, %p208
    %p211 = scmp.ne.s32.totalorder %s194, %s210
    %p212 = scmp.eq.s32.totalorder %s19, 0
    %p213 = por %p211, %p212
    %p214 = scmp.le.s32.totalorder 1, %s13
    %p215 = scmp.lt.s32.totalorder %s13, 3
    %p216 = pnand %p214, %p215
    %p217 = pneg %p216
    // Predicated region
    $region9: #{_lambda_.28} parent=5 // pred_check
      _
    $region10: #{_lambda_.28} parent=5 // pred_check_branch
      %219 = sbr.rel (%p216) target = $region12
    $region11: #{_lambda_.28} parent=5 // pred_region
      %s220 = ssub.s32 %s13, 1
      // Predicated region
      $region13: #{_lambda_.28} parent=11 // pred_check
        %p221 = pneg %p138
      $region14: #{_lambda_.28} parent=11 // pred_check_branch
        %223 = sbr.rel (%p221) target = $region16
      $region15: #{_lambda_.28} parent=11 // pred_region
        _
      $region16: #{_lambda_.28} parent=11 // pred_fallthru
        _
      // Predicated region
      $region17: #{_lambda_.28} parent=11 // pred_check
        %p224 = pneg %p159
      $region18: #{_lambda_.28} parent=11 // pred_check_branch
        %226 = sbr.rel (%p224) target = $region20
      $region19: #{_lambda_.28} parent=11 // pred_region
        _
      $region20: #{_lambda_.28} parent=11 // pred_fallthru
        _
      // Predicated region
      $region21: #{_lambda_.28} parent=11 // pred_check
        %p227 = pneg %p180
      $region22: #{_lambda_.28} parent=11 // pred_check_branch
        %229 = sbr.rel (%p227) target = $region24
      $region23: #{_lambda_.28} parent=11 // pred_region
        _
      $region24: #{_lambda_.28} parent=11 // pred_fallthru
        _
    $region12: #{_lambda_.28} parent=5 // pred_fallthru
      _
    %p230 = scmp.lt.s32.totalorder %s13, 2
    // Predicated region
    $region25: #{_lambda_.28} parent=5 // pred_check
      %p231 = pneg %p230
    $region26: #{_lambda_.28} parent=5 // pred_check_branch
      %233 = sbr.rel (%p231) target = $region28
    $region27: #{_lambda_.28} parent=5 // pred_region
      // Predicated region
      $region29: #{_lambda_.28} parent=27 // pred_check
        %p234 = pneg %p33
      $region30: #{_lambda_.28} parent=27 // pred_check_branch
        %236 = sbr.rel (%p234) target = $region32
      $region31: #{_lambda_.28} parent=27 // pred_region
        %p237 = scmp.lt.s32.totalorder %s13, 1
        %s238 = scalar_select %p237, %s13, 1
        %s239 = smul.addr %s238, 2
        %s240 = smul.addr %s239, 8
        %s241 = scalar_lea.vmem %s0, %s240
      $region32: #{_lambda_.28} parent=27 // pred_fallthru
        _
      // Predicated region
      $region33: #{_lambda_.28} parent=27 // pred_check
        %p242 = pneg %p59
      $region34: #{_lambda_.28} parent=27 // pred_check_branch
        %244 = sbr.rel (%p242) target = $region36
      $region35: #{_lambda_.28} parent=27 // pred_region
        %p245 = scmp.lt.s32.totalorder %s13, 1
        %s246 = scalar_select %p245, %s13, 1
        %s247 = smul.addr %s246, 2
        %s248 = smul.addr %s247, 8
        %s249 = scalar_lea.vmem %s1, %s248
      $region36: #{_lambda_.28} parent=27 // pred_fallthru
        _
      // Predicated region
      $region37: #{_lambda_.28} parent=27 // pred_check
        %p250 = pneg %p85
      $region38: #{_lambda_.28} parent=27 // pred_check_branch
        %252 = sbr.rel (%p250) target = $region40
      $region39: #{_lambda_.28} parent=27 // pred_region
        %p253 = scmp.lt.s32.totalorder %s13, 1
        %s254 = scalar_select %p253, %s13, 1
        %s255 = smul.addr %s254, 2
        %s256 = smul.addr %s255, 8
        %s257 = scalar_lea.vmem %s2, %s256
      $region40: #{_lambda_.28} parent=27 // pred_fallthru
        _
      // Predicated region
      $region41: #{_lambda_.28} parent=27 // pred_check
        %p258 = pneg %p111
      $region42: #{_lambda_.28} parent=27 // pred_check_branch
        %260 = sbr.rel (%p258) target = $region44
      $region43: #{_lambda_.28} parent=27 // pred_region
        %p261 = scmp.lt.s32.totalorder %s13, 1
        %s262 = scalar_select %p261, %s13, 1
        %s263 = smul.addr %s262, 2
        %s264 = smul.addr %s263, 8
        %s265 = scalar_lea.vmem %s3, %s264
      $region44: #{_lambda_.28} parent=27 // pred_fallthru
        _
    $region28: #{_lambda_.28} parent=5 // pred_fallthru
      _
    %p266 = scmp.le.s32.totalorder 1, %s13
    %p267 = scmp.lt.s32.totalorder %s13, 3
    %p268 = pnand %p266, %p267
    %p269 = pneg %p268
    // Predicated region
    $region45: #{_lambda_.28} parent=5 // pred_check
      _
    $region46: #{_lambda_.28} parent=5 // pred_check_branch
      %271 = sbr.rel (%p268) target = $region48
    $region47: #{_lambda_.28} parent=5 // pred_region
      %s272 = ssub.s32 %s13, 1
      %p273 = scmp.lt.s32.totalorder %s18, 1
      %s274 = scalar_select %p273, %s18, 1
      %s275 = smul.addr %s274, 2
      %s276 = smul.addr %s275, 8
      %s277 = scalar_lea.vmem %s0, %s276
      %p278 = pneg %p39
      %p279 = pneg %p36
      %p280 = scmp.lt.s32.totalorder %s18, 1
      %s281 = scalar_select %p280, %s18, 1
      %s282 = smul.addr %s281, 2
      %s283 = smul.addr %s282, 8
      %s284 = scalar_lea.vmem %s1, %s283
      %p285 = pneg %p65
      %p286 = pneg %p62
      %p287 = scmp.lt.s32.totalorder %s18, 1
      %s288 = scalar_select %p287, %s18, 1
      %s289 = smul.addr %s288, 2
      %s290 = smul.addr %s289, 8
      %s291 = scalar_lea.vmem %s2, %s290
      %p292 = pneg %p91
      %p293 = pneg %p88
      %p294 = scmp.lt.s32.totalorder %s18, 1
      %s295 = scalar_select %p294, %s18, 1
      %s296 = smul.addr %s295, 2
      %s297 = smul.addr %s296, 8
      %s298 = scalar_lea.vmem %s3, %s297
      %p299 = pneg %p117
      %p300 = pneg %p114
      %p301 = pneg %p138
      %p302 = pneg %p135
      %p303 = pneg %p159
      %p304 = pneg %p156
      %p305 = pneg %p180
      %p306 = pneg %p177
      %p307 = pneg %p206
      %p308 = pneg %p203
      %p309 = scmp.lt.s32.totalorder %s18, 1
      %s310 = scalar_select %p309, %s18, 1
      %s311 = smul.addr %s310, 2
      %s312 = smul.addr %s311, 8
      %s313 = scalar_lea.vmem %s7, %s312
      %p314 = scmp.lt.s32.totalorder %s18, 1
      %s315 = scalar_select %p314, %s18, 1
      %s316 = smul.addr %s315, 2
      %s317 = smul.addr %s316, 8
      %s318 = scalar_lea.vmem %s0, %s317
      %p319 = scmp.lt.s32.totalorder %s18, 1
      %s320 = scalar_select %p319, %s18, 1
      %s321 = smul.addr %s320, 2
      %s322 = smul.addr %s321, 8
      %s323 = scalar_lea.vmem %s1, %s322
      %p324 = scmp.lt.s32.totalorder %s18, 1
      %s325 = scalar_select %p324, %s18, 1
      %s326 = smul.addr %s325, 2
      %s327 = smul.addr %s326, 8
      %s328 = scalar_lea.vmem %s2, %s327
      %p329 = scmp.lt.s32.totalorder %s18, 1
      %s330 = scalar_select %p329, %s18, 1
      %s331 = smul.addr %s330, 2
      %s332 = smul.addr %s331, 8
      %s333 = scalar_lea.vmem %s3, %s332
      %p334 = scmp.lt.s32.totalorder %s18, 1
      %s335 = scalar_select %p334, %s18, 1
      %s336 = smul.addr %s335, 2
      %s337 = smul.addr %s336, 8
      %s338 = scalar_lea.vmem %s7, %s337
      %v339 = vld [vmem:[%s318] sm:$0xff]
      %v340 = vld [vmem:[%s318 + $0x8] sm:$0xff]
      %v341 = vld [vmem:[%s323] sm:$0xff]
      %v342 = vld [vmem:[%s323 + $0x8] sm:$0xff]
      %v343 = vadd.f32 %v339, %v341
      %v344 = vadd.f32 %v340, %v342
      %v345 = vld [vmem:[%s328] sm:$0xff]
      %v346 = vld [vmem:[%s328 + $0x8] sm:$0xff]
      %v347 = vadd.f32 %v343, %v345
      %v348 = vadd.f32 %v344, %v346
      %v349 = vrot.slane %v347, 7
      %v350 = vrot.slane %v348, 7
      %v351 = vlaneseq
      %v352 = vshrl.u32 %v351, 7
      %vm353 = vcmp.lt.s32.totalorder %v352, 1
      %v354 = vsel %vm353, %v349, %v350
      %v355 = vsel %vm353, %v350, %v349
      %v356 = vrot.slane %v347, 1
      %v357 = vrot.slane %v348, 1
      %vm358 = vcmp.lt.s32.totalorder %v352, 7
      %v359 = vsel %vm358, %v356, %v357
      %v360 = vsel %vm358, %v357, %v356
      %v361 = vld [vmem:[%s333] sm:$0xff]
      %v362 = vld [vmem:[%s333 + $0x8] sm:$0xff]
      %v363 = vld [vmem:[%s4] sm:$0xff]
      %v364 = vld [vmem:[%s4 + $0x8] sm:$0xff]
      %v365 = vld [vmem:[%s4 + $0x10] sm:$0xff]
      %v366 = vld [vmem:[%s4 + $0x18] sm:$0xff]
      %vm367 = vcmask 261120
      %v369 = vsel %vm367, %v355, 0
      %v372 = vsel %vm367, %v354, 0
      %374 = vmatprep.subr.mxu0 0.0
      %375 = vmatpush1.msra.mxu0 0.0
      %376 = vmatprep.subr.mxu0 0.0
      %377 = vmatpush1.msra.mxu0 0.0
      %378 = vmatprep.subr.mxu0 0.0
      %379 = vmatpush1.msra.mxu0 0.0
      %380 = vmatprep.subr.mxu0 0.0
      %381 = vmatpush1.msra.mxu0 0.0
      %382 = vmatprep.subr.mxu0 0.0
      %383 = vmatpush1.msra.mxu0 0.0
      %384 = vmatprep.subr.mxu0 0.0
      %385 = vmatpush1.msra.mxu0 0.0
      %386 = vmatprep.subr.mxu0 0.0
      %387 = vmatpush1.msra.mxu0 0.0
      %388 = vmatprep.subr.mxu0 0.0
      %389 = vmatpush1.msra.mxu0 0.0
      %390 = vmatprep.subr.mxu0 0.0
      %391 = vmatpush1.msra.mxu0 0.0
      %392 = vmatprep.subr.mxu0 0.0
      %393 = vmatpush1.msra.mxu0 0.0
      %394 = vmatprep.subr.mxu0 0.0
      %395 = vmatpush1.msra.mxu0 0.0
      %396 = vmatprep.subr.mxu0 0.0
      %397 = vmatpush1.msra.mxu0 0.0
      %398 = vmatprep.subr.mxu0 0.0
      %399 = vmatpush1.msra.mxu0 %v366
      %400 = vmatprep.subr.mxu0 0.0
      %401 = vmatpush1.msra.mxu0 %v365
      %402 = vmatprep.subr.mxu0 0.0
      %403 = vmatpush1.msra.mxu0 %v364
      %404 = vmatprep.subr.mxu0 0.0
      %405 = vmatpush1.msra.mxu0 %v363
      %406 = vmatprep.subr.mxu0 0.0
      %407 = vmatpush2.msra.mxu0 0.0
      %408 = vmatprep.subr.mxu0 0.0
      %409 = vmatpush2.msra.mxu0 0.0
      %410 = vmatprep.subr.mxu0 0.0
      %411 = vmatpush2.msra.mxu0 0.0
      %412 = vmatprep.subr.mxu0 0.0
      %413 = vmatpush2.msra.mxu0 0.0
      %414 = vmatprep.subr.mxu0 0.0
      %415 = vmatpush2.msra.mxu0 0.0
      %416 = vmatprep.subr.mxu0 0.0
      %417 = vmatpush2.msra.mxu0 0.0
      %418 = vmatprep.subr.mxu0 0.0
      %419 = vmatpush2.msra.mxu0 0.0
      %420 = vmatprep.subr.mxu0 0.0
      %421 = vmatpush2.msra.mxu0 0.0
      %422 = vmatprep.subr.mxu0 0.0
      %423 = vmatpush2.msra.mxu0 0.0
      %424 = vmatprep.subr.mxu0 0.0
      %425 = vmatpush2.msra.mxu0 0.0
      %426 = vmatprep.subr.mxu0 0.0
      %427 = vmatpush2.msra.mxu0 0.0
      %428 = vmatprep.subr.mxu0 0.0
      %429 = vmatpush2.msra.mxu0 0.0
      %430 = vmatprep.subr.mxu0 0.0
      %431 = vmatpush2.msra.mxu0 0.0
      %432 = vmatprep.subr.mxu0 0.0
      %433 = vmatpush2.msra.mxu0 0.0
      %434 = vmatprep.subr.mxu0 0.0
      %435 = vmatpush2.msra.mxu0 0.0
      %436 = vmatprep.subr.mxu0 0.0
      %437 = vmatpush2.msra.mxu0 0.0
      %438 = vmatprep.mubr.f32.mxu0 0.0
      %439 = vmatmul.mubr.f32.gmra.mxu0 %v369
      %v440 = vpop.f32.mrf.mxu0
      %v441 = vadd.f32 0.0, %v440
      %v442 = vpop.f32.mrf.mxu0
      %443 = vmatprep.mubr.f32.mxu0 0.0
      %444 = vmatmul.mubr.f32.gmra.mxu0 %v372
      %v445 = vpop.f32.mrf.mxu0
      %v446 = vadd.f32 0.0, %v445
      %v447 = vpop.f32.mrf.mxu0
      %448 = vdwg.mxu0
      %v449 = vadd.f32 %v361, %v441
      %v450 = vadd.f32 %v362, %v446
      %v451 = vld [vmem:[%s5] sm:$0xff]
      %v452 = vld [vmem:[%s5 + $0x8] sm:$0xff]
      %v453 = vld [vmem:[%s5 + $0x10] sm:$0xff]
      %v454 = vld [vmem:[%s5 + $0x18] sm:$0xff]
      %v456 = vsel %vm367, %v347, 0
      %v459 = vsel %vm367, %v348, 0
      %461 = vmatprep.subr.mxu0 0.0
      %462 = vmatpush1.msra.mxu0 0.0
      %463 = vmatprep.subr.mxu0 0.0
      %464 = vmatpush1.msra.mxu0 0.0
      %465 = vmatprep.subr.mxu0 0.0
      %466 = vmatpush1.msra.mxu0 0.0
      %467 = vmatprep.subr.mxu0 0.0
      %468 = vmatpush1.msra.mxu0 0.0
      %469 = vmatprep.subr.mxu0 0.0
      %470 = vmatpush1.msra.mxu0 0.0
      %471 = vmatprep.subr.mxu0 0.0
      %472 = vmatpush1.msra.mxu0 0.0
      %473 = vmatprep.subr.mxu0 0.0
      %474 = vmatpush1.msra.mxu0 0.0
      %475 = vmatprep.subr.mxu0 0.0
      %476 = vmatpush1.msra.mxu0 0.0
      %477 = vmatprep.subr.mxu0 0.0
      %478 = vmatpush1.msra.mxu0 0.0
      %479 = vmatprep.subr.mxu0 0.0
      %480 = vmatpush1.msra.mxu0 0.0
      %481 = vmatprep.subr.mxu0 0.0
      %482 = vmatpush1.msra.mxu0 0.0
      %483 = vmatprep.subr.mxu0 0.0
      %484 = vmatpush1.msra.mxu0 0.0
      %485 = vmatprep.subr.mxu0 0.0
      %486 = vmatpush1.msra.mxu0 %v454
      %487 = vmatprep.subr.mxu0 0.0
      %488 = vmatpush1.msra.mxu0 %v453
      %489 = vmatprep.subr.mxu0 0.0
      %490 = vmatpush1.msra.mxu0 %v452
      %491 = vmatprep.subr.mxu0 0.0
      %492 = vmatpush1.msra.mxu0 %v451
      %493 = vmatprep.subr.mxu0 0.0
      %494 = vmatpush2.msra.mxu0 0.0
      %495 = vmatprep.subr.mxu0 0.0
      %496 = vmatpush2.msra.mxu0 0.0
      %497 = vmatprep.subr.mxu0 0.0
      %498 = vmatpush2.msra.mxu0 0.0
      %499 = vmatprep.subr.mxu0 0.0
      %500 = vmatpush2.msra.mxu0 0.0
      %501 = vmatprep.subr.mxu0 0.0
      %502 = vmatpush2.msra.mxu0 0.0
      %503 = vmatprep.subr.mxu0 0.0
      %504 = vmatpush2.msra.mxu0 0.0
      %505 = vmatprep.subr.mxu0 0.0
      %506 = vmatpush2.msra.mxu0 0.0
      %507 = vmatprep.subr.mxu0 0.0
      %508 = vmatpush2.msra.mxu0 0.0
      %509 = vmatprep.subr.mxu0 0.0
      %510 = vmatpush2.msra.mxu0 0.0
      %511 = vmatprep.subr.mxu0 0.0
      %512 = vmatpush2.msra.mxu0 0.0
      %513 = vmatprep.subr.mxu0 0.0
      %514 = vmatpush2.msra.mxu0 0.0
      %515 = vmatprep.subr.mxu0 0.0
      %516 = vmatpush2.msra.mxu0 0.0
      %517 = vmatprep.subr.mxu0 0.0
      %518 = vmatpush2.msra.mxu0 0.0
      %519 = vmatprep.subr.mxu0 0.0
      %520 = vmatpush2.msra.mxu0 0.0
      %521 = vmatprep.subr.mxu0 0.0
      %522 = vmatpush2.msra.mxu0 0.0
      %523 = vmatprep.subr.mxu0 0.0
      %524 = vmatpush2.msra.mxu0 0.0
      %525 = vmatprep.mubr.f32.mxu0 0.0
      %526 = vmatmul.mubr.f32.gmra.mxu0 %v456
      %v527 = vpop.f32.mrf.mxu0
      %v528 = vadd.f32 0.0, %v527
      %v529 = vpop.f32.mrf.mxu0
      %530 = vmatprep.mubr.f32.mxu0 0.0
      %531 = vmatmul.mubr.f32.gmra.mxu0 %v459
      %v532 = vpop.f32.mrf.mxu0
      %v533 = vadd.f32 0.0, %v532
      %v534 = vpop.f32.mrf.mxu0
      %535 = vdwg.mxu0
      %v536 = vadd.f32 %v449, %v528
      %v537 = vadd.f32 %v450, %v533
      %v538 = vld [vmem:[%s6] sm:$0xff]
      %v539 = vld [vmem:[%s6 + $0x8] sm:$0xff]
      %v540 = vld [vmem:[%s6 + $0x10] sm:$0xff]
      %v541 = vld [vmem:[%s6 + $0x18] sm:$0xff]
      %v543 = vsel %vm367, %v359, 0
      %v546 = vsel %vm367, %v360, 0
      %548 = vmatprep.subr.mxu0 0.0
      %549 = vmatpush1.msra.mxu0 0.0
      %550 = vmatprep.subr.mxu0 0.0
      %551 = vmatpush1.msra.mxu0 0.0
      %552 = vmatprep.subr.mxu0 0.0
      %553 = vmatpush1.msra.mxu0 0.0
      %554 = vmatprep.subr.mxu0 0.0
      %555 = vmatpush1.msra.mxu0 0.0
      %556 = vmatprep.subr.mxu0 0.0
      %557 = vmatpush1.msra.mxu0 0.0
      %558 = vmatprep.subr.mxu0 0.0
      %559 = vmatpush1.msra.mxu0 0.0
      %560 = vmatprep.subr.mxu0 0.0
      %561 = vmatpush1.msra.mxu0 0.0
      %562 = vmatprep.subr.mxu0 0.0
      %563 = vmatpush1.msra.mxu0 0.0
      %564 = vmatprep.subr.mxu0 0.0
      %565 = vmatpush1.msra.mxu0 0.0
      %566 = vmatprep.subr.mxu0 0.0
      %567 = vmatpush1.msra.mxu0 0.0
      %568 = vmatprep.subr.mxu0 0.0
      %569 = vmatpush1.msra.mxu0 0.0
      %570 = vmatprep.subr.mxu0 0.0
      %571 = vmatpush1.msra.mxu0 0.0
      %572 = vmatprep.subr.mxu0 0.0
      %573 = vmatpush1.msra.mxu0 %v541
      %574 = vmatprep.subr.mxu0 0.0
      %575 = vmatpush1.msra.mxu0 %v540
      %576 = vmatprep.subr.mxu0 0.0
      %577 = vmatpush1.msra.mxu0 %v539
      %578 = vmatprep.subr.mxu0 0.0
      %579 = vmatpush1.msra.mxu0 %v538
      %580 = vmatprep.subr.mxu0 0.0
      %581 = vmatpush2.msra.mxu0 0.0
      %582 = vmatprep.subr.mxu0 0.0
      %583 = vmatpush2.msra.mxu0 0.0
      %584 = vmatprep.subr.mxu0 0.0
      %585 = vmatpush2.msra.mxu0 0.0
      %586 = vmatprep.subr.mxu0 0.0
      %587 = vmatpush2.msra.mxu0 0.0
      %588 = vmatprep.subr.mxu0 0.0
      %589 = vmatpush2.msra.mxu0 0.0
      %590 = vmatprep.subr.mxu0 0.0
      %591 = vmatpush2.msra.mxu0 0.0
      %592 = vmatprep.subr.mxu0 0.0
      %593 = vmatpush2.msra.mxu0 0.0
      %594 = vmatprep.subr.mxu0 0.0
      %595 = vmatpush2.msra.mxu0 0.0
      %596 = vmatprep.subr.mxu0 0.0
      %597 = vmatpush2.msra.mxu0 0.0
      %598 = vmatprep.subr.mxu0 0.0
      %599 = vmatpush2.msra.mxu0 0.0
      %600 = vmatprep.subr.mxu0 0.0
      %601 = vmatpush2.msra.mxu0 0.0
      %602 = vmatprep.subr.mxu0 0.0
      %603 = vmatpush2.msra.mxu0 0.0
      %604 = vmatprep.subr.mxu0 0.0
      %605 = vmatpush2.msra.mxu0 0.0
      %606 = vmatprep.subr.mxu0 0.0
      %607 = vmatpush2.msra.mxu0 0.0
      %608 = vmatprep.subr.mxu0 0.0
      %609 = vmatpush2.msra.mxu0 0.0
      %610 = vmatprep.subr.mxu0 0.0
      %611 = vmatpush2.msra.mxu0 0.0
      %612 = vmatprep.mubr.f32.mxu0 0.0
      %613 = vmatmul.mubr.f32.gmra.mxu0 %v543
      %v614 = vpop.f32.mrf.mxu0
      %v615 = vadd.f32 0.0, %v614
      %v616 = vpop.f32.mrf.mxu0
      %617 = vmatprep.mubr.f32.mxu0 0.0
      %618 = vmatmul.mubr.f32.gmra.mxu0 %v546
      %v619 = vpop.f32.mrf.mxu0
      %v620 = vadd.f32 0.0, %v619
      %v621 = vpop.f32.mrf.mxu0
      %622 = vdwg.mxu0
      %v623 = vadd.f32 %v536, %v615
      %v624 = vadd.f32 %v537, %v620
      %vm625 = vcmask 64512
      %626 = vst.msk [vmem:[%s338] sm:$0xff] %vm625, %v623
      %627 = vst.msk [vmem:[%s338 + $0x8] sm:$0xff] %vm625, %v624
      %p628 = scmp.lt.s32.totalorder %s18, 1
      %s629 = scalar_select %p628, %s18, 1
      %s630 = smul.addr %s629, 2
      %s631 = smul.addr %s630, 8
      %s632 = scalar_lea.vmem %s7, %s631
      // Predicated region
      $region49: #{_lambda_.28} parent=47 // pred_check
        %p633 = pneg %p203
      $region50: #{_lambda_.28} parent=47 // pred_check_branch
        %635 = sbr.rel (%p633) target = $region52
      $region51: #{_lambda_.28} parent=47 // pred_region
        _
      $region52: #{_lambda_.28} parent=47 // pred_fallthru
        _
    $region48: #{_lambda_.28} parent=5 // pred_fallthru
      _
    %p636 = scmp.le.s32.totalorder 2, %s13
    // Predicated region
    $region53: #{_lambda_.28} parent=5 // pred_check
      %p637 = pneg %p636
    $region54: #{_lambda_.28} parent=5 // pred_check_branch
      %639 = sbr.rel (%p637) target = $region56
    $region55: #{_lambda_.28} parent=5 // pred_region
      %s640 = ssub.s32 %s13, 2
      // Predicated region
      $region57: #{_lambda_.28} parent=55 // pred_check
        %p641 = pneg %p209
      $region58: #{_lambda_.28} parent=55 // pred_check_branch
        %643 = sbr.rel (%p641) target = $region60
      $region59: #{_lambda_.28} parent=55 // pred_region
        %p644 = scmp.lt.s32.totalorder %s19, 1
        %s645 = scalar_select %p644, %s19, 1
        %s646 = smul.addr %s645, 2
        %s647 = smul.addr %s646, 8
        %s648 = scalar_lea.vmem %s7, %s647
      $region60: #{_lambda_.28} parent=55 // pred_fallthru
        _
    $region56: #{_lambda_.28} parent=5 // pred_fallthru
      _
  $region6: #{_lambda_.28} parent=0 // loop_footer
    %s17 = sadd.s32 1, %s13
  $region7: #{_lambda_.28} parent=0 // loop_footer_branch
    %12 = sbr.rel target = $region3
  $region8: #{_lambda_.28} parent=0 // loop_exit
    _

// kernel: _lambda_.27
$region0: #{_lambda_.27}
  #allocation0 [shape = 'u32[]', space=smem, size = 0x4, offset = 0x4, fixed_abs, tag = 'smem constant byte address 0x4 - core index']
  #allocation1 [shape = 'u32[144,128]{1,0:T(1,128)}', space=vmem, size = 0x12000, scoped, tag = 'internal scratch']
  %s0 = inlined_call_operand.vmem [shape: f32[2,16,32], index: 0, kind: input, shape index: {}]
  %s1 = inlined_call_operand.vmem [shape: f32[1,32], index: 1, kind: input, shape index: {}]
  %s2 = inlined_call_operand.vmem [shape: f32[1,32], index: 2, kind: input, shape index: {}]
  %s3 = inlined_call_operand.vmem [shape: f32[32,8], index: 3, kind: input, shape index: {}]
  %s4 = inlined_call_operand.vmem [shape: f32[1,8], index: 4, kind: input, shape index: {}]
  %s5 = inlined_call_operand.vmem [shape: f32[2,16,8], index: 5, kind: output, shape index: {}]
  %s6 = sld [smem:[#allocation0]]
  $region53: #{_lambda_.27} parent=0
    _
  %s8 = ssub.s32 1, %s6
  %s9 = scalar_select 0, %s8, %s6
  loop: start=0, step=1, limit=4
  $region2: #{_lambda_.27} parent=0 // loop_pre_header
    _
  $region3: #{_lambda_.27} parent=0 // loop_header
    %s11 = sphi 0, %s15
    %p12 = scmp.ge.s32.totalorder %s11, 4
    %s21 = sphi 0, %s23
    %s24 = sphi 0, %s21
    %s25 = sphi 0, %s24
    %s41 = sphi 0, %s25
    %s45 = sphi 0, %s45
    %s47 = sphi 0, %s45
    %s48 = sphi 0, %s47
    %s62 = sphi 0, %s48
    %s66 = sphi 0, %s66
    %s68 = sphi 0, %s66
    %s69 = sphi 0, %s68
    %s83 = sphi 0, %s69
    %s87 = sphi 0, %s87
    %s89 = sphi 0, %s87
    %s90 = sphi 0, %s89
    %s104 = sphi 0, %s90
    %s108 = sphi 0, %s108
    %s110 = sphi 0, %s108
    %s111 = sphi 0, %s110
    %s125 = sphi 0, %s111
    %s131 = sphi 0, %s133
    %s134 = sphi 0, %s131
    %s135 = sphi 0, %s134
    %s151 = sphi 0, %s135
  $region4: #{_lambda_.27} parent=0 // loop_header_branch
    %14 = sbr.rel (%p12) target = $region8
  $region5: #{_lambda_.27} parent=0 // loop_body
    %s16 = ssub.s32 %s11, 1
    %s17 = ssub.s32 %s11, 2
    %s18 = sadd.s32 %s11, 1
    %s19 = ssub.s32 %s11, %s18
    %p20 = scmp.eq.s32.totalorder %s19, 0
    %s22 = sadd.s32 %s21, 1
    %s23 = scalar_select %p20, %s21, %s22
    %p26 = pneg %p20
    %p27 = scmp.eq.s32.totalorder %s11, 1
    %p28 = por %p26, %p27
    %p29 = scmp.ne.s32.totalorder %s21, %s24
    %p30 = scmp.eq.s32.totalorder %s11, 0
    %p31 = por %p29, %p30
    %p32 = scmp.ne.s32.totalorder %s21, %s24
    %p33 = scmp.eq.s32.totalorder %s16, 1
    %p34 = por %p32, %p33
    %p35 = scmp.ne.s32.totalorder %s24, %s25
    %p36 = scmp.eq.s32.totalorder %s16, 0
    %p37 = por %p35, %p36
    %p38 = scmp.ne.s32.totalorder %s24, %s25
    %p39 = scmp.eq.s32.totalorder %s17, 1
    %p40 = por %p38, %p39
    %p42 = scmp.ne.s32.totalorder %s25, %s41
    %p43 = scmp.eq.s32.totalorder %s17, 0
    %p44 = por %p42, %p43
    %s46 = sadd.s32 %s45, 1
    %p49 = scmp.eq.s32.totalorder %s11, 1
    %p50 = scmp.ne.s32.totalorder %s45, %s47
    %p51 = scmp.eq.s32.totalorder %s11, 0
    %p52 = por %p50, %p51
    %p53 = scmp.ne.s32.totalorder %s45, %s47
    %p54 = scmp.eq.s32.totalorder %s16, 1
    %p55 = por %p53, %p54
    %p56 = scmp.ne.s32.totalorder %s47, %s48
    %p57 = scmp.eq.s32.totalorder %s16, 0
    %p58 = por %p56, %p57
    %p59 = scmp.ne.s32.totalorder %s47, %s48
    %p60 = scmp.eq.s32.totalorder %s17, 1
    %p61 = por %p59, %p60
    %p63 = scmp.ne.s32.totalorder %s48, %s62
    %p64 = scmp.eq.s32.totalorder %s17, 0
    %p65 = por %p63, %p64
    %s67 = sadd.s32 %s66, 1
    %p70 = scmp.eq.s32.totalorder %s11, 1
    %p71 = scmp.ne.s32.totalorder %s66, %s68
    %p72 = scmp.eq.s32.totalorder %s11, 0
    %p73 = por %p71, %p72
    %p74 = scmp.ne.s32.totalorder %s66, %s68
    %p75 = scmp.eq.s32.totalorder %s16, 1
    %p76 = por %p74, %p75
    %p77 = scmp.ne.s32.totalorder %s68, %s69
    %p78 = scmp.eq.s32.totalorder %s16, 0
    %p79 = por %p77, %p78
    %p80 = scmp.ne.s32.totalorder %s68, %s69
    %p81 = scmp.eq.s32.totalorder %s17, 1
    %p82 = por %p80, %p81
    %p84 = scmp.ne.s32.totalorder %s69, %s83
    %p85 = scmp.eq.s32.totalorder %s17, 0
    %p86 = por %p84, %p85
    %s88 = sadd.s32 %s87, 1
    %p91 = scmp.eq.s32.totalorder %s11, 1
    %p92 = scmp.ne.s32.totalorder %s87, %s89
    %p93 = scmp.eq.s32.totalorder %s11, 0
    %p94 = por %p92, %p93
    %p95 = scmp.ne.s32.totalorder %s87, %s89
    %p96 = scmp.eq.s32.totalorder %s16, 1
    %p97 = por %p95, %p96
    %p98 = scmp.ne.s32.totalorder %s89, %s90
    %p99 = scmp.eq.s32.totalorder %s16, 0
    %p100 = por %p98, %p99
    %p101 = scmp.ne.s32.totalorder %s89, %s90
    %p102 = scmp.eq.s32.totalorder %s17, 1
    %p103 = por %p101, %p102
    %p105 = scmp.ne.s32.totalorder %s90, %s104
    %p106 = scmp.eq.s32.totalorder %s17, 0
    %p107 = por %p105, %p106
    %s109 = sadd.s32 %s108, 1
    %p112 = scmp.eq.s32.totalorder %s11, 1
    %p113 = scmp.ne.s32.totalorder %s108, %s110
    %p114 = scmp.eq.s32.totalorder %s11, 0
    %p115 = por %p113, %p114
    %p116 = scmp.ne.s32.totalorder %s108, %s110
    %p117 = scmp.eq.s32.totalorder %s16, 1
    %p118 = por %p116, %p117
    %p119 = scmp.ne.s32.totalorder %s110, %s111
    %p120 = scmp.eq.s32.totalorder %s16, 0
    %p121 = por %p119, %p120
    %p122 = scmp.ne.s32.totalorder %s110, %s111
    %p123 = scmp.eq.s32.totalorder %s17, 1
    %p124 = por %p122, %p123
    %p126 = scmp.ne.s32.totalorder %s111, %s125
    %p127 = scmp.eq.s32.totalorder %s17, 0
    %p128 = por %p126, %p127
    %s129 = ssub.s32 %s11, %s18
    %p130 = scmp.eq.s32.totalorder %s129, 0
    %s132 = sadd.s32 %s131, 1
    %s133 = scalar_select %p130, %s131, %s132
    %p136 = pneg %p130
    %p137 = scmp.eq.s32.totalorder %s11, 1
    %p138 = por %p136, %p137
    %p139 = scmp.ne.s32.totalorder %s131, %s134
    %p140 = scmp.eq.s32.totalorder %s11, 0
    %p141 = por %p139, %p140
    %p142 = scmp.ne.s32.totalorder %s131, %s134
    %p143 = scmp.eq.s32.totalorder %s16, 1
    %p144 = por %p142, %p143
    %p145 = scmp.ne.s32.totalorder %s134, %s135
    %p146 = scmp.eq.s32.totalorder %s16, 0
    %p147 = por %p145, %p146
    %p148 = scmp.ne.s32.totalorder %s134, %s135
    %p149 = scmp.eq.s32.totalorder %s17, 1
    %p150 = por %p148, %p149
    %p152 = scmp.ne.s32.totalorder %s135, %s151
    %p153 = scmp.eq.s32.totalorder %s17, 0
    %p154 = por %p152, %p153
    %p155 = scmp.le.s32.totalorder 1, %s11
    %p156 = scmp.lt.s32.totalorder %s11, 3
    %p157 = pnand %p155, %p156
    %p158 = pneg %p157
    // Predicated region
    $region9: #{_lambda_.27} parent=5 // pred_check
      _
    $region10: #{_lambda_.27} parent=5 // pred_check_branch
      %160 = sbr.rel (%p157) target = $region12
    $region11: #{_lambda_.27} parent=5 // pred_region
      %s161 = ssub.s32 %s11, 1
      // Predicated region
      $region13: #{_lambda_.27} parent=11 // pred_check
        %p162 = pneg %p58
      $region14: #{_lambda_.27} parent=11 // pred_check_branch
        %164 = sbr.rel (%p162) target = $region16
      $region15: #{_lambda_.27} parent=11 // pred_region
        _
      $region16: #{_lambda_.27} parent=11 // pred_fallthru
        _
      // Predicated region
      $region17: #{_lambda_.27} parent=11 // pred_check
        %p165 = pneg %p79
      $region18: #{_lambda_.27} parent=11 // pred_check_branch
        %167 = sbr.rel (%p165) target = $region20
      $region19: #{_lambda_.27} parent=11 // pred_region
        _
      $region20: #{_lambda_.27} parent=11 // pred_fallthru
        _
      // Predicated region
      $region21: #{_lambda_.27} parent=11 // pred_check
        %p168 = pneg %p100
      $region22: #{_lambda_.27} parent=11 // pred_check_branch
        %170 = sbr.rel (%p168) target = $region24
      $region23: #{_lambda_.27} parent=11 // pred_region
        _
      $region24: #{_lambda_.27} parent=11 // pred_fallthru
        _
      // Predicated region
      $region25: #{_lambda_.27} parent=11 // pred_check
        %p171 = pneg %p121
      $region26: #{_lambda_.27} parent=11 // pred_check_branch
        %173 = sbr.rel (%p171) target = $region28
      $region27: #{_lambda_.27} parent=11 // pred_region
        _
      $region28: #{_lambda_.27} parent=11 // pred_fallthru
        _
    $region12: #{_lambda_.27} parent=5 // pred_fallthru
      _
    %p174 = scmp.lt.s32.totalorder %s11, 2
    // Predicated region
    $region29: #{_lambda_.27} parent=5 // pred_check
      %p175 = pneg %p174
    $region30: #{_lambda_.27} parent=5 // pred_check_branch
      %177 = sbr.rel (%p175) target = $region32
    $region31: #{_lambda_.27} parent=5 // pred_region
      // Predicated region
      $region33: #{_lambda_.27} parent=31 // pred_check
        %p178 = pneg %p31
      $region34: #{_lambda_.27} parent=31 // pred_check_branch
        %180 = sbr.rel (%p178) target = $region36
      $region35: #{_lambda_.27} parent=31 // pred_region
        %p181 = scmp.lt.s32.totalorder %s11, 1
        %s182 = scalar_select %p181, %s11, 1
        %s183 = smul.addr %s182, 2
        %s184 = smul.addr %s183, 8
        %s185 = scalar_lea.vmem %s0, %s184
      $region36: #{_lambda_.27} parent=31 // pred_fallthru
        _
    $region32: #{_lambda_.27} parent=5 // pred_fallthru
      _
    %p186 = scmp.le.s32.totalorder 1, %s11
    %p187 = scmp.lt.s32.totalorder %s11, 3
    %p188 = pnand %p186, %p187
    %p189 = pneg %p188
    // Predicated region
    $region37: #{_lambda_.27} parent=5 // pred_check
      _
    $region38: #{_lambda_.27} parent=5 // pred_check_branch
      %191 = sbr.rel (%p188) target = $region40
    $region39: #{_lambda_.27} parent=5 // pred_region
      %s192 = ssub.s32 %s11, 1
      %p193 = scmp.lt.s32.totalorder %s16, 1
      %s194 = scalar_select %p193, %s16, 1
      %s195 = smul.addr %s194, 2
      %s196 = smul.addr %s195, 8
      %s197 = scalar_lea.vmem %s0, %s196
      %p198 = pneg %p37
      %p199 = pneg %p34
      %p200 = pneg %p58
      %p201 = pneg %p55
      %p202 = pneg %p79
      %p203 = pneg %p76
      %p204 = pneg %p100
      %p205 = pneg %p97
      %p206 = pneg %p121
      %p207 = pneg %p118
      %p208 = pneg %p147
      %p209 = pneg %p144
      %p210 = scmp.lt.s32.totalorder %s16, 1
      %s211 = scalar_select %p210, %s16, 1
      %s212 = smul.addr %s211, 2
      %s213 = smul.addr %s212, 8
      %s214 = scalar_lea.vmem %s5, %s213
      %p215 = scmp.lt.s32.totalorder %s16, 1
      %s216 = scalar_select %p215, %s16, 1
      %s217 = smul.addr %s216, 2
      %s218 = smul.addr %s217, 8
      %s219 = scalar_lea.vmem %s0, %s218
      %p220 = scmp.lt.s32.totalorder %s16, 1
      %s221 = scalar_select %p220, %s16, 1
      %s222 = smul.addr %s221, 2
      %s223 = smul.addr %s222, 8
      %s224 = scalar_lea.vmem %s5, %s223
      %v225 = vld [vmem:[%s219] sm:$0xff]
      %v226 = vld [vmem:[%s219 + $0x8] sm:$0xff]
      %vm227 = vcmask 261120
      %v228 = vsel %vm227, %v225, 0.0
      %229 = vadd.xlane.f32.xlu0 %v228
      %v230 = vpop.xlane.xlu0 %229
      %v231 = vsel %vm227, %v226, 0.0
      %232 = vadd.xlane.f32.xlu0 %v231
      %v233 = vpop.xlane.xlu0 %232
      %v234 = vrcp.pop 32.0
      %v235 = vmul.f32 %v230, %v234
      %v236 = vmul.f32 %v233, %v234
      %v237 = vsub.f32 %v225, %v235
      %v238 = vsub.f32 %v226, %v236
      %v239 = vmul.f32 %v237, %v237
      %v240 = vmul.f32 %v238, %v238
      %v241 = vsel %vm227, %v239, 0.0
      %242 = vadd.xlane.f32.xlu0 %v241
      %v243 = vpop.xlane.xlu0 %242
      %v244 = vsel %vm227, %v240, 0.0
      %245 = vadd.xlane.f32.xlu0 %v244
      %v246 = vpop.xlane.xlu0 %245
      %v247 = vmul.f32 %v243, %v234
      %v248 = vmul.f32 %v246, %v234
      %v249 = vadd.f32 %v247, 1e-05
      %v250 = vadd.f32 %v248, 1e-05
      %v251 = vrsqrt.pop %v249
      %v252 = vrsqrt.pop %v250
      %v253 = vmul.f32 %v237, %v251
      %v254 = vmul.f32 %v238, %v252
      %v255 = vld [vmem:[%s1] sm:$0x1]
      %v257 = vlaneseq
      %v258 = vshrl.u32 %v257, 7
      %v259 = vsub.s32 0, %v258
      %v260 = vrot.slane %v255, %v259
      %v262 = vmul.f32 %v253, %v260
      %v263 = vmul.f32 %v254, %v260
      %v264 = vld [vmem:[%s2] sm:$0x1]
      %v266 = vlaneseq
      %v267 = vshrl.u32 %v266, 7
      %v268 = vsub.s32 0, %v267
      %v269 = vrot.slane %v264, %v268
      %v271 = vadd.f32 %v262, %v269
      %v272 = vadd.f32 %v263, %v269
      %v273 = vsel %vm227, %v271, 0.0
      %v274 = vsel %vm227, %v272, 0.0
      %v275 = vadd.f32 %v273, %v274
      %v276 = vrot.slane %v275, 4
      %v277 = vadd.f32 %v275, %v276
      %v278 = vrot.slane %v277, 2
      %v279 = vadd.f32 %v277, %v278
      %v280 = vrot.slane %v279, 1
      %v281 = vadd.f32 %v279, %v280
      %v282 = vrcp.pop 16.0
      %v283 = vmul.f32 %v281, %v282
      %v284 = vsub.f32 %v271, %v283
      %v285 = vsub.f32 %v272, %v283
      %v286 = vld [vmem:[%s3] sm:$0xff]
      %v287 = vld [vmem:[%s3 + $0x8] sm:$0xff]
      %v288 = vld [vmem:[%s3 + $0x10] sm:$0xff]
      %v289 = vld [vmem:[%s3 + $0x18] sm:$0xff]
      %v290 = vld [vmem:[%s4] sm:$0x1]
      %v292 = vlaneseq
      %v293 = vshrl.u32 %v292, 7
      %v294 = vsub.s32 0, %v293
      %v295 = vrot.slane %v290, %v294
      %v298 = vsel %vm227, %v284, 0
      %v301 = vsel %vm227, %v285, 0
      %303 = vmatprep.subr.mxu0 0.0
      %304 = vmatpush1.msra.mxu0 0.0
      %305 = vmatprep.subr.mxu0 0.0
      %306 = vmatpush1.msra.mxu0 0.0
      %307 = vmatprep.subr.mxu0 0.0
      %308 = vmatpush1.msra.mxu0 0.0
      %309 = vmatprep.subr.mxu0 0.0
      %310 = vmatpush1.msra.mxu0 0.0
      %311 = vmatprep.subr.mxu0 0.0
      %312 = vmatpush1.msra.mxu0 0.0
      %313 = vmatprep.subr.mxu0 0.0
      %314 = vmatpush1.msra.mxu0 0.0
      %315 = vmatprep.subr.mxu0 0.0
      %316 = vmatpush1.msra.mxu0 0.0
      %317 = vmatprep.subr.mxu0 0.0
      %318 = vmatpush1.msra.mxu0 0.0
      %319 = vmatprep.subr.mxu0 0.0
      %320 = vmatpush1.msra.mxu0 0.0
      %321 = vmatprep.subr.mxu0 0.0
      %322 = vmatpush1.msra.mxu0 0.0
      %323 = vmatprep.subr.mxu0 0.0
      %324 = vmatpush1.msra.mxu0 0.0
      %325 = vmatprep.subr.mxu0 0.0
      %326 = vmatpush1.msra.mxu0 0.0
      %327 = vmatprep.subr.mxu0 0.0
      %328 = vmatpush1.msra.mxu0 %v289
      %329 = vmatprep.subr.mxu0 0.0
      %330 = vmatpush1.msra.mxu0 %v288
      %331 = vmatprep.subr.mxu0 0.0
      %332 = vmatpush1.msra.mxu0 %v287
      %333 = vmatprep.subr.mxu0 0.0
      %334 = vmatpush1.msra.mxu0 %v286
      %335 = vmatprep.subr.mxu0 0.0
      %336 = vmatpush2.msra.mxu0 0.0
      %337 = vmatprep.subr.mxu0 0.0
      %338 = vmatpush2.msra.mxu0 0.0
      %339 = vmatprep.subr.mxu0 0.0
      %340 = vmatpush2.msra.mxu0 0.0
      %341 = vmatprep.subr.mxu0 0.0
      %342 = vmatpush2.msra.mxu0 0.0
      %343 = vmatprep.subr.mxu0 0.0
      %344 = vmatpush2.msra.mxu0 0.0
      %345 = vmatprep.subr.mxu0 0.0
      %346 = vmatpush2.msra.mxu0 0.0
      %347 = vmatprep.subr.mxu0 0.0
      %348 = vmatpush2.msra.mxu0 0.0
      %349 = vmatprep.subr.mxu0 0.0
      %350 = vmatpush2.msra.mxu0 0.0
      %351 = vmatprep.subr.mxu0 0.0
      %352 = vmatpush2.msra.mxu0 0.0
      %353 = vmatprep.subr.mxu0 0.0
      %354 = vmatpush2.msra.mxu0 0.0
      %355 = vmatprep.subr.mxu0 0.0
      %356 = vmatpush2.msra.mxu0 0.0
      %357 = vmatprep.subr.mxu0 0.0
      %358 = vmatpush2.msra.mxu0 0.0
      %359 = vmatprep.subr.mxu0 0.0
      %360 = vmatpush2.msra.mxu0 0.0
      %361 = vmatprep.subr.mxu0 0.0
      %362 = vmatpush2.msra.mxu0 0.0
      %363 = vmatprep.subr.mxu0 0.0
      %364 = vmatpush2.msra.mxu0 0.0
      %365 = vmatprep.subr.mxu0 0.0
      %366 = vmatpush2.msra.mxu0 0.0
      %367 = vmatprep.mubr.f32.mxu0 0.0
      %368 = vmatmul.mubr.f32.gmra.mxu0 %v298
      %v369 = vpop.f32.mrf.mxu0
      %v370 = vadd.f32 %v295, %v369
      %v371 = vpop.f32.mrf.mxu0
      %372 = vmatprep.mubr.f32.mxu0 0.0
      %373 = vmatmul.mubr.f32.gmra.mxu0 %v301
      %v374 = vpop.f32.mrf.mxu0
      %v375 = vadd.f32 %v295, %v374
      %v376 = vpop.f32.mrf.mxu0
      %377 = vdwg.mxu0
      %vm378 = vcmask 64512
      %379 = vst.msk [vmem:[%s224] sm:$0xff] %vm378, %v370
      %380 = vst.msk [vmem:[%s224 + $0x8] sm:$0xff] %vm378, %v375
      %p381 = scmp.lt.s32.totalorder %s16, 1
      %s382 = scalar_select %p381, %s16, 1
      %s383 = smul.addr %s382, 2
      %s384 = smul.addr %s383, 8
      %s385 = scalar_lea.vmem %s5, %s384
      // Predicated region
      $region41: #{_lambda_.27} parent=39 // pred_check
        %p386 = pneg %p144
      $region42: #{_lambda_.27} parent=39 // pred_check_branch
        %388 = sbr.rel (%p386) target = $region44
      $region43: #{_lambda_.27} parent=39 // pred_region
        _
      $region44: #{_lambda_.27} parent=39 // pred_fallthru
        _
    $region40: #{_lambda_.27} parent=5 // pred_fallthru
      _
    %p389 = scmp.le.s32.totalorder 2, %s11
    // Predicated region
    $region45: #{_lambda_.27} parent=5 // pred_check
      %p390 = pneg %p389
    $region46: #{_lambda_.27} parent=5 // pred_check_branch
      %392 = sbr.rel (%p390) target = $region48
    $region47: #{_lambda_.27} parent=5 // pred_region
      %s393 = ssub.s32 %s11, 2
      // Predicated region
      $region49: #{_lambda_.27} parent=47 // pred_check
        %p394 = pneg %p150
      $region50: #{_lambda_.27} parent=47 // pred_check_branch
        %396 = sbr.rel (%p394) target = $region52
      $region51: #{_lambda_.27} parent=47 // pred_region
        %p397 = scmp.lt.s32.totalorder %s17, 1
        %s398 = scalar_select %p397, %s17, 1
        %s399 = smul.addr %s398, 2
        %s400 = smul.addr %s399, 8
        %s401 = scalar_lea.vmem %s5, %s400
      $region52: #{_lambda_.27} parent=47 // pred_fallthru
        _
    $region48: #{_lambda_.27} parent=5 // pred_fallthru
      _
  $region6: #{_lambda_.27} parent=0 // loop_footer
    %s15 = sadd.s32 1, %s11
  $region7: #{_lambda_.27} parent=0 // loop_footer_branch
    %10 = sbr.rel target = $region3
  $region8: #{_lambda_.27} parent=0 // loop_exit
    _

</llo_original>
